<compile_context>
chip_gen: v6e
topology: v6e:2x2x1
jax: 0.10.0
libtpu: 0.0.40
codegen_flags: <defaults>
</compile_context>

<pallas_src>
import numpy as np

import jax
import jax.numpy as jnp
from jax.experimental import pallas as pl
from jax.experimental.pallas import tpu as pltpu


# --------------------------- one-time parameter prep -------------------------

def _fold_bn(gamma, beta, mean, var, eps=1e-5):
    # TODO(synk): BatchNorm is folded in inference mode (running stats);
    # training-mode batch statistics are not reproduced.
    scale = gamma / jnp.sqrt(var + eps)
    bias = beta - mean * scale
    return scale, bias


def _block_diag(m, pack):
    """(N, M) -> (pack*N, pack*M) block-diagonal (same block on the diagonal)."""
    n, c = m.shape
    eye = jnp.eye(pack, dtype=m.dtype)
    return jnp.einsum('pq,nc->pnqc', eye, m).reshape(pack * n, pack * c)


def _conv_t_mats(w, scale, w_in, stride, pad, pack):
    """Fold a PyTorch conv weight (Cout,Cin,KH,KW) + BN scale + kw selection /
    W padding / W stride + batch-pack block-diagonal into per-kh operand
    matrices T[kh] of shape (pack*W_in*Cin, pack*W_out*Cout), stored bf16."""
    cout, cin, kh, kw = w.shape
    w_out = (w_in + 2 * pad - kw) // stride + 1
    kw_i = np.arange(kw)[:, None, None]
    wi_i = np.arange(w_in)[None, :, None]
    wo_i = np.arange(w_out)[None, None, :]
    sel = (wi_i == stride * wo_i + kw_i - pad).astype(np.float32)   # (KW,Wi,Wo)
    wm = jnp.transpose(w, (2, 3, 1, 0)) * scale[None, None, None, :]  # KH,KW,Ci,Co
    taps = jnp.einsum('kiw,hkcd->hicwd', jnp.asarray(sel), wm)
    taps = taps.reshape(kh, w_in * cin, w_out * cout)
    eye = jnp.eye(pack, dtype=taps.dtype)
    t_bd = jnp.einsum('pq,knm->kpnqm', eye, taps)
    t_bd = t_bd.reshape(kh, pack * w_in * cin, pack * w_out * cout)
    return t_bd.astype(jnp.bfloat16), w_out


def _make_r(h_in, h_out, stride, pad, kh, cat):
    """Precomputed 0/1 H-axis tap-selection matrices (f32).
    cat=True  -> (h_out, kh*h_in): a single matmul does H selection + tap sum.
    cat=False -> (kh, h_out, h_in): per-tap selection matrices."""
    oi = np.arange(h_out)[:, None]
    ii = np.arange(h_in)[None, :]
    rs = [(ii == stride * oi + k - pad).astype(np.float32) for k in range(kh)]
    if cat:
        return jnp.asarray(np.concatenate(rs, axis=1))
    return jnp.asarray(np.stack(rs, axis=0))


def _tile_bias(bias, w_out, pack):
    # (Cout,) -> (1, pack*W_out*Cout) matching the channel-minor lane layout.
    return jnp.tile(bias, (pack * w_out,)).reshape(1, -1)


def prepare_params(params, *, in_hw, pack=2):
    """One-time prep hoisted out of the forward pass (R, T, biases, head)."""
    ops = []

    def add_conv(w, scale, bias, h_in, stride, pad):
        kh = w.shape[2]
        t_bd, h_out = _conv_t_mats(w, scale, h_in, stride, pad, pack)
        cat = (kh > 1) and (h_in % 8 == 0)   # sublane-aligned concat only
        r = _make_r(h_in, h_out, stride, pad, kh, cat)
        ops.extend([r, t_bd, _tile_bias(bias, h_out, pack)])
        return h_out

    h = add_conv(params['conv1_w'], params['bn1_s'], params['bn1_b'],
                 in_hw, 1, 1)

    blocks_meta = []
    for blk in params['blocks']:
        s = blk['stride']
        h_in = h
        h = add_conv(blk['w1'], blk['s1'], blk['b1'], h_in, s, 1)
        has_sc = 'wsc' in blk
        if has_sc:
            add_conv(blk['wsc'], blk['ssc'], blk['bsc'], h_in, s, 0)
        add_conv(blk['w2'], blk['s2'], blk['b2'], h, 1, 1)
        blocks_meta.append(dict(has_sc=has_sc))

    # out_conv (1x1, no BN, no bias): H selection is identity -> single matmul.
    t_out, _ = _conv_t_mats(params['out_conv_w'],
                            jnp.ones((1,), jnp.float32), h, 1, 0, pack)
    # Head: global average pool folded into a block-diagonal linear weight.
    lin_eff = jnp.tile(params['lin_w'], (h, 1)) / float(h * h)
    lin_bd = _block_diag(lin_eff, pack)
    lin_b = jnp.tile(params['lin_b'], (1, pack))
    ops.extend([t_out, lin_bd, lin_b])

    meta = dict(in_hw=in_hw, pack=pack, blocks=blocks_meta, h_final=h,
                num_classes=params['lin_w'].shape[1], n_ops=len(ops))
    return ops, meta


# ----------------------------- fused Pallas kernel --------------------------

def _conv_apply(act, r_ref, t_ref, b_ref):
    """Conv + folded BN on a (H_in, pack*W_in*Cin) activation value."""
    kh = t_ref.shape[0]
    if r_ref.ndim == 2:
        # Fused tap-sum: kh wide bf16 act@T matmuls, then ONE f32 R_cat matmul
        # performing H selection/pad/stride AND the tap accumulation in the
        # MXU reduction (tap sum moved off the VPU).
        a_bf = act.astype(jnp.bfloat16)
        parts = [jnp.dot(a_bf, t_ref[k], preferred_element_type=jnp.float32)
                 for k in range(kh)]
        s = parts[0] if kh == 1 else jnp.concatenate(parts, axis=0)
        out = jnp.dot(r_ref[...], s, preferred_element_type=jnp.float32)
    else:
        # Per-tap fallback (precomputed R_k), used where the sublane concat
        # would be unaligned and for 1x1 strided shortcuts.
        out = None
        for k in range(kh):
            g = jnp.dot(r_ref[k], act, preferred_element_type=jnp.float32)
            y = jnp.dot(g.astype(jnp.bfloat16), t_ref[k],
                        preferred_element_type=jnp.float32)
            out = y if out is None else out + y
    return out + b_ref[...]


def _make_kernel(meta):
    blocks = meta['blocks']
    n_ops = meta['n_ops']

    def kernel(*refs):
        x_ref = refs[0]
        ops = refs[1:1 + n_ops]
        logits_ref = refs[1 + n_ops]
        dice_ref = refs[2 + n_ops]

        p = 0
        # conv1 + bn1 + relu
        act = jnp.maximum(
            _conv_apply(x_ref[...], ops[p], ops[p + 1], ops[p + 2]), 0.0)
        p += 3

        # basic blocks
        for blk in blocks:
            o = jnp.maximum(
                _conv_apply(act, ops[p], ops[p + 1], ops[p + 2]), 0.0)
            p += 3
            if blk['has_sc']:
                sc = _conv_apply(act, ops[p], ops[p + 1], ops[p + 2])
                p += 3
            else:
                sc = act
            act = jnp.maximum(
                _conv_apply(o, ops[p], ops[p + 1], ops[p + 2]) + sc, 0.0)
            p += 3

        t_out, lin_w, lin_b = ops[p], ops[p + 1], ops[p + 2]

        # out_conv (1x1, identity H selection) + exact sigmoid -> dice map
        z = jnp.dot(act.astype(jnp.bfloat16), t_out[0],
                    preferred_element_type=jnp.float32)
        dice_ref[...] = 1.0 / (1.0 + jnp.exp(-z))

        # global average pool (folded into lin_w) + linear head
        pooled = jnp.sum(act, axis=0, keepdims=True)
        logits_ref[...] = (
            jnp.dot(pooled, lin_w[...], preferred_element_type=jnp.float32)
            + lin_b[...])

    return kernel


def make_forward(meta):
    kernel = _make_kernel(meta)
    pack = meta['pack']
    hf = meta['h_final']
    ncls = meta['num_classes']

    def fwd(x_nchw, operands):
        b, c, h, w = x_nchw.shape
        pad_b = (-b) % pack
        if pad_b:
            x_nchw = jnp.concatenate(
                [x_nchw, jnp.zeros((pad_b, c, h, w), x_nchw.dtype)], axis=0)
        bp = b + pad_b
        npairs = bp // pack

        # NCHW -> (pairs, H, pack*W*C): batch pack folded into the lane axis so
        # every matmul runs with full (128-wide) lanes.
        x = jnp.transpose(x_nchw, (0, 2, 3, 1))
        x = x.reshape(npairs, pack, h, w * c)
        x = jnp.transpose(x, (0, 2, 1, 3)).reshape(npairs, h, pack * w * c)

        def full(a):
            return pl.BlockSpec(a.shape, lambda i, nd=a.ndim: (0,) * nd)

        in_specs = (
            [pl.BlockSpec((None, h, pack * w * c), lambda i: (i, 0, 0))]
            + [full(op) for op in operands])
        out_specs = (
            pl.BlockSpec((None, 1, pack * ncls), lambda i: (i, 0, 0)),
            pl.BlockSpec((None, hf, pack * hf), lambda i: (i, 0, 0)),
        )

        logits, dice = pl.pallas_call(
            kernel,
            grid=(npairs,),
            out_shape=(
                jax.ShapeDtypeStruct((npairs, 1, pack * ncls), jnp.float32),
                jax.ShapeDtypeStruct((npairs, hf, pack * hf), jnp.float32)),
            in_specs=in_specs,
            out_specs=out_specs,
            compiler_params=pltpu.CompilerParams(
                dimension_semantics=("parallel",),
                vmem_limit_bytes=32 * 1024 * 1024),
        )(x, *operands)

        logits = logits.reshape(bp, ncls)[:b]
        dice = dice.reshape(npairs, hf, pack, hf)
        dice = jnp.transpose(dice, (0, 2, 1, 3)).reshape(bp, 1, hf, hf)[:b]
        return logits, dice

    return jax.jit(fwd)


# ----------------------------- parameters -----------------------------------

def init_params(key, base_channels=4, rate=(2, 4), num_blocks=(1, 1),
                num_classes=2, in_ch=1):
    channels = [base_channels * r for r in rate]
    in_planes = [base_channels] + channels[:-1]
    out_planes = channels
    keys = iter(jax.random.split(key, 128))

    def conv_w(cout, cin, k):
        return 0.1 * jax.random.normal(next(keys), (cout, cin, k, k),
                                       jnp.float32)

    def bn(c):
        gamma = 1.0 + 0.1 * jax.random.normal(next(keys), (c,), jnp.float32)
        beta = 0.1 * jax.random.normal(next(keys), (c,), jnp.float32)
        return _fold_bn(gamma, beta, jnp.zeros((c,), jnp.float32),
                        jnp.ones((c,), jnp.float32))

    def make_block(cin, cout, stride):
        p = {'stride': stride}
        p['w1'] = conv_w(cout, cin, 3)
        p['s1'], p['b1'] = bn(cout)
        p['w2'] = conv_w(cout, cout, 3)
        p['s2'], p['b2'] = bn(cout)
        if stride != 1 or cin != cout:
            p['wsc'] = conv_w(cout, cin, 1)
            p['ssc'], p['bsc'] = bn(cout)
        return p

    params = {}
    params['conv1_w'] = conv_w(base_channels, in_ch, 3)
    params['bn1_s'], params['bn1_b'] = bn(base_channels)

    blocks = []
    cin = base_channels
    for s in [1] * num_blocks[0]:                    # first stride-1 stack
        blocks.append(make_block(cin, base_channels, s))
        cin = base_channels
    for i in range(len(channels)):                   # strided stages
        cin = in_planes[i]
        for s in [2] + [1] * (num_blocks[i] - 1):
            blocks.append(make_block(cin, out_planes[i], s))
            cin = out_planes[i]
    params['blocks'] = blocks

    params['lin_w'] = 0.1 * jax.random.normal(next(keys),
                                              (channels[-1], num_classes),
                                              jnp.float32)
    params['lin_b'] = 0.1 * jax.random.normal(next(keys), (1, num_classes),
                                              jnp.float32)
    params['out_conv_w'] = conv_w(1, channels[-1], 1)
    return params


# ----------------------------- main ------------------------------------------

if __name__ == "__main__":
    key = jax.random.PRNGKey(0)
    pkey, xkey = jax.random.split(key)
    # config: base_channels=4, rate=(2,4), num_blocks=(1,1), in_ch=1, size=16
    params = init_params(pkey, base_channels=4, rate=(2, 4),
                         num_blocks=(1, 1), num_classes=2, in_ch=1)
    operands, meta = prepare_params(params, in_hw=16, pack=2)
    forward = make_forward(meta)

    x = jax.random.normal(xkey, (2, 1, 16, 16), jnp.float32)   # NCHW
    logits, dice_map = forward(x, operands)
    jax.block_until_ready((logits, dice_map))
    assert logits.shape == (2, 2), logits.shape
    assert dice_map.shape == (2, 1, 4, 4), dice_map.shape
    print("KERNEL_OK")
</pallas_src>

<mosaic_0001>
module attributes {stable_mosaic.version = 11 : i64} {
  func.func @kernel(%arg0: i32, %arg1: memref<1x16x32xf32, #tpu.memory_space<vmem>>, %arg2: memref<16x48xf32, #tpu.memory_space<vmem>>, %arg3: memref<3x32x128xbf16, #tpu.memory_space<vmem>>, %arg4: memref<1x128xf32, #tpu.memory_space<vmem>>, %arg5: memref<16x48xf32, #tpu.memory_space<vmem>>, %arg6: memref<3x128x128xbf16, #tpu.memory_space<vmem>>, %arg7: memref<1x128xf32, #tpu.memory_space<vmem>>, %arg8: memref<16x48xf32, #tpu.memory_space<vmem>>, %arg9: memref<3x128x128xbf16, #tpu.memory_space<vmem>>, %arg10: memref<1x128xf32, #tpu.memory_space<vmem>>, %arg11: memref<8x48xf32, #tpu.memory_space<vmem>>, %arg12: memref<3x128x128xbf16, #tpu.memory_space<vmem>>, %arg13: memref<1x128xf32, #tpu.memory_space<vmem>>, %arg14: memref<1x8x16xf32, #tpu.memory_space<vmem>>, %arg15: memref<1x128x128xbf16, #tpu.memory_space<vmem>>, %arg16: memref<1x128xf32, #tpu.memory_space<vmem>>, %arg17: memref<8x24xf32, #tpu.memory_space<vmem>>, %arg18: memref<3x128x128xbf16, #tpu.memory_space<vmem>>, %arg19: memref<1x128xf32, #tpu.memory_space<vmem>>, %arg20: memref<4x24xf32, #tpu.memory_space<vmem>>, %arg21: memref<3x128x128xbf16, #tpu.memory_space<vmem>>, %arg22: memref<1x128xf32, #tpu.memory_space<vmem>>, %arg23: memref<1x4x8xf32, #tpu.memory_space<vmem>>, %arg24: memref<1x128x128xbf16, #tpu.memory_space<vmem>>, %arg25: memref<1x128xf32, #tpu.memory_space<vmem>>, %arg26: memref<3x4x4xf32, #tpu.memory_space<vmem>>, %arg27: memref<3x128x128xbf16, #tpu.memory_space<vmem>>, %arg28: memref<1x128xf32, #tpu.memory_space<vmem>>, %arg29: memref<1x128x8xbf16, #tpu.memory_space<vmem>>, %arg30: memref<128x4xf32, #tpu.memory_space<vmem>>, %arg31: memref<1x4xf32, #tpu.memory_space<vmem>>, %arg32: memref<1x1x4xf32, #tpu.memory_space<vmem>>, %arg33: memref<1x4x8xf32, #tpu.memory_space<vmem>>) attributes {dimension_semantics = [#tpu.dimension_semantics<parallel>], iteration_bounds = array<i64: 1>, scalar_prefetch = 0 : i64, scratch_operands = 0 : i64, tpu.core_type = #tpu.core_type<tc>, window_params = [{transform_indices = @transform_0, window_bounds = array<i64: 1, 16, 32>}, {pipeline_mode = #tpu.pipeline_mode<synchronous>, transform_indices = @transform_1, window_bounds = array<i64: 16, 48>}, {pipeline_mode = #tpu.pipeline_mode<synchronous>, transform_indices = @transform_2, window_bounds = array<i64: 3, 32, 128>}, {pipeline_mode = #tpu.pipeline_mode<synchronous>, transform_indices = @transform_3, window_bounds = array<i64: 1, 128>}, {pipeline_mode = #tpu.pipeline_mode<synchronous>, transform_indices = @transform_4, window_bounds = array<i64: 16, 48>}, {pipeline_mode = #tpu.pipeline_mode<synchronous>, transform_indices = @transform_5, window_bounds = array<i64: 3, 128, 128>}, {pipeline_mode = #tpu.pipeline_mode<synchronous>, transform_indices = @transform_6, window_bounds = array<i64: 1, 128>}, {pipeline_mode = #tpu.pipeline_mode<synchronous>, transform_indices = @transform_7, window_bounds = array<i64: 16, 48>}, {pipeline_mode = #tpu.pipeline_mode<synchronous>, transform_indices = @transform_8, window_bounds = array<i64: 3, 128, 128>}, {pipeline_mode = #tpu.pipeline_mode<synchronous>, transform_indices = @transform_9, window_bounds = array<i64: 1, 128>}, {pipeline_mode = #tpu.pipeline_mode<synchronous>, transform_indices = @transform_10, window_bounds = array<i64: 8, 48>}, {pipeline_mode = #tpu.pipeline_mode<synchronous>, transform_indices = @transform_11, window_bounds = array<i64: 3, 128, 128>}, {pipeline_mode = #tpu.pipeline_mode<synchronous>, transform_indices = @transform_12, window_bounds = array<i64: 1, 128>}, {pipeline_mode = #tpu.pipeline_mode<synchronous>, transform_indices = @transform_13, window_bounds = array<i64: 1, 8, 16>}, {pipeline_mode = #tpu.pipeline_mode<synchronous>, transform_indices = @transform_14, window_bounds = array<i64: 1, 128, 128>}, {pipeline_mode = #tpu.pipeline_mode<synchronous>, transform_indices = @transform_15, window_bounds = array<i64: 1, 128>}, {pipeline_mode = #tpu.pipeline_mode<synchronous>, transform_indices = @transform_16, window_bounds = array<i64: 8, 24>}, {pipeline_mode = #tpu.pipeline_mode<synchronous>, transform_indices = @transform_17, window_bounds = array<i64: 3, 128, 128>}, {pipeline_mode = #tpu.pipeline_mode<synchronous>, transform_indices = @transform_18, window_bounds = array<i64: 1, 128>}, {pipeline_mode = #tpu.pipeline_mode<synchronous>, transform_indices = @transform_19, window_bounds = array<i64: 4, 24>}, {pipeline_mode = #tpu.pipeline_mode<synchronous>, transform_indices = @transform_20, window_bounds = array<i64: 3, 128, 128>}, {pipeline_mode = #tpu.pipeline_mode<synchronous>, transform_indices = @transform_21, window_bounds = array<i64: 1, 128>}, {pipeline_mode = #tpu.pipeline_mode<synchronous>, transform_indices = @transform_22, window_bounds = array<i64: 1, 4, 8>}, {pipeline_mode = #tpu.pipeline_mode<synchronous>, transform_indices = @transform_23, window_bounds = array<i64: 1, 128, 128>}, {pipeline_mode = #tpu.pipeline_mode<synchronous>, transform_indices = @transform_24, window_bounds = array<i64: 1, 128>}, {pipeline_mode = #tpu.pipeline_mode<synchronous>, transform_indices = @transform_25, window_bounds = array<i64: 3, 4, 4>}, {pipeline_mode = #tpu.pipeline_mode<synchronous>, transform_indices = @transform_26, window_bounds = array<i64: 3, 128, 128>}, {pipeline_mode = #tpu.pipeline_mode<synchronous>, transform_indices = @transform_27, window_bounds = array<i64: 1, 128>}, {pipeline_mode = #tpu.pipeline_mode<synchronous>, transform_indices = @transform_28, window_bounds = array<i64: 1, 128, 8>}, {pipeline_mode = #tpu.pipeline_mode<synchronous>, transform_indices = @transform_29, window_bounds = array<i64: 128, 4>}, {pipeline_mode = #tpu.pipeline_mode<synchronous>, transform_indices = @transform_30, window_bounds = array<i64: 1, 4>}, {transform_indices = @transform_31, window_bounds = array<i64: 1, 1, 4>}, {transform_indices = @transform_32, window_bounds = array<i64: 1, 4, 8>}]} {
    %c0 = arith.constant 0 : index
    %c0_0 = arith.constant 0 : index
    %c0_1 = arith.constant 0 : index
    %0 = vector.load %arg1[%c0, %c0_0, %c0_1] : memref<1x16x32xf32, #tpu.memory_space<vmem>>, vector<1x16x32xf32>
    %1 = vector.shape_cast %0 : vector<1x16x32xf32> to vector<16x32xf32>
    %2 = arith.truncf %1 : vector<16x32xf32> to vector<16x32xbf16>
    %c0_2 = arith.constant 0 : index
    %c0_3 = arith.constant 0 : index
    %c0_4 = arith.constant 0 : index
    %3 = vector.load %arg3[%c0_2, %c0_3, %c0_4] : memref<3x32x128xbf16, #tpu.memory_space<vmem>>, vector<1x32x128xbf16>
    %4 = vector.shape_cast %3 : vector<1x32x128xbf16> to vector<32x128xbf16>
    %cst = arith.constant dense<0.000000e+00> : vector<16x128xf32>
    %5 = tpu.matmul %2, %4, %cst {dimension_numbers = #tpu.dot_dimension_numbers<[1], [0], [0], [1], [0, 0, 1, 1], [], []>} : vector<16x32xbf16>, vector<32x128xbf16>, vector<16x128xf32> -> vector<16x128xf32>
    %c1 = arith.constant 1 : index
    %c0_5 = arith.constant 0 : index
    %c0_6 = arith.constant 0 : index
    %6 = vector.load %arg3[%c1, %c0_5, %c0_6] : memref<3x32x128xbf16, #tpu.memory_space<vmem>>, vector<1x32x128xbf16>
    %7 = vector.shape_cast %6 : vector<1x32x128xbf16> to vector<32x128xbf16>
    %cst_7 = arith.constant dense<0.000000e+00> : vector<16x128xf32>
    %8 = tpu.matmul %2, %7, %cst_7 {dimension_numbers = #tpu.dot_dimension_numbers<[1], [0], [0], [1], [0, 0, 1, 1], [], []>} : vector<16x32xbf16>, vector<32x128xbf16>, vector<16x128xf32> -> vector<16x128xf32>
    %c2 = arith.constant 2 : index
    %c0_8 = arith.constant 0 : index
    %c0_9 = arith.constant 0 : index
    %9 = vector.load %arg3[%c2, %c0_8, %c0_9] : memref<3x32x128xbf16, #tpu.memory_space<vmem>>, vector<1x32x128xbf16>
    %10 = vector.shape_cast %9 : vector<1x32x128xbf16> to vector<32x128xbf16>
    %cst_10 = arith.constant dense<0.000000e+00> : vector<16x128xf32>
    %11 = tpu.matmul %2, %10, %cst_10 {dimension_numbers = #tpu.dot_dimension_numbers<[1], [0], [0], [1], [0, 0, 1, 1], [], []>} : vector<16x32xbf16>, vector<32x128xbf16>, vector<16x128xf32> -> vector<16x128xf32>
    %12 = tpu.concatenate %5, %8, %11 in 0 : vector<16x128xf32>, vector<16x128xf32>, vector<16x128xf32> -> vector<48x128xf32>
    %c0_11 = arith.constant 0 : index
    %c0_12 = arith.constant 0 : index
    %13 = vector.load %arg2[%c0_11, %c0_12] : memref<16x48xf32, #tpu.memory_space<vmem>>, vector<16x48xf32>
    %cst_13 = arith.constant dense<0.000000e+00> : vector<16x128xf32>
    %14 = tpu.matmul %13, %12, %cst_13 {dimension_numbers = #tpu.dot_dimension_numbers<[1], [0], [0], [1], [0, 0, 1, 1], [], []>} : vector<16x48xf32>, vector<48x128xf32>, vector<16x128xf32> -> vector<16x128xf32>
    %c0_14 = arith.constant 0 : index
    %c0_15 = arith.constant 0 : index
    %15 = vector.load %arg4[%c0_14, %c0_15] : memref<1x128xf32, #tpu.memory_space<vmem>>, vector<1x128xf32>
    %16 = vector.broadcast %15 : vector<1x128xf32> to vector<16x128xf32>
    %17 = arith.addf %14, %16 : vector<16x128xf32>
    %cst_16 = arith.constant 0.000000e+00 : f32
    %18 = vector.broadcast %cst_16 : f32 to vector<16x128xf32>
    %19 = arith.maximumf %17, %18 : vector<16x128xf32>
    %20 = arith.truncf %19 : vector<16x128xf32> to vector<16x128xbf16>
    %c0_17 = arith.constant 0 : index
    %c0_18 = arith.constant 0 : index
    %c0_19 = arith.constant 0 : index
    %21 = vector.load %arg6[%c0_17, %c0_18, %c0_19] : memref<3x128x128xbf16, #tpu.memory_space<vmem>>, vector<1x128x128xbf16>
    %22 = vector.shape_cast %21 : vector<1x128x128xbf16> to vector<128x128xbf16>
    %cst_20 = arith.constant dense<0.000000e+00> : vector<16x128xf32>
    %23 = tpu.matmul %20, %22, %cst_20 {dimension_numbers = #tpu.dot_dimension_numbers<[1], [0], [0], [1], [0, 0, 1, 1], [], []>} : vector<16x128xbf16>, vector<128x128xbf16>, vector<16x128xf32> -> vector<16x128xf32>
    %c1_21 = arith.constant 1 : index
    %c0_22 = arith.constant 0 : index
    %c0_23 = arith.constant 0 : index
    %24 = vector.load %arg6[%c1_21, %c0_22, %c0_23] : memref<3x128x128xbf16, #tpu.memory_space<vmem>>, vector<1x128x128xbf16>
    %25 = vector.shape_cast %24 : vector<1x128x128xbf16> to vector<128x128xbf16>
    %cst_24 = arith.constant dense<0.000000e+00> : vector<16x128xf32>
    %26 = tpu.matmul %20, %25, %cst_24 {dimension_numbers = #tpu.dot_dimension_numbers<[1], [0], [0], [1], [0, 0, 1, 1], [], []>} : vector<16x128xbf16>, vector<128x128xbf16>, vector<16x128xf32> -> vector<16x128xf32>
    %c2_25 = arith.constant 2 : index
    %c0_26 = arith.constant 0 : index
    %c0_27 = arith.constant 0 : index
    %27 = vector.load %arg6[%c2_25, %c0_26, %c0_27] : memref<3x128x128xbf16, #tpu.memory_space<vmem>>, vector<1x128x128xbf16>
    %28 = vector.shape_cast %27 : vector<1x128x128xbf16> to vector<128x128xbf16>
    %cst_28 = arith.constant dense<0.000000e+00> : vector<16x128xf32>
    %29 = tpu.matmul %20, %28, %cst_28 {dimension_numbers = #tpu.dot_dimension_numbers<[1], [0], [0], [1], [0, 0, 1, 1], [], []>} : vector<16x128xbf16>, vector<128x128xbf16>, vector<16x128xf32> -> vector<16x128xf32>
    %30 = tpu.concatenate %23, %26, %29 in 0 : vector<16x128xf32>, vector<16x128xf32>, vector<16x128xf32> -> vector<48x128xf32>
    %c0_29 = arith.constant 0 : index
    %c0_30 = arith.constant 0 : index
    %31 = vector.load %arg5[%c0_29, %c0_30] : memref<16x48xf32, #tpu.memory_space<vmem>>, vector<16x48xf32>
    %cst_31 = arith.constant dense<0.000000e+00> : vector<16x128xf32>
    %32 = tpu.matmul %31, %30, %cst_31 {dimension_numbers = #tpu.dot_dimension_numbers<[1], [0], [0], [1], [0, 0, 1, 1], [], []>} : vector<16x48xf32>, vector<48x128xf32>, vector<16x128xf32> -> vector<16x128xf32>
    %c0_32 = arith.constant 0 : index
    %c0_33 = arith.constant 0 : index
    %33 = vector.load %arg7[%c0_32, %c0_33] : memref<1x128xf32, #tpu.memory_space<vmem>>, vector<1x128xf32>
    %34 = vector.broadcast %33 : vector<1x128xf32> to vector<16x128xf32>
    %35 = arith.addf %32, %34 : vector<16x128xf32>
    %cst_34 = arith.constant 0.000000e+00 : f32
    %36 = vector.broadcast %cst_34 : f32 to vector<16x128xf32>
    %37 = arith.maximumf %35, %36 : vector<16x128xf32>
    %38 = arith.truncf %37 : vector<16x128xf32> to vector<16x128xbf16>
    %c0_35 = arith.constant 0 : index
    %c0_36 = arith.constant 0 : index
    %c0_37 = arith.constant 0 : index
    %39 = vector.load %arg9[%c0_35, %c0_36, %c0_37] : memref<3x128x128xbf16, #tpu.memory_space<vmem>>, vector<1x128x128xbf16>
    %40 = vector.shape_cast %39 : vector<1x128x128xbf16> to vector<128x128xbf16>
    %cst_38 = arith.constant dense<0.000000e+00> : vector<16x128xf32>
    %41 = tpu.matmul %38, %40, %cst_38 {dimension_numbers = #tpu.dot_dimension_numbers<[1], [0], [0], [1], [0, 0, 1, 1], [], []>} : vector<16x128xbf16>, vector<128x128xbf16>, vector<16x128xf32> -> vector<16x128xf32>
    %c1_39 = arith.constant 1 : index
    %c0_40 = arith.constant 0 : index
    %c0_41 = arith.constant 0 : index
    %42 = vector.load %arg9[%c1_39, %c0_40, %c0_41] : memref<3x128x128xbf16, #tpu.memory_space<vmem>>, vector<1x128x128xbf16>
    %43 = vector.shape_cast %42 : vector<1x128x128xbf16> to vector<128x128xbf16>
    %cst_42 = arith.constant dense<0.000000e+00> : vector<16x128xf32>
    %44 = tpu.matmul %38, %43, %cst_42 {dimension_numbers = #tpu.dot_dimension_numbers<[1], [0], [0], [1], [0, 0, 1, 1], [], []>} : vector<16x128xbf16>, vector<128x128xbf16>, vector<16x128xf32> -> vector<16x128xf32>
    %c2_43 = arith.constant 2 : index
    %c0_44 = arith.constant 0 : index
    %c0_45 = arith.constant 0 : index
    %45 = vector.load %arg9[%c2_43, %c0_44, %c0_45] : memref<3x128x128xbf16, #tpu.memory_space<vmem>>, vector<1x128x128xbf16>
    %46 = vector.shape_cast %45 : vector<1x128x128xbf16> to vector<128x128xbf16>
    %cst_46 = arith.constant dense<0.000000e+00> : vector<16x128xf32>
    %47 = tpu.matmul %38, %46, %cst_46 {dimension_numbers = #tpu.dot_dimension_numbers<[1], [0], [0], [1], [0, 0, 1, 1], [], []>} : vector<16x128xbf16>, vector<128x128xbf16>, vector<16x128xf32> -> vector<16x128xf32>
    %48 = tpu.concatenate %41, %44, %47 in 0 : vector<16x128xf32>, vector<16x128xf32>, vector<16x128xf32> -> vector<48x128xf32>
    %c0_47 = arith.constant 0 : index
    %c0_48 = arith.constant 0 : index
    %49 = vector.load %arg8[%c0_47, %c0_48] : memref<16x48xf32, #tpu.memory_space<vmem>>, vector<16x48xf32>
    %cst_49 = arith.constant dense<0.000000e+00> : vector<16x128xf32>
    %50 = tpu.matmul %49, %48, %cst_49 {dimension_numbers = #tpu.dot_dimension_numbers<[1], [0], [0], [1], [0, 0, 1, 1], [], []>} : vector<16x48xf32>, vector<48x128xf32>, vector<16x128xf32> -> vector<16x128xf32>
    %c0_50 = arith.constant 0 : index
    %c0_51 = arith.constant 0 : index
    %51 = vector.load %arg10[%c0_50, %c0_51] : memref<1x128xf32, #tpu.memory_space<vmem>>, vector<1x128xf32>
    %52 = vector.broadcast %51 : vector<1x128xf32> to vector<16x128xf32>
    %53 = arith.addf %50, %52 : vector<16x128xf32>
    %54 = arith.addf %53, %19 : vector<16x128xf32>
    %cst_52 = arith.constant 0.000000e+00 : f32
    %55 = vector.broadcast %cst_52 : f32 to vector<16x128xf32>
    %56 = arith.maximumf %54, %55 : vector<16x128xf32>
    %57 = arith.truncf %56 : vector<16x128xf32> to vector<16x128xbf16>
    %c0_53 = arith.constant 0 : index
    %c0_54 = arith.constant 0 : index
    %c0_55 = arith.constant 0 : index
    %58 = vector.load %arg12[%c0_53, %c0_54, %c0_55] : memref<3x128x128xbf16, #tpu.memory_space<vmem>>, vector<1x128x128xbf16>
    %59 = vector.shape_cast %58 : vector<1x128x128xbf16> to vector<128x128xbf16>
    %cst_56 = arith.constant dense<0.000000e+00> : vector<16x128xf32>
    %60 = tpu.matmul %57, %59, %cst_56 {dimension_numbers = #tpu.dot_dimension_numbers<[1], [0], [0], [1], [0, 0, 1, 1], [], []>} : vector<16x128xbf16>, vector<128x128xbf16>, vector<16x128xf32> -> vector<16x128xf32>
    %c1_57 = arith.constant 1 : index
    %c0_58 = arith.constant 0 : index
    %c0_59 = arith.constant 0 : index
    %61 = vector.load %arg12[%c1_57, %c0_58, %c0_59] : memref<3x128x128xbf16, #tpu.memory_space<vmem>>, vector<1x128x128xbf16>
    %62 = vector.shape_cast %61 : vector<1x128x128xbf16> to vector<128x128xbf16>
    %cst_60 = arith.constant dense<0.000000e+00> : vector<16x128xf32>
    %63 = tpu.matmul %57, %62, %cst_60 {dimension_numbers = #tpu.dot_dimension_numbers<[1], [0], [0], [1], [0, 0, 1, 1], [], []>} : vector<16x128xbf16>, vector<128x128xbf16>, vector<16x128xf32> -> vector<16x128xf32>
    %c2_61 = arith.constant 2 : index
    %c0_62 = arith.constant 0 : index
    %c0_63 = arith.constant 0 : index
    %64 = vector.load %arg12[%c2_61, %c0_62, %c0_63] : memref<3x128x128xbf16, #tpu.memory_space<vmem>>, vector<1x128x128xbf16>
    %65 = vector.shape_cast %64 : vector<1x128x128xbf16> to vector<128x128xbf16>
    %cst_64 = arith.constant dense<0.000000e+00> : vector<16x128xf32>
    %66 = tpu.matmul %57, %65, %cst_64 {dimension_numbers = #tpu.dot_dimension_numbers<[1], [0], [0], [1], [0, 0, 1, 1], [], []>} : vector<16x128xbf16>, vector<128x128xbf16>, vector<16x128xf32> -> vector<16x128xf32>
    %67 = tpu.concatenate %60, %63, %66 in 0 : vector<16x128xf32>, vector<16x128xf32>, vector<16x128xf32> -> vector<48x128xf32>
    %c0_65 = arith.constant 0 : index
    %c0_66 = arith.constant 0 : index
    %68 = vector.load %arg11[%c0_65, %c0_66] : memref<8x48xf32, #tpu.memory_space<vmem>>, vector<8x48xf32>
    %cst_67 = arith.constant dense<0.000000e+00> : vector<8x128xf32>
    %69 = tpu.matmul %68, %67, %cst_67 {dimension_numbers = #tpu.dot_dimension_numbers<[1], [0], [0], [1], [0, 0, 1, 1], [], []>} : vector<8x48xf32>, vector<48x128xf32>, vector<8x128xf32> -> vector<8x128xf32>
    %c0_68 = arith.constant 0 : index
    %c0_69 = arith.constant 0 : index
    %70 = vector.load %arg13[%c0_68, %c0_69] : memref<1x128xf32, #tpu.memory_space<vmem>>, vector<1x128xf32>
    %71 = vector.broadcast %70 : vector<1x128xf32> to vector<8x128xf32>
    %72 = arith.addf %69, %71 : vector<8x128xf32>
    %cst_70 = arith.constant 0.000000e+00 : f32
    %73 = vector.broadcast %cst_70 : f32 to vector<8x128xf32>
    %74 = arith.maximumf %72, %73 : vector<8x128xf32>
    %c0_71 = arith.constant 0 : index
    %c0_72 = arith.constant 0 : index
    %c0_73 = arith.constant 0 : index
    %75 = vector.load %arg14[%c0_71, %c0_72, %c0_73] : memref<1x8x16xf32, #tpu.memory_space<vmem>>, vector<1x8x16xf32>
    %76 = vector.shape_cast %75 : vector<1x8x16xf32> to vector<8x16xf32>
    %cst_74 = arith.constant dense<0.000000e+00> : vector<8x128xf32>
    %77 = tpu.matmul %76, %56, %cst_74 {dimension_numbers = #tpu.dot_dimension_numbers<[1], [0], [0], [1], [0, 0, 1, 1], [], []>} : vector<8x16xf32>, vector<16x128xf32>, vector<8x128xf32> -> vector<8x128xf32>
    %78 = arith.truncf %77 : vector<8x128xf32> to vector<8x128xbf16>
    %c0_75 = arith.constant 0 : index
    %c0_76 = arith.constant 0 : index
    %c0_77 = arith.constant 0 : index
    %79 = vector.load %arg15[%c0_75, %c0_76, %c0_77] : memref<1x128x128xbf16, #tpu.memory_space<vmem>>, vector<1x128x128xbf16>
    %80 = vector.shape_cast %79 : vector<1x128x128xbf16> to vector<128x128xbf16>
    %cst_78 = arith.constant dense<0.000000e+00> : vector<8x128xf32>
    %81 = tpu.matmul %78, %80, %cst_78 {dimension_numbers = #tpu.dot_dimension_numbers<[1], [0], [0], [1], [0, 0, 1, 1], [], []>} : vector<8x128xbf16>, vector<128x128xbf16>, vector<8x128xf32> -> vector<8x128xf32>
    %c0_79 = arith.constant 0 : index
    %c0_80 = arith.constant 0 : index
    %82 = vector.load %arg16[%c0_79, %c0_80] : memref<1x128xf32, #tpu.memory_space<vmem>>, vector<1x128xf32>
    %83 = vector.broadcast %82 : vector<1x128xf32> to vector<8x128xf32>
    %84 = arith.addf %81, %83 : vector<8x128xf32>
    %85 = arith.truncf %74 : vector<8x128xf32> to vector<8x128xbf16>
    %c0_81 = arith.constant 0 : index
    %c0_82 = arith.constant 0 : index
    %c0_83 = arith.constant 0 : index
    %86 = vector.load %arg18[%c0_81, %c0_82, %c0_83] : memref<3x128x128xbf16, #tpu.memory_space<vmem>>, vector<1x128x128xbf16>
    %87 = vector.shape_cast %86 : vector<1x128x128xbf16> to vector<128x128xbf16>
    %cst_84 = arith.constant dense<0.000000e+00> : vector<8x128xf32>
    %88 = tpu.matmul %85, %87, %cst_84 {dimension_numbers = #tpu.dot_dimension_numbers<[1], [0], [0], [1], [0, 0, 1, 1], [], []>} : vector<8x128xbf16>, vector<128x128xbf16>, vector<8x128xf32> -> vector<8x128xf32>
    %c1_85 = arith.constant 1 : index
    %c0_86 = arith.constant 0 : index
    %c0_87 = arith.constant 0 : index
    %89 = vector.load %arg18[%c1_85, %c0_86, %c0_87] : memref<3x128x128xbf16, #tpu.memory_space<vmem>>, vector<1x128x128xbf16>
    %90 = vector.shape_cast %89 : vector<1x128x128xbf16> to vector<128x128xbf16>
    %cst_88 = arith.constant dense<0.000000e+00> : vector<8x128xf32>
    %91 = tpu.matmul %85, %90, %cst_88 {dimension_numbers = #tpu.dot_dimension_numbers<[1], [0], [0], [1], [0, 0, 1, 1], [], []>} : vector<8x128xbf16>, vector<128x128xbf16>, vector<8x128xf32> -> vector<8x128xf32>
    %c2_89 = arith.constant 2 : index
    %c0_90 = arith.constant 0 : index
    %c0_91 = arith.constant 0 : index
    %92 = vector.load %arg18[%c2_89, %c0_90, %c0_91] : memref<3x128x128xbf16, #tpu.memory_space<vmem>>, vector<1x128x128xbf16>
    %93 = vector.shape_cast %92 : vector<1x128x128xbf16> to vector<128x128xbf16>
    %cst_92 = arith.constant dense<0.000000e+00> : vector<8x128xf32>
    %94 = tpu.matmul %85, %93, %cst_92 {dimension_numbers = #tpu.dot_dimension_numbers<[1], [0], [0], [1], [0, 0, 1, 1], [], []>} : vector<8x128xbf16>, vector<128x128xbf16>, vector<8x128xf32> -> vector<8x128xf32>
    %95 = tpu.concatenate %88, %91, %94 in 0 : vector<8x128xf32>, vector<8x128xf32>, vector<8x128xf32> -> vector<24x128xf32>
    %c0_93 = arith.constant 0 : index
    %c0_94 = arith.constant 0 : index
    %96 = vector.load %arg17[%c0_93, %c0_94] : memref<8x24xf32, #tpu.memory_space<vmem>>, vector<8x24xf32>
    %cst_95 = arith.constant dense<0.000000e+00> : vector<8x128xf32>
    %97 = tpu.matmul %96, %95, %cst_95 {dimension_numbers = #tpu.dot_dimension_numbers<[1], [0], [0], [1], [0, 0, 1, 1], [], []>} : vector<8x24xf32>, vector<24x128xf32>, vector<8x128xf32> -> vector<8x128xf32>
    %c0_96 = arith.constant 0 : index
    %c0_97 = arith.constant 0 : index
    %98 = vector.load %arg19[%c0_96, %c0_97] : memref<1x128xf32, #tpu.memory_space<vmem>>, vector<1x128xf32>
    %99 = vector.broadcast %98 : vector<1x128xf32> to vector<8x128xf32>
    %100 = arith.addf %97, %99 : vector<8x128xf32>
    %101 = arith.addf %100, %84 : vector<8x128xf32>
    %cst_98 = arith.constant 0.000000e+00 : f32
    %102 = vector.broadcast %cst_98 : f32 to vector<8x128xf32>
    %103 = arith.maximumf %101, %102 : vector<8x128xf32>
    %104 = arith.truncf %103 : vector<8x128xf32> to vector<8x128xbf16>
    %c0_99 = arith.constant 0 : index
    %c0_100 = arith.constant 0 : index
    %c0_101 = arith.constant 0 : index
    %105 = vector.load %arg21[%c0_99, %c0_100, %c0_101] : memref<3x128x128xbf16, #tpu.memory_space<vmem>>, vector<1x128x128xbf16>
    %106 = vector.shape_cast %105 : vector<1x128x128xbf16> to vector<128x128xbf16>
    %cst_102 = arith.constant dense<0.000000e+00> : vector<8x128xf32>
    %107 = tpu.matmul %104, %106, %cst_102 {dimension_numbers = #tpu.dot_dimension_numbers<[1], [0], [0], [1], [0, 0, 1, 1], [], []>} : vector<8x128xbf16>, vector<128x128xbf16>, vector<8x128xf32> -> vector<8x128xf32>
    %c1_103 = arith.constant 1 : index
    %c0_104 = arith.constant 0 : index
    %c0_105 = arith.constant 0 : index
    %108 = vector.load %arg21[%c1_103, %c0_104, %c0_105] : memref<3x128x128xbf16, #tpu.memory_space<vmem>>, vector<1x128x128xbf16>
    %109 = vector.shape_cast %108 : vector<1x128x128xbf16> to vector<128x128xbf16>
    %cst_106 = arith.constant dense<0.000000e+00> : vector<8x128xf32>
    %110 = tpu.matmul %104, %109, %cst_106 {dimension_numbers = #tpu.dot_dimension_numbers<[1], [0], [0], [1], [0, 0, 1, 1], [], []>} : vector<8x128xbf16>, vector<128x128xbf16>, vector<8x128xf32> -> vector<8x128xf32>
    %c2_107 = arith.constant 2 : index
    %c0_108 = arith.constant 0 : index
    %c0_109 = arith.constant 0 : index
    %111 = vector.load %arg21[%c2_107, %c0_108, %c0_109] : memref<3x128x128xbf16, #tpu.memory_space<vmem>>, vector<1x128x128xbf16>
    %112 = vector.shape_cast %111 : vector<1x128x128xbf16> to vector<128x128xbf16>
    %cst_110 = arith.constant dense<0.000000e+00> : vector<8x128xf32>
    %113 = tpu.matmul %104, %112, %cst_110 {dimension_numbers = #tpu.dot_dimension_numbers<[1], [0], [0], [1], [0, 0, 1, 1], [], []>} : vector<8x128xbf16>, vector<128x128xbf16>, vector<8x128xf32> -> vector<8x128xf32>
    %114 = tpu.concatenate %107, %110, %113 in 0 : vector<8x128xf32>, vector<8x128xf32>, vector<8x128xf32> -> vector<24x128xf32>
    %c0_111 = arith.constant 0 : index
    %c0_112 = arith.constant 0 : index
    %115 = vector.load %arg20[%c0_111, %c0_112] : memref<4x24xf32, #tpu.memory_space<vmem>>, vector<4x24xf32>
    %cst_113 = arith.constant dense<0.000000e+00> : vector<4x128xf32>
    %116 = tpu.matmul %115, %114, %cst_113 {dimension_numbers = #tpu.dot_dimension_numbers<[1], [0], [0], [1], [0, 0, 1, 1], [], []>} : vector<4x24xf32>, vector<24x128xf32>, vector<4x128xf32> -> vector<4x128xf32>
    %c0_114 = arith.constant 0 : index
    %c0_115 = arith.constant 0 : index
    %117 = vector.load %arg22[%c0_114, %c0_115] : memref<1x128xf32, #tpu.memory_space<vmem>>, vector<1x128xf32>
    %118 = vector.broadcast %117 : vector<1x128xf32> to vector<4x128xf32>
    %119 = arith.addf %116, %118 : vector<4x128xf32>
    %cst_116 = arith.constant 0.000000e+00 : f32
    %120 = vector.broadcast %cst_116 : f32 to vector<4x128xf32>
    %121 = arith.maximumf %119, %120 : vector<4x128xf32>
    %c0_117 = arith.constant 0 : index
    %c0_118 = arith.constant 0 : index
    %c0_119 = arith.constant 0 : index
    %122 = vector.load %arg23[%c0_117, %c0_118, %c0_119] : memref<1x4x8xf32, #tpu.memory_space<vmem>>, vector<1x4x8xf32>
    %123 = vector.shape_cast %122 : vector<1x4x8xf32> to vector<4x8xf32>
    %cst_120 = arith.constant dense<0.000000e+00> : vector<4x128xf32>
    %124 = tpu.matmul %123, %103, %cst_120 {dimension_numbers = #tpu.dot_dimension_numbers<[1], [0], [0], [1], [0, 0, 1, 1], [], []>} : vector<4x8xf32>, vector<8x128xf32>, vector<4x128xf32> -> vector<4x128xf32>
    %125 = arith.truncf %124 : vector<4x128xf32> to vector<4x128xbf16>
    %c0_121 = arith.constant 0 : index
    %c0_122 = arith.constant 0 : index
    %c0_123 = arith.constant 0 : index
    %126 = vector.load %arg24[%c0_121, %c0_122, %c0_123] : memref<1x128x128xbf16, #tpu.memory_space<vmem>>, vector<1x128x128xbf16>
    %127 = vector.shape_cast %126 : vector<1x128x128xbf16> to vector<128x128xbf16>
    %cst_124 = arith.constant dense<0.000000e+00> : vector<4x128xf32>
    %128 = tpu.matmul %125, %127, %cst_124 {dimension_numbers = #tpu.dot_dimension_numbers<[1], [0], [0], [1], [0, 0, 1, 1], [], []>} : vector<4x128xbf16>, vector<128x128xbf16>, vector<4x128xf32> -> vector<4x128xf32>
    %c0_125 = arith.constant 0 : index
    %c0_126 = arith.constant 0 : index
    %129 = vector.load %arg25[%c0_125, %c0_126] : memref<1x128xf32, #tpu.memory_space<vmem>>, vector<1x128xf32>
    %130 = vector.broadcast %129 : vector<1x128xf32> to vector<4x128xf32>
    %131 = arith.addf %128, %130 : vector<4x128xf32>
    %c0_127 = arith.constant 0 : index
    %c0_128 = arith.constant 0 : index
    %c0_129 = arith.constant 0 : index
    %132 = vector.load %arg26[%c0_127, %c0_128, %c0_129] : memref<3x4x4xf32, #tpu.memory_space<vmem>>, vector<1x4x4xf32>
    %133 = vector.shape_cast %132 : vector<1x4x4xf32> to vector<4x4xf32>
    %cst_130 = arith.constant dense<0.000000e+00> : vector<4x128xf32>
    %134 = tpu.matmul %133, %121, %cst_130 {dimension_numbers = #tpu.dot_dimension_numbers<[1], [0], [0], [1], [0, 0, 1, 1], [], []>} : vector<4x4xf32>, vector<4x128xf32>, vector<4x128xf32> -> vector<4x128xf32>
    %135 = arith.truncf %134 : vector<4x128xf32> to vector<4x128xbf16>
    %c0_131 = arith.constant 0 : index
    %c0_132 = arith.constant 0 : index
    %c0_133 = arith.constant 0 : index
    %136 = vector.load %arg27[%c0_131, %c0_132, %c0_133] : memref<3x128x128xbf16, #tpu.memory_space<vmem>>, vector<1x128x128xbf16>
    %137 = vector.shape_cast %136 : vector<1x128x128xbf16> to vector<128x128xbf16>
    %cst_134 = arith.constant dense<0.000000e+00> : vector<4x128xf32>
    %138 = tpu.matmul %135, %137, %cst_134 {dimension_numbers = #tpu.dot_dimension_numbers<[1], [0], [0], [1], [0, 0, 1, 1], [], []>} : vector<4x128xbf16>, vector<128x128xbf16>, vector<4x128xf32> -> vector<4x128xf32>
    %c1_135 = arith.constant 1 : index
    %c0_136 = arith.constant 0 : index
    %c0_137 = arith.constant 0 : index
    %139 = vector.load %arg26[%c1_135, %c0_136, %c0_137] : memref<3x4x4xf32, #tpu.memory_space<vmem>>, vector<1x4x4xf32>
    %140 = vector.shape_cast %139 : vector<1x4x4xf32> to vector<4x4xf32>
    %cst_138 = arith.constant dense<0.000000e+00> : vector<4x128xf32>
    %141 = tpu.matmul %140, %121, %cst_138 {dimension_numbers = #tpu.dot_dimension_numbers<[1], [0], [0], [1], [0, 0, 1, 1], [], []>} : vector<4x4xf32>, vector<4x128xf32>, vector<4x128xf32> -> vector<4x128xf32>
    %142 = arith.truncf %141 : vector<4x128xf32> to vector<4x128xbf16>
    %c1_139 = arith.constant 1 : index
    %c0_140 = arith.constant 0 : index
    %c0_141 = arith.constant 0 : index
    %143 = vector.load %arg27[%c1_139, %c0_140, %c0_141] : memref<3x128x128xbf16, #tpu.memory_space<vmem>>, vector<1x128x128xbf16>
    %144 = vector.shape_cast %143 : vector<1x128x128xbf16> to vector<128x128xbf16>
    %cst_142 = arith.constant dense<0.000000e+00> : vector<4x128xf32>
    %145 = tpu.matmul %142, %144, %cst_142 {dimension_numbers = #tpu.dot_dimension_numbers<[1], [0], [0], [1], [0, 0, 1, 1], [], []>} : vector<4x128xbf16>, vector<128x128xbf16>, vector<4x128xf32> -> vector<4x128xf32>
    %146 = arith.addf %138, %145 : vector<4x128xf32>
    %c2_143 = arith.constant 2 : index
    %c0_144 = arith.constant 0 : index
    %c0_145 = arith.constant 0 : index
    %147 = vector.load %arg26[%c2_143, %c0_144, %c0_145] : memref<3x4x4xf32, #tpu.memory_space<vmem>>, vector<1x4x4xf32>
    %148 = vector.shape_cast %147 : vector<1x4x4xf32> to vector<4x4xf32>
    %cst_146 = arith.constant dense<0.000000e+00> : vector<4x128xf32>
    %149 = tpu.matmul %148, %121, %cst_146 {dimension_numbers = #tpu.dot_dimension_numbers<[1], [0], [0], [1], [0, 0, 1, 1], [], []>} : vector<4x4xf32>, vector<4x128xf32>, vector<4x128xf32> -> vector<4x128xf32>
    %150 = arith.truncf %149 : vector<4x128xf32> to vector<4x128xbf16>
    %c2_147 = arith.constant 2 : index
    %c0_148 = arith.constant 0 : index
    %c0_149 = arith.constant 0 : index
    %151 = vector.load %arg27[%c2_147, %c0_148, %c0_149] : memref<3x128x128xbf16, #tpu.memory_space<vmem>>, vector<1x128x128xbf16>
    %152 = vector.shape_cast %151 : vector<1x128x128xbf16> to vector<128x128xbf16>
    %cst_150 = arith.constant dense<0.000000e+00> : vector<4x128xf32>
    %153 = tpu.matmul %150, %152, %cst_150 {dimension_numbers = #tpu.dot_dimension_numbers<[1], [0], [0], [1], [0, 0, 1, 1], [], []>} : vector<4x128xbf16>, vector<128x128xbf16>, vector<4x128xf32> -> vector<4x128xf32>
    %154 = arith.addf %146, %153 : vector<4x128xf32>
    %c0_151 = arith.constant 0 : index
    %c0_152 = arith.constant 0 : index
    %155 = vector.load %arg28[%c0_151, %c0_152] : memref<1x128xf32, #tpu.memory_space<vmem>>, vector<1x128xf32>
    %156 = vector.broadcast %155 : vector<1x128xf32> to vector<4x128xf32>
    %157 = arith.addf %154, %156 : vector<4x128xf32>
    %158 = arith.addf %157, %131 : vector<4x128xf32>
    %cst_153 = arith.constant 0.000000e+00 : f32
    %159 = vector.broadcast %cst_153 : f32 to vector<4x128xf32>
    %160 = arith.maximumf %158, %159 : vector<4x128xf32>
    %161 = arith.truncf %160 : vector<4x128xf32> to vector<4x128xbf16>
    %c0_154 = arith.constant 0 : index
    %c0_155 = arith.constant 0 : index
    %c0_156 = arith.constant 0 : index
    %162 = vector.load %arg29[%c0_154, %c0_155, %c0_156] : memref<1x128x8xbf16, #tpu.memory_space<vmem>>, vector<1x128x8xbf16>
    %163 = vector.shape_cast %162 : vector<1x128x8xbf16> to vector<128x8xbf16>
    %cst_157 = arith.constant dense<0.000000e+00> : vector<4x8xf32>
    %164 = tpu.matmul %161, %163, %cst_157 {dimension_numbers = #tpu.dot_dimension_numbers<[1], [0], [0], [1], [0, 0, 1, 1], [], []>} : vector<4x128xbf16>, vector<128x8xbf16>, vector<4x8xf32> -> vector<4x8xf32>
    %cst_158 = arith.constant 0.000000e+00 : f32
    %165 = vector.broadcast %cst_158 : f32 to vector<4x8xf32>
    %166 = arith.subf %165, %164 : vector<4x8xf32>
    %167 = math.exp %166 : vector<4x8xf32>
    %cst_159 = arith.constant 1.000000e+00 : f32
    %168 = vector.broadcast %cst_159 : f32 to vector<4x8xf32>
    %169 = arith.addf %168, %167 : vector<4x8xf32>
    %cst_160 = arith.constant 1.000000e+00 : f32
    %170 = vector.broadcast %cst_160 : f32 to vector<4x8xf32>
    %171 = arith.divf %170, %169 : vector<4x8xf32>
    %c0_161 = arith.constant 0 : index
    %c0_162 = arith.constant 0 : index
    %c0_163 = arith.constant 0 : index
    %172 = vector.load %arg33[%c0_161, %c0_162, %c0_163] : memref<1x4x8xf32, #tpu.memory_space<vmem>>, vector<1x4x8xf32>
    %173 = vector.shape_cast %172 : vector<1x4x8xf32> to vector<4x8xf32>
    %174 = vector.shape_cast %171 : vector<4x8xf32> to vector<1x4x8xf32>
    tpu.vector_store %arg33[%c0_161, %c0_162, %c0_163], %174 {strides = array<i32>} : memref<1x4x8xf32, #tpu.memory_space<vmem>>, vector<1x4x8xf32>,
    %cst_164 = arith.constant dense<0.000000e+00> : vector<128xf32>
    %175 = vector.multi_reduction <add>, %160, %cst_164 [0] : vector<4x128xf32> to vector<128xf32>
    %176 = vector.shape_cast %175 : vector<128xf32> to vector<1x128xf32>
    %c0_165 = arith.constant 0 : index
    %c0_166 = arith.constant 0 : index
    %177 = vector.load %arg30[%c0_165, %c0_166] : memref<128x4xf32, #tpu.memory_space<vmem>>, vector<128x4xf32>
    %cst_167 = arith.constant dense<0.000000e+00> : vector<1x4xf32>
    %178 = tpu.matmul %176, %177, %cst_167 {dimension_numbers = #tpu.dot_dimension_numbers<[1], [0], [0], [1], [0, 0, 1, 1], [], []>} : vector<1x128xf32>, vector<128x4xf32>, vector<1x4xf32> -> vector<1x4xf32>
    %c0_168 = arith.constant 0 : index
    %c0_169 = arith.constant 0 : index
    %179 = vector.load %arg31[%c0_168, %c0_169] : memref<1x4xf32, #tpu.memory_space<vmem>>, vector<1x4xf32>
    %180 = arith.addf %178, %179 : vector<1x4xf32>
    %c0_170 = arith.constant 0 : index
    %c0_171 = arith.constant 0 : index
    %c0_172 = arith.constant 0 : index
    %181 = vector.load %arg32[%c0_170, %c0_171, %c0_172] : memref<1x1x4xf32, #tpu.memory_space<vmem>>, vector<1x1x4xf32>
    %182 = vector.shape_cast %181 : vector<1x1x4xf32> to vector<1x4xf32>
    %183 = vector.shape_cast %180 : vector<1x4xf32> to vector<1x1x4xf32>
    tpu.vector_store %arg32[%c0_170, %c0_171, %c0_172], %183 {strides = array<i32>} : memref<1x1x4xf32, #tpu.memory_space<vmem>>, vector<1x1x4xf32>,
    return
  }
  func.func @transform_0(%arg0: i32) -> (i32, i32, i32) {
    %c0_i32 = arith.constant 0 : i32
    %c0_i32_0 = arith.constant 0 : i32
    %c0_i32_1 = arith.constant 0 : i32
    return %arg0, %c0_i32, %c0_i32_0 : i32, i32, i32
  }
  func.func @transform_1(%arg0: i32) -> (i32, i32) {
    %c0_i32 = arith.constant 0 : i32
    %c0_i32_0 = arith.constant 0 : i32
    %c0_i32_1 = arith.constant 0 : i32
    return %c0_i32, %c0_i32_0 : i32, i32
  }
  func.func @transform_2(%arg0: i32) -> (i32, i32, i32) {
    %c0_i32 = arith.constant 0 : i32
    %c0_i32_0 = arith.constant 0 : i32
    %c0_i32_1 = arith.constant 0 : i32
    %c0_i32_2 = arith.constant 0 : i32
    return %c0_i32, %c0_i32_0, %c0_i32_1 : i32, i32, i32
  }
  func.func @transform_3(%arg0: i32) -> (i32, i32) {
    %c0_i32 = arith.constant 0 : i32
    %c0_i32_0 = arith.constant 0 : i32
    %c0_i32_1 = arith.constant 0 : i32
    return %c0_i32, %c0_i32_0 : i32, i32
  }
  func.func @transform_4(%arg0: i32) -> (i32, i32) {
    %c0_i32 = arith.constant 0 : i32
    %c0_i32_0 = arith.constant 0 : i32
    %c0_i32_1 = arith.constant 0 : i32
    return %c0_i32, %c0_i32_0 : i32, i32
  }
  func.func @transform_5(%arg0: i32) -> (i32, i32, i32) {
    %c0_i32 = arith.constant 0 : i32
    %c0_i32_0 = arith.constant 0 : i32
    %c0_i32_1 = arith.constant 0 : i32
    %c0_i32_2 = arith.constant 0 : i32
    return %c0_i32, %c0_i32_0, %c0_i32_1 : i32, i32, i32
  }
  func.func @transform_6(%arg0: i32) -> (i32, i32) {
    %c0_i32 = arith.constant 0 : i32
    %c0_i32_0 = arith.constant 0 : i32
    %c0_i32_1 = arith.constant 0 : i32
    return %c0_i32, %c0_i32_0 : i32, i32
  }
  func.func @transform_7(%arg0: i32) -> (i32, i32) {
    %c0_i32 = arith.constant 0 : i32
    %c0_i32_0 = arith.constant 0 : i32
    %c0_i32_1 = arith.constant 0 : i32
    return %c0_i32, %c0_i32_0 : i32, i32
  }
  func.func @transform_8(%arg0: i32) -> (i32, i32, i32) {
    %c0_i32 = arith.constant 0 : i32
    %c0_i32_0 = arith.constant 0 : i32
    %c0_i32_1 = arith.constant 0 : i32
    %c0_i32_2 = arith.constant 0 : i32
    return %c0_i32, %c0_i32_0, %c0_i32_1 : i32, i32, i32
  }
  func.func @transform_9(%arg0: i32) -> (i32, i32) {
    %c0_i32 = arith.constant 0 : i32
    %c0_i32_0 = arith.constant 0 : i32
    %c0_i32_1 = arith.constant 0 : i32
    return %c0_i32, %c0_i32_0 : i32, i32
  }
  func.func @transform_10(%arg0: i32) -> (i32, i32) {
    %c0_i32 = arith.constant 0 : i32
    %c0_i32_0 = arith.constant 0 : i32
    %c0_i32_1 = arith.constant 0 : i32
    return %c0_i32, %c0_i32_0 : i32, i32
  }
  func.func @transform_11(%arg0: i32) -> (i32, i32, i32) {
    %c0_i32 = arith.constant 0 : i32
    %c0_i32_0 = arith.constant 0 : i32
    %c0_i32_1 = arith.constant 0 : i32
    %c0_i32_2 = arith.constant 0 : i32
    return %c0_i32, %c0_i32_0, %c0_i32_1 : i32, i32, i32
  }
  func.func @transform_12(%arg0: i32) -> (i32, i32) {
    %c0_i32 = arith.constant 0 : i32
    %c0_i32_0 = arith.constant 0 : i32
    %c0_i32_1 = arith.constant 0 : i32
    return %c0_i32, %c0_i32_0 : i32, i32
  }
  func.func @transform_13(%arg0: i32) -> (i32, i32, i32) {
    %c0_i32 = arith.constant 0 : i32
    %c0_i32_0 = arith.constant 0 : i32
    %c0_i32_1 = arith.constant 0 : i32
    %c0_i32_2 = arith.constant 0 : i32
    return %c0_i32, %c0_i32_0, %c0_i32_1 : i32, i32, i32
  }
  func.func @transform_14(%arg0: i32) -> (i32, i32, i32) {
    %c0_i32 = arith.constant 0 : i32
    %c0_i32_0 = arith.constant 0 : i32
    %c0_i32_1 = arith.constant 0 : i32
    %c0_i32_2 = arith.constant 0 : i32
    return %c0_i32, %c0_i32_0, %c0_i32_1 : i32, i32, i32
  }
  func.func @transform_15(%arg0: i32) -> (i32, i32) {
    %c0_i32 = arith.constant 0 : i32
    %c0_i32_0 = arith.constant 0 : i32
    %c0_i32_1 = arith.constant 0 : i32
    return %c0_i32, %c0_i32_0 : i32, i32
  }
  func.func @transform_16(%arg0: i32) -> (i32, i32) {
    %c0_i32 = arith.constant 0 : i32
    %c0_i32_0 = arith.constant 0 : i32
    %c0_i32_1 = arith.constant 0 : i32
    return %c0_i32, %c0_i32_0 : i32, i32
  }
  func.func @transform_17(%arg0: i32) -> (i32, i32, i32) {
    %c0_i32 = arith.constant 0 : i32
    %c0_i32_0 = arith.constant 0 : i32
    %c0_i32_1 = arith.constant 0 : i32
    %c0_i32_2 = arith.constant 0 : i32
    return %c0_i32, %c0_i32_0, %c0_i32_1 : i32, i32, i32
  }
  func.func @transform_18(%arg0: i32) -> (i32, i32) {
    %c0_i32 = arith.constant 0 : i32
    %c0_i32_0 = arith.constant 0 : i32
    %c0_i32_1 = arith.constant 0 : i32
    return %c0_i32, %c0_i32_0 : i32, i32
  }
  func.func @transform_19(%arg0: i32) -> (i32, i32) {
    %c0_i32 = arith.constant 0 : i32
    %c0_i32_0 = arith.constant 0 : i32
    %c0_i32_1 = arith.constant 0 : i32
    return %c0_i32, %c0_i32_0 : i32, i32
  }
  func.func @transform_20(%arg0: i32) -> (i32, i32, i32) {
    %c0_i32 = arith.constant 0 : i32
    %c0_i32_0 = arith.constant 0 : i32
    %c0_i32_1 = arith.constant 0 : i32
    %c0_i32_2 = arith.constant 0 : i32
    return %c0_i32, %c0_i32_0, %c0_i32_1 : i32, i32, i32
  }
  func.func @transform_21(%arg0: i32) -> (i32, i32) {
    %c0_i32 = arith.constant 0 : i32
    %c0_i32_0 = arith.constant 0 : i32
    %c0_i32_1 = arith.constant 0 : i32
    return %c0_i32, %c0_i32_0 : i32, i32
  }
  func.func @transform_22(%arg0: i32) -> (i32, i32, i32) {
    %c0_i32 = arith.constant 0 : i32
    %c0_i32_0 = arith.constant 0 : i32
    %c0_i32_1 = arith.constant 0 : i32
    %c0_i32_2 = arith.constant 0 : i32
    return %c0_i32, %c0_i32_0, %c0_i32_1 : i32, i32, i32
  }
  func.func @transform_23(%arg0: i32) -> (i32, i32, i32) {
    %c0_i32 = arith.constant 0 : i32
    %c0_i32_0 = arith.constant 0 : i32
    %c0_i32_1 = arith.constant 0 : i32
    %c0_i32_2 = arith.constant 0 : i32
    return %c0_i32, %c0_i32_0, %c0_i32_1 : i32, i32, i32
  }
  func.func @transform_24(%arg0: i32) -> (i32, i32) {
    %c0_i32 = arith.constant 0 : i32
    %c0_i32_0 = arith.constant 0 : i32
    %c0_i32_1 = arith.constant 0 : i32
    return %c0_i32, %c0_i32_0 : i32, i32
  }
  func.func @transform_25(%arg0: i32) -> (i32, i32, i32) {
    %c0_i32 = arith.constant 0 : i32
    %c0_i32_0 = arith.constant 0 : i32
    %c0_i32_1 = arith.constant 0 : i32
    %c0_i32_2 = arith.constant 0 : i32
    return %c0_i32, %c0_i32_0, %c0_i32_1 : i32, i32, i32
  }
  func.func @transform_26(%arg0: i32) -> (i32, i32, i32) {
    %c0_i32 = arith.constant 0 : i32
    %c0_i32_0 = arith.constant 0 : i32
    %c0_i32_1 = arith.constant 0 : i32
    %c0_i32_2 = arith.constant 0 : i32
    return %c0_i32, %c0_i32_0, %c0_i32_1 : i32, i32, i32
  }
  func.func @transform_27(%arg0: i32) -> (i32, i32) {
    %c0_i32 = arith.constant 0 : i32
    %c0_i32_0 = arith.constant 0 : i32
    %c0_i32_1 = arith.constant 0 : i32
    return %c0_i32, %c0_i32_0 : i32, i32
  }
  func.func @transform_28(%arg0: i32) -> (i32, i32, i32) {
    %c0_i32 = arith.constant 0 : i32
    %c0_i32_0 = arith.constant 0 : i32
    %c0_i32_1 = arith.constant 0 : i32
    %c0_i32_2 = arith.constant 0 : i32
    return %c0_i32, %c0_i32_0, %c0_i32_1 : i32, i32, i32
  }
  func.func @transform_29(%arg0: i32) -> (i32, i32) {
    %c0_i32 = arith.constant 0 : i32
    %c0_i32_0 = arith.constant 0 : i32
    %c0_i32_1 = arith.constant 0 : i32
    return %c0_i32, %c0_i32_0 : i32, i32
  }
  func.func @transform_30(%arg0: i32) -> (i32, i32) {
    %c0_i32 = arith.constant 0 : i32
    %c0_i32_0 = arith.constant 0 : i32
    %c0_i32_1 = arith.constant 0 : i32
    return %c0_i32, %c0_i32_0 : i32, i32
  }
  func.func @transform_31(%arg0: i32) -> (i32, i32, i32) {
    %c0_i32 = arith.constant 0 : i32
    %c0_i32_0 = arith.constant 0 : i32
    %c0_i32_1 = arith.constant 0 : i32
    return %arg0, %c0_i32, %c0_i32_0 : i32, i32, i32
  }
  func.func @transform_32(%arg0: i32) -> (i32, i32, i32) {
    %c0_i32 = arith.constant 0 : i32
    %c0_i32_0 = arith.constant 0 : i32
    %c0_i32_1 = arith.constant 0 : i32
    return %arg0, %c0_i32, %c0_i32_0 : i32, i32, i32
  }
}

</mosaic_0001>

<llo_original>
// kernel: fwd.1
$region0: #{fwd.1}
  #allocation0 [shape = 'u32[]', space=smem, size = 0x4, offset = 0x4, fixed_abs, tag = 'smem constant byte address 0x4 - core index']
  #allocation1 [shape = 'u32[144,128]{1,0:T(1,128)}', space=vmem, size = 0x12000, scoped, tag = 'internal scratch']
  %s0 = inlined_call_operand.smem [shape: u32[33], index: -1, kind: input, shape index: {}]
  %s1 = sld [smem:[%s0]]
  %s2 = scalar_lea.smem %s0, 1
  %s3 = sld [smem:[%s2]]
  %s4 = scalar_lea.smem %s0, 2
  %s5 = sld [smem:[%s4]]
  %s6 = scalar_lea.smem %s0, 3
  %s7 = sld [smem:[%s6]]
  %s8 = scalar_lea.smem %s0, 4
  %s9 = sld [smem:[%s8]]
  %s10 = scalar_lea.smem %s0, 5
  %s11 = sld [smem:[%s10]]
  %s12 = scalar_lea.smem %s0, 6
  %s13 = sld [smem:[%s12]]
  %s14 = scalar_lea.smem %s0, 7
  %s15 = sld [smem:[%s14]]
  %s16 = scalar_lea.smem %s0, 8
  %s17 = sld [smem:[%s16]]
  %s18 = scalar_lea.smem %s0, 9
  %s19 = sld [smem:[%s18]]
  %s20 = scalar_lea.smem %s0, 10
  %s21 = sld [smem:[%s20]]
  %s22 = scalar_lea.smem %s0, 11
  %s23 = sld [smem:[%s22]]
  %s24 = scalar_lea.smem %s0, 12
  %s25 = sld [smem:[%s24]]
  %s26 = scalar_lea.smem %s0, 13
  %s27 = sld [smem:[%s26]]
  %s28 = scalar_lea.smem %s0, 14
  %s29 = sld [smem:[%s28]]
  %s30 = scalar_lea.smem %s0, 15
  %s31 = sld [smem:[%s30]]
  %s32 = scalar_lea.smem %s0, 16
  %s33 = sld [smem:[%s32]]
  %s34 = scalar_lea.smem %s0, 17
  %s35 = sld [smem:[%s34]]
  %s36 = scalar_lea.smem %s0, 18
  %s37 = sld [smem:[%s36]]
  %s38 = scalar_lea.smem %s0, 19
  %s39 = sld [smem:[%s38]]
  %s40 = scalar_lea.smem %s0, 20
  %s41 = sld [smem:[%s40]]
  %s42 = scalar_lea.smem %s0, 21
  %s43 = sld [smem:[%s42]]
  %s44 = scalar_lea.smem %s0, 22
  %s45 = sld [smem:[%s44]]
  %s46 = scalar_lea.smem %s0, 23
  %s47 = sld [smem:[%s46]]
  %s48 = scalar_lea.smem %s0, 24
  %s49 = sld [smem:[%s48]]
  %s50 = scalar_lea.smem %s0, 25
  %s51 = sld [smem:[%s50]]
  %s52 = scalar_lea.smem %s0, 26
  %s53 = sld [smem:[%s52]]
  %s54 = scalar_lea.smem %s0, 27
  %s55 = sld [smem:[%s54]]
  %s56 = scalar_lea.smem %s0, 28
  %s57 = sld [smem:[%s56]]
  %s58 = scalar_lea.smem %s0, 29
  %s59 = sld [smem:[%s58]]
  %s60 = scalar_lea.smem %s0, 30
  %s61 = sld [smem:[%s60]]
  %s62 = scalar_lea.smem %s0, 31
  %s63 = sld [smem:[%s62]]
  %s64 = scalar_lea.smem %s0, 32
  %s65 = sld [smem:[%s64]]
  %66 = xla_tuple %s63, %s65
  %s67 = sld [smem:[#allocation0]]
  $region238: #{fwd.1} parent=0
    _
  %s69 = ssub.s32 1, %s67
  %s70 = scalar_select 0, %s69, %s67
  $region1: #{fwd.1} parent=0
    #allocation2 [shape = 'u8[24576]{0}', space=vmem, size = 0x6000, scoped, tag = 'input window, operand 2, single buffered']
    #allocation3 [shape = 's32[1]{0}', space=sflag, size = 0x4, scoped, tag = 'scoped memory for fwd.1']
    #allocation4 [shape = 'u8[512]{0}', space=vmem, size = 0x400, scoped, tag = 'input window, operand 3, single buffered']
    #allocation5 [shape = 's32[1]{0}', space=sflag, size = 0x4, scoped, tag = 'scoped memory for fwd.1']
    #allocation6 [shape = 'u8[8192]{0}', space=vmem, size = 0x2000, scoped, tag = 'input window, operand 4, single buffered']
    #allocation7 [shape = 'u8[512]{0}', space=vmem, size = 0x400, scoped, tag = 'input window, operand 6, single buffered']
    #allocation8 [shape = 's32[1]{0}', space=sflag, size = 0x4, scoped, tag = 'scoped memory for fwd.1']
    #allocation9 [shape = 'u8[8192]{0}', space=vmem, size = 0x2000, scoped, tag = 'input window, operand 7, single buffered']
    #allocation10 [shape = 'u8[98304]{0}', space=vmem, size = 0x18000, scoped, tag = 'input window, operand 8, single buffered']
    #allocation11 [shape = 's32[1]{0}', space=sflag, size = 0x4, scoped, tag = 'scoped memory for fwd.1']
    #allocation12 [shape = 'u8[512]{0}', space=vmem, size = 0x400, scoped, tag = 'input window, operand 9, single buffered']
    #allocation13 [shape = 'u8[4096]{0}', space=vmem, size = 0x1000, scoped, tag = 'input window, operand 10, single buffered']
    #allocation14 [shape = 's32[1]{0}', space=sflag, size = 0x4, scoped, tag = 'scoped memory for fwd.1']
    #allocation15 [shape = 'u8[98304]{0}', space=vmem, size = 0x18000, scoped, tag = 'input window, operand 11, single buffered']
    #allocation16 [shape = 'u8[512]{0}', space=vmem, size = 0x400, scoped, tag = 'input window, operand 12, single buffered']
    #allocation17 [shape = 's32[1]{0}', space=sflag, size = 0x4, scoped, tag = 'scoped memory for fwd.1']
    #allocation18 [shape = 'u8[4096]{0}', space=vmem, size = 0x1000, scoped, tag = 'input window, operand 13, single buffered']
    #allocation19 [shape = 'u8[512]{0}', space=vmem, size = 0x400, scoped, tag = 'input window, operand 15, single buffered']
    #allocation20 [shape = 's32[1]{0}', space=sflag, size = 0x4, scoped, tag = 'scoped memory for fwd.1']
    #allocation21 [shape = 'u8[4096]{0}', space=vmem, size = 0x1000, scoped, tag = 'input window, operand 16, single buffered']
    #allocation22 [shape = 'u8[98304]{0}', space=vmem, size = 0x18000, scoped, tag = 'input window, operand 17, single buffered']
    #allocation23 [shape = 's32[1]{0}', space=sflag, size = 0x4, scoped, tag = 'scoped memory for fwd.1']
    #allocation24 [shape = 'u8[512]{0}', space=vmem, size = 0x400, scoped, tag = 'input window, operand 18, single buffered']
    #allocation25 [shape = 'u8[2048]{0}', space=vmem, size = 0x800, scoped, tag = 'input window, operand 19, single buffered']
    #allocation26 [shape = 's32[1]{0}', space=sflag, size = 0x4, scoped, tag = 'scoped memory for fwd.1']
    #allocation27 [shape = 'u8[98304]{0}', space=vmem, size = 0x18000, scoped, tag = 'input window, operand 20, single buffered']
    #allocation28 [shape = 'u8[512]{0}', space=vmem, size = 0x400, scoped, tag = 'input window, operand 21, single buffered']
    #allocation29 [shape = 's32[1]{0}', space=sflag, size = 0x4, scoped, tag = 'scoped memory for fwd.1']
    #allocation30 [shape = 'u8[2048]{0}', space=vmem, size = 0x800, scoped, tag = 'input window, operand 22, single buffered']
    #allocation31 [shape = 'u8[512]{0}', space=vmem, size = 0x400, scoped, tag = 'input window, operand 24, single buffered']
    #allocation32 [shape = 's32[1]{0}', space=sflag, size = 0x4, scoped, tag = 'scoped memory for fwd.1']
    #allocation33 [shape = 'u8[6144]{0}', space=vmem, size = 0x1800, scoped, tag = 'input window, operand 25, single buffered']
    #allocation34 [shape = 'u8[98304]{0}', space=vmem, size = 0x18000, scoped, tag = 'input window, operand 26, single buffered']
    #allocation35 [shape = 's32[1]{0}', space=sflag, size = 0x4, scoped, tag = 'scoped memory for fwd.1']
    #allocation36 [shape = 'u8[512]{0}', space=vmem, size = 0x400, scoped, tag = 'input window, operand 27, single buffered']
    #allocation37 [shape = 'u8[512]{0}', space=vmem, size = 0x400, scoped, tag = 'input window, operand 30, single buffered']
    #allocation38 [shape = 's32[1]{0}', space=sflag, size = 0x4, scoped, tag = 'scoped memory for fwd.1']
    %71 = vsyncpa [#allocation3], 0
    %72 = vsyncpa [#allocation5], 0
    %73 = vsyncpa [#allocation8], 0
    %74 = vsyncpa [#allocation11], 0
    %75 = vsyncpa [#allocation14], 0
    %76 = vsyncpa [#allocation17], 0
    %77 = vsyncpa [#allocation20], 0
    %78 = vsyncpa [#allocation23], 0
    %79 = vsyncpa [#allocation26], 0
    %80 = vsyncpa [#allocation29], 0
    %81 = vsyncpa [#allocation32], 0
    %82 = vsyncpa [#allocation35], 0
    %83 = vsyncpa [#allocation38], 0
    // Predicated region
    $region2: #{fwd.1} parent=1 // pred_check
      _
    $region3: #{fwd.1} parent=1 // pred_check_branch
      %85 = sbr.rel (0) target = $region5
    $region4: #{fwd.1} parent=1 // pred_region
      _
    $region5: #{fwd.1} parent=1 // pred_fallthru
      _
    // Predicated region
    $region6: #{fwd.1} parent=1 // pred_check
      _
    $region7: #{fwd.1} parent=1 // pred_check_branch
      %87 = sbr.rel (0) target = $region9
    $region8: #{fwd.1} parent=1 // pred_region
      _
    $region9: #{fwd.1} parent=1 // pred_fallthru
      _
    // Predicated region
    $region10: #{fwd.1} parent=1 // pred_check
      _
    $region11: #{fwd.1} parent=1 // pred_check_branch
      %89 = sbr.rel (0) target = $region13
    $region12: #{fwd.1} parent=1 // pred_region
      %s91 = ssub.s32 768, 768
      %92 = vsyncadd [#allocation3], %s91
      %s93 = sshll.u32 [#allocation2], 4
      %s94 = int_to_ptr.vmem [resolvable:$true] %s93
      %99 = dma.hbm_to_vmem [thread:$0]  %s5, 768, %s94, [#allocation3], 64, 64, 4
    $region13: #{fwd.1} parent=1 // pred_fallthru
      _
    // Predicated region
    $region14: #{fwd.1} parent=1 // pred_check
      _
    $region15: #{fwd.1} parent=1 // pred_check_branch
      %101 = sbr.rel (0) target = $region17
    $region16: #{fwd.1} parent=1 // pred_region
      %s103 = ssub.s32 16, 16
      %104 = vsyncadd [#allocation5], %s103
      %s106 = sshll.u32 [#allocation4], 4
      %s107 = int_to_ptr.vmem [resolvable:$true] %s106
      %109 = dma.hbm_to_vmem [thread:$0]  %s7, 16, %s107, [#allocation5]
    $region17: #{fwd.1} parent=1 // pred_fallthru
      _
    // Predicated region
    $region18: #{fwd.1} parent=1 // pred_check
      _
    $region19: #{fwd.1} parent=1 // pred_check_branch
      %111 = sbr.rel (0) target = $region21
    $region20: #{fwd.1} parent=1 // pred_region
      %s113 = ssub.s32 256, 256
      %114 = vsyncadd [#allocation5], %s113
      %s115 = sshll.u32 [#allocation6], 4
      %s116 = int_to_ptr.vmem [resolvable:$true] %s115
      %121 = dma.hbm_to_vmem [thread:$0]  %s9, 256, %s116, [#allocation5], 128, 128, 8
    $region21: #{fwd.1} parent=1 // pred_fallthru
      _
    // Predicated region
    $region22: #{fwd.1} parent=1 // pred_check
      _
    $region23: #{fwd.1} parent=1 // pred_check_branch
      %123 = sbr.rel (0) target = $region25
    $region24: #{fwd.1} parent=1 // pred_region
      _
    $region25: #{fwd.1} parent=1 // pred_fallthru
      _
    // Predicated region
    $region26: #{fwd.1} parent=1 // pred_check
      _
    $region27: #{fwd.1} parent=1 // pred_check_branch
      %125 = sbr.rel (0) target = $region29
    $region28: #{fwd.1} parent=1 // pred_region
      %s127 = ssub.s32 16, 16
      %128 = vsyncadd [#allocation8], %s127
      %s130 = sshll.u32 [#allocation7], 4
      %s131 = int_to_ptr.vmem [resolvable:$true] %s130
      %133 = dma.hbm_to_vmem [thread:$0]  %s13, 16, %s131, [#allocation8]
    $region29: #{fwd.1} parent=1 // pred_fallthru
      _
    // Predicated region
    $region30: #{fwd.1} parent=1 // pred_check
      _
    $region31: #{fwd.1} parent=1 // pred_check_branch
      %135 = sbr.rel (0) target = $region33
    $region32: #{fwd.1} parent=1 // pred_region
      %s137 = ssub.s32 256, 256
      %138 = vsyncadd [#allocation8], %s137
      %s139 = sshll.u32 [#allocation9], 4
      %s140 = int_to_ptr.vmem [resolvable:$true] %s139
      %145 = dma.hbm_to_vmem [thread:$0]  %s15, 256, %s140, [#allocation8], 128, 128, 8
    $region33: #{fwd.1} parent=1 // pred_fallthru
      _
    // Predicated region
    $region34: #{fwd.1} parent=1 // pred_check
      _
    $region35: #{fwd.1} parent=1 // pred_check_branch
      %147 = sbr.rel (0) target = $region37
    $region36: #{fwd.1} parent=1 // pred_region
      %s149 = ssub.s32 3072, 3072
      %150 = vsyncadd [#allocation11], %s149
      %s151 = sshll.u32 [#allocation10], 4
      %s152 = int_to_ptr.vmem [resolvable:$true] %s151
      %157 = dma.hbm_to_vmem [thread:$0]  %s17, 3072, %s152, [#allocation11], 64, 64, 4
    $region37: #{fwd.1} parent=1 // pred_fallthru
      _
    // Predicated region
    $region38: #{fwd.1} parent=1 // pred_check
      _
    $region39: #{fwd.1} parent=1 // pred_check_branch
      %159 = sbr.rel (0) target = $region41
    $region40: #{fwd.1} parent=1 // pred_region
      %s161 = ssub.s32 16, 16
      %162 = vsyncadd [#allocation11], %s161
      %s164 = sshll.u32 [#allocation12], 4
      %s165 = int_to_ptr.vmem [resolvable:$true] %s164
      %167 = dma.hbm_to_vmem [thread:$0]  %s19, 16, %s165, [#allocation11]
    $region41: #{fwd.1} parent=1 // pred_fallthru
      _
    // Predicated region
    $region42: #{fwd.1} parent=1 // pred_check
      _
    $region43: #{fwd.1} parent=1 // pred_check_branch
      %169 = sbr.rel (0) target = $region45
    $region44: #{fwd.1} parent=1 // pred_region
      %s171 = ssub.s32 128, 128
      %172 = vsyncadd [#allocation14], %s171
      %s174 = sshll.u32 [#allocation13], 4
      %s175 = int_to_ptr.vmem [resolvable:$true] %s174
      %177 = dma.hbm_to_vmem [thread:$0]  %s21, 128, %s175, [#allocation14]
    $region45: #{fwd.1} parent=1 // pred_fallthru
      _
    // Predicated region
    $region46: #{fwd.1} parent=1 // pred_check
      _
    $region47: #{fwd.1} parent=1 // pred_check_branch
      %179 = sbr.rel (0) target = $region49
    $region48: #{fwd.1} parent=1 // pred_region
      %s181 = ssub.s32 3072, 3072
      %182 = vsyncadd [#allocation14], %s181
      %s183 = sshll.u32 [#allocation15], 4
      %s184 = int_to_ptr.vmem [resolvable:$true] %s183
      %189 = dma.hbm_to_vmem [thread:$0]  %s23, 3072, %s184, [#allocation14], 64, 64, 4
    $region49: #{fwd.1} parent=1 // pred_fallthru
      _
    // Predicated region
    $region50: #{fwd.1} parent=1 // pred_check
      _
    $region51: #{fwd.1} parent=1 // pred_check_branch
      %191 = sbr.rel (0) target = $region53
    $region52: #{fwd.1} parent=1 // pred_region
      %s193 = ssub.s32 16, 16
      %194 = vsyncadd [#allocation17], %s193
      %s196 = sshll.u32 [#allocation16], 4
      %s197 = int_to_ptr.vmem [resolvable:$true] %s196
      %199 = dma.hbm_to_vmem [thread:$0]  %s25, 16, %s197, [#allocation17]
    $region53: #{fwd.1} parent=1 // pred_fallthru
      _
    // Predicated region
    $region54: #{fwd.1} parent=1 // pred_check
      _
    $region55: #{fwd.1} parent=1 // pred_check_branch
      %201 = sbr.rel (0) target = $region57
    $region56: #{fwd.1} parent=1 // pred_region
      %s203 = ssub.s32 128, 128
      %204 = vsyncadd [#allocation17], %s203
      %s206 = sshll.u32 [#allocation18], 4
      %s207 = int_to_ptr.vmem [resolvable:$true] %s206
      %209 = dma.hbm_to_vmem [thread:$0]  %s27, 128, %s207, [#allocation17]
    $region57: #{fwd.1} parent=1 // pred_fallthru
      _
    // Predicated region
    $region58: #{fwd.1} parent=1 // pred_check
      _
    $region59: #{fwd.1} parent=1 // pred_check_branch
      %211 = sbr.rel (0) target = $region61
    $region60: #{fwd.1} parent=1 // pred_region
      _
    $region61: #{fwd.1} parent=1 // pred_fallthru
      _
    // Predicated region
    $region62: #{fwd.1} parent=1 // pred_check
      _
    $region63: #{fwd.1} parent=1 // pred_check_branch
      %213 = sbr.rel (0) target = $region65
    $region64: #{fwd.1} parent=1 // pred_region
      %s215 = ssub.s32 16, 16
      %216 = vsyncadd [#allocation20], %s215
      %s218 = sshll.u32 [#allocation19], 4
      %s219 = int_to_ptr.vmem [resolvable:$true] %s218
      %221 = dma.hbm_to_vmem [thread:$0]  %s31, 16, %s219, [#allocation20]
    $region65: #{fwd.1} parent=1 // pred_fallthru
      _
    // Predicated region
    $region66: #{fwd.1} parent=1 // pred_check
      _
    $region67: #{fwd.1} parent=1 // pred_check_branch
      %223 = sbr.rel (0) target = $region69
    $region68: #{fwd.1} parent=1 // pred_region
      %s225 = ssub.s32 128, 128
      %226 = vsyncadd [#allocation20], %s225
      %s228 = sshll.u32 [#allocation21], 4
      %s229 = int_to_ptr.vmem [resolvable:$true] %s228
      %231 = dma.hbm_to_vmem [thread:$0]  %s33, 128, %s229, [#allocation20]
    $region69: #{fwd.1} parent=1 // pred_fallthru
      _
    // Predicated region
    $region70: #{fwd.1} parent=1 // pred_check
      _
    $region71: #{fwd.1} parent=1 // pred_check_branch
      %233 = sbr.rel (0) target = $region73
    $region72: #{fwd.1} parent=1 // pred_region
      %s235 = ssub.s32 3072, 3072
      %236 = vsyncadd [#allocation23], %s235
      %s237 = sshll.u32 [#allocation22], 4
      %s238 = int_to_ptr.vmem [resolvable:$true] %s237
      %243 = dma.hbm_to_vmem [thread:$0]  %s35, 3072, %s238, [#allocation23], 64, 64, 4
    $region73: #{fwd.1} parent=1 // pred_fallthru
      _
    // Predicated region
    $region74: #{fwd.1} parent=1 // pred_check
      _
    $region75: #{fwd.1} parent=1 // pred_check_branch
      %245 = sbr.rel (0) target = $region77
    $region76: #{fwd.1} parent=1 // pred_region
      %s247 = ssub.s32 16, 16
      %248 = vsyncadd [#allocation23], %s247
      %s250 = sshll.u32 [#allocation24], 4
      %s251 = int_to_ptr.vmem [resolvable:$true] %s250
      %253 = dma.hbm_to_vmem [thread:$0]  %s37, 16, %s251, [#allocation23]
    $region77: #{fwd.1} parent=1 // pred_fallthru
      _
    // Predicated region
    $region78: #{fwd.1} parent=1 // pred_check
      _
    $region79: #{fwd.1} parent=1 // pred_check_branch
      %255 = sbr.rel (0) target = $region81
    $region80: #{fwd.1} parent=1 // pred_region
      %s257 = ssub.s32 64, 64
      %258 = vsyncadd [#allocation26], %s257
      %s260 = sshll.u32 [#allocation25], 4
      %s261 = int_to_ptr.vmem [resolvable:$true] %s260
      %263 = dma.hbm_to_vmem [thread:$0]  %s39, 64, %s261, [#allocation26]
    $region81: #{fwd.1} parent=1 // pred_fallthru
      _
    // Predicated region
    $region82: #{fwd.1} parent=1 // pred_check
      _
    $region83: #{fwd.1} parent=1 // pred_check_branch
      %265 = sbr.rel (0) target = $region85
    $region84: #{fwd.1} parent=1 // pred_region
      %s267 = ssub.s32 3072, 3072
      %268 = vsyncadd [#allocation26], %s267
      %s269 = sshll.u32 [#allocation27], 4
      %s270 = int_to_ptr.vmem [resolvable:$true] %s269
      %275 = dma.hbm_to_vmem [thread:$0]  %s41, 3072, %s270, [#allocation26], 64, 64, 4
    $region85: #{fwd.1} parent=1 // pred_fallthru
      _
    // Predicated region
    $region86: #{fwd.1} parent=1 // pred_check
      _
    $region87: #{fwd.1} parent=1 // pred_check_branch
      %277 = sbr.rel (0) target = $region89
    $region88: #{fwd.1} parent=1 // pred_region
      %s279 = ssub.s32 16, 16
      %280 = vsyncadd [#allocation29], %s279
      %s282 = sshll.u32 [#allocation28], 4
      %s283 = int_to_ptr.vmem [resolvable:$true] %s282
      %285 = dma.hbm_to_vmem [thread:$0]  %s43, 16, %s283, [#allocation29]
    $region89: #{fwd.1} parent=1 // pred_fallthru
      _
    // Predicated region
    $region90: #{fwd.1} parent=1 // pred_check
      _
    $region91: #{fwd.1} parent=1 // pred_check_branch
      %287 = sbr.rel (0) target = $region93
    $region92: #{fwd.1} parent=1 // pred_region
      %s289 = ssub.s32 64, 64
      %290 = vsyncadd [#allocation29], %s289
      %s292 = sshll.u32 [#allocation30], 4
      %s293 = int_to_ptr.vmem [resolvable:$true] %s292
      %295 = dma.hbm_to_vmem [thread:$0]  %s45, 64, %s293, [#allocation29]
    $region93: #{fwd.1} parent=1 // pred_fallthru
      _
    // Predicated region
    $region94: #{fwd.1} parent=1 // pred_check
      _
    $region95: #{fwd.1} parent=1 // pred_check_branch
      %297 = sbr.rel (0) target = $region97
    $region96: #{fwd.1} parent=1 // pred_region
      _
    $region97: #{fwd.1} parent=1 // pred_fallthru
      _
    // Predicated region
    $region98: #{fwd.1} parent=1 // pred_check
      _
    $region99: #{fwd.1} parent=1 // pred_check_branch
      %299 = sbr.rel (0) target = $region101
    $region100: #{fwd.1} parent=1 // pred_region
      %s301 = ssub.s32 16, 16
      %302 = vsyncadd [#allocation32], %s301
      %s304 = sshll.u32 [#allocation31], 4
      %s305 = int_to_ptr.vmem [resolvable:$true] %s304
      %307 = dma.hbm_to_vmem [thread:$0]  %s49, 16, %s305, [#allocation32]
    $region101: #{fwd.1} parent=1 // pred_fallthru
      _
    // Predicated region
    $region102: #{fwd.1} parent=1 // pred_check
      _
    $region103: #{fwd.1} parent=1 // pred_check_branch
      %309 = sbr.rel (0) target = $region105
    $region104: #{fwd.1} parent=1 // pred_region
      %s311 = ssub.s32 192, 192
      %312 = vsyncadd [#allocation32], %s311
      %s313 = sshll.u32 [#allocation33], 4
      %s314 = int_to_ptr.vmem [resolvable:$true] %s313
      %319 = dma.hbm_to_vmem [thread:$0]  %s51, 192, %s314, [#allocation32], 64, 64, 4
    $region105: #{fwd.1} parent=1 // pred_fallthru
      _
    // Predicated region
    $region106: #{fwd.1} parent=1 // pred_check
      _
    $region107: #{fwd.1} parent=1 // pred_check_branch
      %321 = sbr.rel (0) target = $region109
    $region108: #{fwd.1} parent=1 // pred_region
      %s323 = ssub.s32 3072, 3072
      %324 = vsyncadd [#allocation35], %s323
      %s325 = sshll.u32 [#allocation34], 4
      %s326 = int_to_ptr.vmem [resolvable:$true] %s325
      %331 = dma.hbm_to_vmem [thread:$0]  %s53, 3072, %s326, [#allocation35], 64, 64, 4
    $region109: #{fwd.1} parent=1 // pred_fallthru
      _
    // Predicated region
    $region110: #{fwd.1} parent=1 // pred_check
      _
    $region111: #{fwd.1} parent=1 // pred_check_branch
      %333 = sbr.rel (0) target = $region113
    $region112: #{fwd.1} parent=1 // pred_region
      %s335 = ssub.s32 16, 16
      %336 = vsyncadd [#allocation35], %s335
      %s338 = sshll.u32 [#allocation36], 4
      %s339 = int_to_ptr.vmem [resolvable:$true] %s338
      %341 = dma.hbm_to_vmem [thread:$0]  %s55, 16, %s339, [#allocation35]
    $region113: #{fwd.1} parent=1 // pred_fallthru
      _
    // Predicated region
    $region114: #{fwd.1} parent=1 // pred_check
      _
    $region115: #{fwd.1} parent=1 // pred_check_branch
      %343 = sbr.rel (0) target = $region117
    $region116: #{fwd.1} parent=1 // pred_region
      _
    $region117: #{fwd.1} parent=1 // pred_fallthru
      _
    // Predicated region
    $region118: #{fwd.1} parent=1 // pred_check
      _
    $region119: #{fwd.1} parent=1 // pred_check_branch
      %345 = sbr.rel (0) target = $region121
    $region120: #{fwd.1} parent=1 // pred_region
      _
    $region121: #{fwd.1} parent=1 // pred_fallthru
      _
    // Predicated region
    $region122: #{fwd.1} parent=1 // pred_check
      _
    $region123: #{fwd.1} parent=1 // pred_check_branch
      %347 = sbr.rel (0) target = $region125
    $region124: #{fwd.1} parent=1 // pred_region
      %s349 = ssub.s32 16, 16
      %350 = vsyncadd [#allocation38], %s349
      %s352 = sshll.u32 [#allocation37], 4
      %s353 = int_to_ptr.vmem [resolvable:$true] %s352
      %355 = dma.hbm_to_vmem [thread:$0]  %s61, 16, %s353, [#allocation38]
    $region125: #{fwd.1} parent=1 // pred_fallthru
      _
    // Predicated region
    $region126: #{fwd.1} parent=1 // pred_check
      _
    $region127: #{fwd.1} parent=1 // pred_check_branch
      %357 = sbr.rel (0) target = $region129
    $region128: #{fwd.1} parent=1 // pred_region
      %358 = dma.done [#allocation3], 768
    $region129: #{fwd.1} parent=1 // pred_fallthru
      _
    // Predicated region
    $region130: #{fwd.1} parent=1 // pred_check
      _
    $region131: #{fwd.1} parent=1 // pred_check_branch
      %360 = sbr.rel (0) target = $region133
    $region132: #{fwd.1} parent=1 // pred_region
      %361 = dma.done [#allocation5], 16
    $region133: #{fwd.1} parent=1 // pred_fallthru
      _
    // Predicated region
    $region134: #{fwd.1} parent=1 // pred_check
      _
    $region135: #{fwd.1} parent=1 // pred_check_branch
      %363 = sbr.rel (0) target = $region137
    $region136: #{fwd.1} parent=1 // pred_region
      %364 = dma.done [#allocation5], 256
    $region137: #{fwd.1} parent=1 // pred_fallthru
      _
    // Predicated region
    $region138: #{fwd.1} parent=1 // pred_check
      _
    $region139: #{fwd.1} parent=1 // pred_check_branch
      %366 = sbr.rel (0) target = $region141
    $region140: #{fwd.1} parent=1 // pred_region
      %367 = dma.done [#allocation8], 16
    $region141: #{fwd.1} parent=1 // pred_fallthru
      _
    // Predicated region
    $region142: #{fwd.1} parent=1 // pred_check
      _
    $region143: #{fwd.1} parent=1 // pred_check_branch
      %369 = sbr.rel (0) target = $region145
    $region144: #{fwd.1} parent=1 // pred_region
      %370 = dma.done [#allocation8], 256
    $region145: #{fwd.1} parent=1 // pred_fallthru
      _
    // Predicated region
    $region146: #{fwd.1} parent=1 // pred_check
      _
    $region147: #{fwd.1} parent=1 // pred_check_branch
      %372 = sbr.rel (0) target = $region149
    $region148: #{fwd.1} parent=1 // pred_region
      %373 = dma.done [#allocation11], 3072
    $region149: #{fwd.1} parent=1 // pred_fallthru
      _
    // Predicated region
    $region150: #{fwd.1} parent=1 // pred_check
      _
    $region151: #{fwd.1} parent=1 // pred_check_branch
      %375 = sbr.rel (0) target = $region153
    $region152: #{fwd.1} parent=1 // pred_region
      %376 = dma.done [#allocation11], 16
    $region153: #{fwd.1} parent=1 // pred_fallthru
      _
    // Predicated region
    $region154: #{fwd.1} parent=1 // pred_check
      _
    $region155: #{fwd.1} parent=1 // pred_check_branch
      %378 = sbr.rel (0) target = $region157
    $region156: #{fwd.1} parent=1 // pred_region
      %379 = dma.done [#allocation14], 128
    $region157: #{fwd.1} parent=1 // pred_fallthru
      _
    // Predicated region
    $region158: #{fwd.1} parent=1 // pred_check
      _
    $region159: #{fwd.1} parent=1 // pred_check_branch
      %381 = sbr.rel (0) target = $region161
    $region160: #{fwd.1} parent=1 // pred_region
      %382 = dma.done [#allocation14], 3072
    $region161: #{fwd.1} parent=1 // pred_fallthru
      _
    // Predicated region
    $region162: #{fwd.1} parent=1 // pred_check
      _
    $region163: #{fwd.1} parent=1 // pred_check_branch
      %384 = sbr.rel (0) target = $region165
    $region164: #{fwd.1} parent=1 // pred_region
      %385 = dma.done [#allocation17], 16
    $region165: #{fwd.1} parent=1 // pred_fallthru
      _
    // Predicated region
    $region166: #{fwd.1} parent=1 // pred_check
      _
    $region167: #{fwd.1} parent=1 // pred_check_branch
      %387 = sbr.rel (0) target = $region169
    $region168: #{fwd.1} parent=1 // pred_region
      %388 = dma.done [#allocation17], 128
    $region169: #{fwd.1} parent=1 // pred_fallthru
      _
    // Predicated region
    $region170: #{fwd.1} parent=1 // pred_check
      _
    $region171: #{fwd.1} parent=1 // pred_check_branch
      %390 = sbr.rel (0) target = $region173
    $region172: #{fwd.1} parent=1 // pred_region
      %391 = dma.done [#allocation20], 16
    $region173: #{fwd.1} parent=1 // pred_fallthru
      _
    // Predicated region
    $region174: #{fwd.1} parent=1 // pred_check
      _
    $region175: #{fwd.1} parent=1 // pred_check_branch
      %393 = sbr.rel (0) target = $region177
    $region176: #{fwd.1} parent=1 // pred_region
      %394 = dma.done [#allocation20], 128
    $region177: #{fwd.1} parent=1 // pred_fallthru
      _
    // Predicated region
    $region178: #{fwd.1} parent=1 // pred_check
      _
    $region179: #{fwd.1} parent=1 // pred_check_branch
      %396 = sbr.rel (0) target = $region181
    $region180: #{fwd.1} parent=1 // pred_region
      %397 = dma.done [#allocation23], 3072
    $region181: #{fwd.1} parent=1 // pred_fallthru
      _
    // Predicated region
    $region182: #{fwd.1} parent=1 // pred_check
      _
    $region183: #{fwd.1} parent=1 // pred_check_branch
      %399 = sbr.rel (0) target = $region185
    $region184: #{fwd.1} parent=1 // pred_region
      %400 = dma.done [#allocation23], 16
    $region185: #{fwd.1} parent=1 // pred_fallthru
      _
    // Predicated region
    $region186: #{fwd.1} parent=1 // pred_check
      _
    $region187: #{fwd.1} parent=1 // pred_check_branch
      %402 = sbr.rel (0) target = $region189
    $region188: #{fwd.1} parent=1 // pred_region
      %403 = dma.done [#allocation26], 64
    $region189: #{fwd.1} parent=1 // pred_fallthru
      _
    // Predicated region
    $region190: #{fwd.1} parent=1 // pred_check
      _
    $region191: #{fwd.1} parent=1 // pred_check_branch
      %405 = sbr.rel (0) target = $region193
    $region192: #{fwd.1} parent=1 // pred_region
      %406 = dma.done [#allocation26], 3072
    $region193: #{fwd.1} parent=1 // pred_fallthru
      _
    // Predicated region
    $region194: #{fwd.1} parent=1 // pred_check
      _
    $region195: #{fwd.1} parent=1 // pred_check_branch
      %408 = sbr.rel (0) target = $region197
    $region196: #{fwd.1} parent=1 // pred_region
      %409 = dma.done [#allocation29], 16
    $region197: #{fwd.1} parent=1 // pred_fallthru
      _
    // Predicated region
    $region198: #{fwd.1} parent=1 // pred_check
      _
    $region199: #{fwd.1} parent=1 // pred_check_branch
      %411 = sbr.rel (0) target = $region201
    $region200: #{fwd.1} parent=1 // pred_region
      %412 = dma.done [#allocation29], 64
    $region201: #{fwd.1} parent=1 // pred_fallthru
      _
    // Predicated region
    $region202: #{fwd.1} parent=1 // pred_check
      _
    $region203: #{fwd.1} parent=1 // pred_check_branch
      %414 = sbr.rel (0) target = $region205
    $region204: #{fwd.1} parent=1 // pred_region
      %415 = dma.done [#allocation32], 16
    $region205: #{fwd.1} parent=1 // pred_fallthru
      _
    // Predicated region
    $region206: #{fwd.1} parent=1 // pred_check
      _
    $region207: #{fwd.1} parent=1 // pred_check_branch
      %417 = sbr.rel (0) target = $region209
    $region208: #{fwd.1} parent=1 // pred_region
      %418 = dma.done [#allocation32], 192
    $region209: #{fwd.1} parent=1 // pred_fallthru
      _
    // Predicated region
    $region210: #{fwd.1} parent=1 // pred_check
      _
    $region211: #{fwd.1} parent=1 // pred_check_branch
      %420 = sbr.rel (0) target = $region213
    $region212: #{fwd.1} parent=1 // pred_region
      %421 = dma.done [#allocation35], 3072
    $region213: #{fwd.1} parent=1 // pred_fallthru
      _
    // Predicated region
    $region214: #{fwd.1} parent=1 // pred_check
      _
    $region215: #{fwd.1} parent=1 // pred_check_branch
      %423 = sbr.rel (0) target = $region217
    $region216: #{fwd.1} parent=1 // pred_region
      %424 = dma.done [#allocation35], 16
    $region217: #{fwd.1} parent=1 // pred_fallthru
      _
    // Predicated region
    $region218: #{fwd.1} parent=1 // pred_check
      _
    $region219: #{fwd.1} parent=1 // pred_check_branch
      %426 = sbr.rel (0) target = $region221
    $region220: #{fwd.1} parent=1 // pred_region
      %427 = dma.done [#allocation38], 16
    $region221: #{fwd.1} parent=1 // pred_fallthru
      _
    %v429 = vld [vmem:[%s1] sm:$0xff]
    %v430 = vld [vmem:[%s1 + $0x8] sm:$0xff]
    %v431 = vpack.c.bf16 %v430, %v429
    %v432 = vld [vmem:[#allocation2] sm:$0xf]
    %v433 = vld [vmem:[#allocation2 + $0x4] sm:$0xf]
    %v434 = vld [vmem:[#allocation2 + $0x8] sm:$0xf]
    %v435 = vld [vmem:[#allocation2 + $0xc] sm:$0xf]
    %v440 = vunpack.c.l.b16 %v432
    %v441 = vunpack.c.l.b16 %v433
    %v442 = vunpack.c.l.b16 %v434
    %v443 = vunpack.c.l.b16 %v435
    %v444 = vpack.c.b16 %v441, %v440
    %v445 = vpack.c.b16 %v443, %v442
    %vm448 = vcmask 261120
    %v450 = vsel %vm448, %v431, 0
    %452 = vmatprep.subr.bf16.mxu0 0
    %453 = vmatpush1.bf16.msra.mxu0 0
    %454 = vmatprep.subr.bf16.mxu0 0
    %455 = vmatpush1.bf16.msra.mxu0 0
    %456 = vmatprep.subr.bf16.mxu0 0
    %457 = vmatpush1.bf16.msra.mxu0 0
    %458 = vmatprep.subr.bf16.mxu0 0
    %459 = vmatpush1.bf16.msra.mxu0 0
    %460 = vmatprep.subr.bf16.mxu0 0
    %461 = vmatpush1.bf16.msra.mxu0 0
    %462 = vmatprep.subr.bf16.mxu0 0
    %463 = vmatpush1.bf16.msra.mxu0 0
    %464 = vmatprep.subr.bf16.mxu0 0
    %465 = vmatpush1.bf16.msra.mxu0 %v445
    %466 = vmatprep.subr.bf16.mxu0 0
    %467 = vmatpush1.bf16.msra.mxu0 %v444
    %468 = vmatprep.subr.bf16.mxu0 0
    %469 = vmatpush2.bf16.msra.mxu0 0
    %470 = vmatprep.subr.bf16.mxu0 0
    %471 = vmatpush2.bf16.msra.mxu0 0
    %472 = vmatprep.subr.bf16.mxu0 0
    %473 = vmatpush2.bf16.msra.mxu0 0
    %474 = vmatprep.subr.bf16.mxu0 0
    %475 = vmatpush2.bf16.msra.mxu0 0
    %476 = vmatprep.subr.bf16.mxu0 0
    %477 = vmatpush2.bf16.msra.mxu0 0
    %478 = vmatprep.subr.bf16.mxu0 0
    %479 = vmatpush2.bf16.msra.mxu0 0
    %480 = vmatprep.subr.bf16.mxu0 0
    %481 = vmatpush2.bf16.msra.mxu0 0
    %482 = vmatprep.subr.bf16.mxu0 0
    %483 = vmatpush2.bf16.msra.mxu0 0
    %484 = vmatprep.mubr.bf16.mxu0 0
    %485 = vmatmul.mubr.bf16.gmra.mxu0 %v450
    %v486 = vpop.f32.mrf.mxu0
    %v487 = vadd.f32 0.0, %v486
    %v488 = vpop.f32.mrf.mxu0
    %v489 = vpop.f32.mrf.mxu0
    %v490 = vadd.f32 0.0, %v489
    %v491 = vpop.f32.mrf.mxu0
    %492 = vdwg.mxu0
    %s493 = scalar_lea.vmem [#allocation2], 16
    %v494 = vld [vmem:[%s493] sm:$0xf]
    %v495 = vld [vmem:[%s493 + $0x4] sm:$0xf]
    %v496 = vld [vmem:[%s493 + $0x8] sm:$0xf]
    %v497 = vld [vmem:[%s493 + $0xc] sm:$0xf]
    %v502 = vunpack.c.l.b16 %v494
    %v503 = vunpack.c.l.b16 %v495
    %v504 = vunpack.c.l.b16 %v496
    %v505 = vunpack.c.l.b16 %v497
    %v506 = vpack.c.b16 %v503, %v502
    %v507 = vpack.c.b16 %v505, %v504
    %510 = vmatprep.subr.bf16.mxu0 0
    %511 = vmatpush1.bf16.msra.mxu0 0
    %512 = vmatprep.subr.bf16.mxu0 0
    %513 = vmatpush1.bf16.msra.mxu0 0
    %514 = vmatprep.subr.bf16.mxu0 0
    %515 = vmatpush1.bf16.msra.mxu0 0
    %516 = vmatprep.subr.bf16.mxu0 0
    %517 = vmatpush1.bf16.msra.mxu0 0
    %518 = vmatprep.subr.bf16.mxu0 0
    %519 = vmatpush1.bf16.msra.mxu0 0
    %520 = vmatprep.subr.bf16.mxu0 0
    %521 = vmatpush1.bf16.msra.mxu0 0
    %522 = vmatprep.subr.bf16.mxu0 0
    %523 = vmatpush1.bf16.msra.mxu0 %v507
    %524 = vmatprep.subr.bf16.mxu0 0
    %525 = vmatpush1.bf16.msra.mxu0 %v506
    %526 = vmatprep.subr.bf16.mxu0 0
    %527 = vmatpush2.bf16.msra.mxu0 0
    %528 = vmatprep.subr.bf16.mxu0 0
    %529 = vmatpush2.bf16.msra.mxu0 0
    %530 = vmatprep.subr.bf16.mxu0 0
    %531 = vmatpush2.bf16.msra.mxu0 0
    %532 = vmatprep.subr.bf16.mxu0 0
    %533 = vmatpush2.bf16.msra.mxu0 0
    %534 = vmatprep.subr.bf16.mxu0 0
    %535 = vmatpush2.bf16.msra.mxu0 0
    %536 = vmatprep.subr.bf16.mxu0 0
    %537 = vmatpush2.bf16.msra.mxu0 0
    %538 = vmatprep.subr.bf16.mxu0 0
    %539 = vmatpush2.bf16.msra.mxu0 0
    %540 = vmatprep.subr.bf16.mxu0 0
    %541 = vmatpush2.bf16.msra.mxu0 0
    %542 = vmatprep.mubr.bf16.mxu0 0
    %543 = vmatmul.mubr.bf16.gmra.mxu0 %v450
    %v544 = vpop.f32.mrf.mxu0
    %v545 = vadd.f32 0.0, %v544
    %v546 = vpop.f32.mrf.mxu0
    %v547 = vpop.f32.mrf.mxu0
    %v548 = vadd.f32 0.0, %v547
    %v549 = vpop.f32.mrf.mxu0
    %550 = vdwg.mxu0
    %s551 = scalar_lea.vmem [#allocation2], 32
    %v552 = vld [vmem:[%s551] sm:$0xf]
    %v553 = vld [vmem:[%s551 + $0x4] sm:$0xf]
    %v554 = vld [vmem:[%s551 + $0x8] sm:$0xf]
    %v555 = vld [vmem:[%s551 + $0xc] sm:$0xf]
    %v560 = vunpack.c.l.b16 %v552
    %v561 = vunpack.c.l.b16 %v553
    %v562 = vunpack.c.l.b16 %v554
    %v563 = vunpack.c.l.b16 %v555
    %v564 = vpack.c.b16 %v561, %v560
    %v565 = vpack.c.b16 %v563, %v562
    %568 = vmatprep.subr.bf16.mxu0 0
    %569 = vmatpush1.bf16.msra.mxu0 0
    %570 = vmatprep.subr.bf16.mxu0 0
    %571 = vmatpush1.bf16.msra.mxu0 0
    %572 = vmatprep.subr.bf16.mxu0 0
    %573 = vmatpush1.bf16.msra.mxu0 0
    %574 = vmatprep.subr.bf16.mxu0 0
    %575 = vmatpush1.bf16.msra.mxu0 0
    %576 = vmatprep.subr.bf16.mxu0 0
    %577 = vmatpush1.bf16.msra.mxu0 0
    %578 = vmatprep.subr.bf16.mxu0 0
    %579 = vmatpush1.bf16.msra.mxu0 0
    %580 = vmatprep.subr.bf16.mxu0 0
    %581 = vmatpush1.bf16.msra.mxu0 %v565
    %582 = vmatprep.subr.bf16.mxu0 0
    %583 = vmatpush1.bf16.msra.mxu0 %v564
    %584 = vmatprep.subr.bf16.mxu0 0
    %585 = vmatpush2.bf16.msra.mxu0 0
    %586 = vmatprep.subr.bf16.mxu0 0
    %587 = vmatpush2.bf16.msra.mxu0 0
    %588 = vmatprep.subr.bf16.mxu0 0
    %589 = vmatpush2.bf16.msra.mxu0 0
    %590 = vmatprep.subr.bf16.mxu0 0
    %591 = vmatpush2.bf16.msra.mxu0 0
    %592 = vmatprep.subr.bf16.mxu0 0
    %593 = vmatpush2.bf16.msra.mxu0 0
    %594 = vmatprep.subr.bf16.mxu0 0
    %595 = vmatpush2.bf16.msra.mxu0 0
    %596 = vmatprep.subr.bf16.mxu0 0
    %597 = vmatpush2.bf16.msra.mxu0 0
    %598 = vmatprep.subr.bf16.mxu0 0
    %599 = vmatpush2.bf16.msra.mxu0 0
    %600 = vmatprep.mubr.bf16.mxu0 0
    %601 = vmatmul.mubr.bf16.gmra.mxu0 %v450
    %v602 = vpop.f32.mrf.mxu0
    %v603 = vadd.f32 0.0, %v602
    %v604 = vpop.f32.mrf.mxu0
    %v605 = vpop.f32.mrf.mxu0
    %v606 = vadd.f32 0.0, %v605
    %v607 = vpop.f32.mrf.mxu0
    %608 = vdwg.mxu0
    %v609 = vld [vmem:[%s3] sm:$0xff]
    %v610 = vld [vmem:[%s3 + $0x8] sm:$0xff]
    %v611 = vld [vmem:[#allocation4] sm:$0x1]
    %v613 = vlaneseq
    %v614 = vshrl.u32 %v613, 7
    %v615 = vsub.s32 0, %v614
    %v616 = vrot.slane %v611, %v615
    %vm618 = vcmask 392192
    %v620 = vsel %vm618, %v609, 0
    %v623 = vsel %vm618, %v610, 0
    %625 = vmatprep.subr.mxu0 0.0
    %626 = vmatpush1.msra.mxu0 0.0
    %627 = vmatprep.subr.mxu0 0.0
    %628 = vmatpush1.msra.mxu0 0.0
    %629 = vmatprep.subr.mxu0 0.0
    %630 = vmatpush1.msra.mxu0 0.0
    %631 = vmatprep.subr.mxu0 0.0
    %632 = vmatpush1.msra.mxu0 0.0
    %633 = vmatprep.subr.mxu0 0.0
    %634 = vmatpush1.msra.mxu0 0.0
    %635 = vmatprep.subr.mxu0 0.0
    %636 = vmatpush1.msra.mxu0 0.0
    %637 = vmatprep.subr.mxu0 0.0
    %638 = vmatpush1.msra.mxu0 0.0
    %639 = vmatprep.subr.mxu0 0.0
    %640 = vmatpush1.msra.mxu0 0.0
    %641 = vmatprep.subr.mxu0 0.0
    %642 = vmatpush1.msra.mxu0 0.0
    %643 = vmatprep.subr.mxu0 0.0
    %644 = vmatpush1.msra.mxu0 0.0
    %645 = vmatprep.subr.mxu0 0.0
    %646 = vmatpush1.msra.mxu0 %v606
    %647 = vmatprep.subr.mxu0 0.0
    %648 = vmatpush1.msra.mxu0 %v603
    %649 = vmatprep.subr.mxu0 0.0
    %650 = vmatpush1.msra.mxu0 %v548
    %651 = vmatprep.subr.mxu0 0.0
    %652 = vmatpush1.msra.mxu0 %v545
    %653 = vmatprep.subr.mxu0 0.0
    %654 = vmatpush1.msra.mxu0 %v490
    %655 = vmatprep.subr.mxu0 0.0
    %656 = vmatpush1.msra.mxu0 %v487
    %657 = vmatprep.subr.mxu0 0.0
    %658 = vmatpush2.msra.mxu0 0.0
    %659 = vmatprep.subr.mxu0 0.0
    %660 = vmatpush2.msra.mxu0 0.0
    %661 = vmatprep.subr.mxu0 0.0
    %662 = vmatpush2.msra.mxu0 0.0
    %663 = vmatprep.subr.mxu0 0.0
    %664 = vmatpush2.msra.mxu0 0.0
    %665 = vmatprep.subr.mxu0 0.0
    %666 = vmatpush2.msra.mxu0 0.0
    %667 = vmatprep.subr.mxu0 0.0
    %668 = vmatpush2.msra.mxu0 0.0
    %669 = vmatprep.subr.mxu0 0.0
    %670 = vmatpush2.msra.mxu0 0.0
    %671 = vmatprep.subr.mxu0 0.0
    %672 = vmatpush2.msra.mxu0 0.0
    %673 = vmatprep.subr.mxu0 0.0
    %674 = vmatpush2.msra.mxu0 0.0
    %675 = vmatprep.subr.mxu0 0.0
    %676 = vmatpush2.msra.mxu0 0.0
    %677 = vmatprep.subr.mxu0 0.0
    %678 = vmatpush2.msra.mxu0 0.0
    %679 = vmatprep.subr.mxu0 0.0
    %680 = vmatpush2.msra.mxu0 0.0
    %681 = vmatprep.subr.mxu0 0.0
    %682 = vmatpush2.msra.mxu0 0.0
    %683 = vmatprep.subr.mxu0 0.0
    %684 = vmatpush2.msra.mxu0 0.0
    %685 = vmatprep.subr.mxu0 0.0
    %686 = vmatpush2.msra.mxu0 0.0
    %687 = vmatprep.subr.mxu0 0.0
    %688 = vmatpush2.msra.mxu0 0.0
    %689 = vmatprep.mubr.f32.mxu0 0.0
    %690 = vmatmul.mubr.f32.gmra.mxu0 %v620
    %v691 = vpop.f32.mrf.mxu0
    %v692 = vadd.f32 %v616, %v691
    %v693 = vpop.f32.mrf.mxu0
    %694 = vmatprep.mubr.f32.mxu0 0.0
    %695 = vmatmul.mubr.f32.gmra.mxu0 %v623
    %v696 = vpop.f32.mrf.mxu0
    %v697 = vadd.f32 %v616, %v696
    %v698 = vpop.f32.mrf.mxu0
    %699 = vdwg.mxu0
    %v700 = vmax.f32 %v692, 0.0
    %v701 = vmax.f32 %v697, 0.0
    %v702 = vpack.c.bf16 %v701, %v700
    %v703 = vld [vmem:[%s11] sm:$0xf]
    %v704 = vld [vmem:[%s11 + $0x4] sm:$0xf]
    %v705 = vld [vmem:[%s11 + $0x8] sm:$0xf]
    %v706 = vld [vmem:[%s11 + $0xc] sm:$0xf]
    %v707 = vld [vmem:[%s11 + $0x10] sm:$0xf]
    %v708 = vld [vmem:[%s11 + $0x14] sm:$0xf]
    %v709 = vld [vmem:[%s11 + $0x18] sm:$0xf]
    %v710 = vld [vmem:[%s11 + $0x1c] sm:$0xf]
    %v711 = vld [vmem:[%s11 + $0x20] sm:$0xf]
    %v712 = vld [vmem:[%s11 + $0x24] sm:$0xf]
    %v713 = vld [vmem:[%s11 + $0x28] sm:$0xf]
    %v714 = vld [vmem:[%s11 + $0x2c] sm:$0xf]
    %v715 = vld [vmem:[%s11 + $0x30] sm:$0xf]
    %v716 = vld [vmem:[%s11 + $0x34] sm:$0xf]
    %v717 = vld [vmem:[%s11 + $0x38] sm:$0xf]
    %v718 = vld [vmem:[%s11 + $0x3c] sm:$0xf]
    %v735 = vunpack.c.l.b16 %v703
    %v736 = vunpack.c.l.b16 %v704
    %v737 = vunpack.c.l.b16 %v705
    %v738 = vunpack.c.l.b16 %v706
    %v739 = vunpack.c.l.b16 %v707
    %v740 = vunpack.c.l.b16 %v708
    %v741 = vunpack.c.l.b16 %v709
    %v742 = vunpack.c.l.b16 %v710
    %v743 = vunpack.c.l.b16 %v711
    %v744 = vunpack.c.l.b16 %v712
    %v745 = vunpack.c.l.b16 %v713
    %v746 = vunpack.c.l.b16 %v714
    %v747 = vunpack.c.l.b16 %v715
    %v748 = vunpack.c.l.b16 %v716
    %v749 = vunpack.c.l.b16 %v717
    %v750 = vunpack.c.l.b16 %v718
    %v751 = vpack.c.b16 %v736, %v735
    %v752 = vpack.c.b16 %v738, %v737
    %v753 = vpack.c.b16 %v740, %v739
    %v754 = vpack.c.b16 %v742, %v741
    %v755 = vpack.c.b16 %v744, %v743
    %v756 = vpack.c.b16 %v746, %v745
    %v757 = vpack.c.b16 %v748, %v747
    %v758 = vpack.c.b16 %v750, %v749
    %767 = vmatprep.subr.bf16.mxu0 0
    %768 = vmatpush1.bf16.msra.mxu0 %v758
    %769 = vmatprep.subr.bf16.mxu0 0
    %770 = vmatpush1.bf16.msra.mxu0 %v757
    %771 = vmatprep.subr.bf16.mxu0 0
    %772 = vmatpush1.bf16.msra.mxu0 %v756
    %773 = vmatprep.subr.bf16.mxu0 0
    %774 = vmatpush1.bf16.msra.mxu0 %v755
    %775 = vmatprep.subr.bf16.mxu0 0
    %776 = vmatpush1.bf16.msra.mxu0 %v754
    %777 = vmatprep.subr.bf16.mxu0 0
    %778 = vmatpush1.bf16.msra.mxu0 %v753
    %779 = vmatprep.subr.bf16.mxu0 0
    %780 = vmatpush1.bf16.msra.mxu0 %v752
    %781 = vmatprep.subr.bf16.mxu0 0
    %782 = vmatpush1.bf16.msra.mxu0 %v751
    %783 = vmatprep.subr.bf16.mxu0 0
    %784 = vmatpush2.bf16.msra.mxu0 0
    %785 = vmatprep.subr.bf16.mxu0 0
    %786 = vmatpush2.bf16.msra.mxu0 0
    %787 = vmatprep.subr.bf16.mxu0 0
    %788 = vmatpush2.bf16.msra.mxu0 0
    %789 = vmatprep.subr.bf16.mxu0 0
    %790 = vmatpush2.bf16.msra.mxu0 0
    %791 = vmatprep.subr.bf16.mxu0 0
    %792 = vmatpush2.bf16.msra.mxu0 0
    %793 = vmatprep.subr.bf16.mxu0 0
    %794 = vmatpush2.bf16.msra.mxu0 0
    %795 = vmatprep.subr.bf16.mxu0 0
    %796 = vmatpush2.bf16.msra.mxu0 0
    %797 = vmatprep.subr.bf16.mxu0 0
    %798 = vmatpush2.bf16.msra.mxu0 0
    %799 = vmatprep.mubr.bf16.mxu0 0
    %800 = vmatmul.mubr.bf16.gmra.mxu0 %v702
    %v801 = vpop.f32.mrf.mxu0
    %v802 = vadd.f32 0.0, %v801
    %v803 = vpop.f32.mrf.mxu0
    %v804 = vpop.f32.mrf.mxu0
    %v805 = vadd.f32 0.0, %v804
    %v806 = vpop.f32.mrf.mxu0
    %807 = vdwg.mxu0
    %s808 = scalar_lea.vmem %s11, 64
    %v809 = vld [vmem:[%s808] sm:$0xf]
    %v810 = vld [vmem:[%s808 + $0x4] sm:$0xf]
    %v811 = vld [vmem:[%s808 + $0x8] sm:$0xf]
    %v812 = vld [vmem:[%s808 + $0xc] sm:$0xf]
    %v813 = vld [vmem:[%s808 + $0x10] sm:$0xf]
    %v814 = vld [vmem:[%s808 + $0x14] sm:$0xf]
    %v815 = vld [vmem:[%s808 + $0x18] sm:$0xf]
    %v816 = vld [vmem:[%s808 + $0x1c] sm:$0xf]
    %v817 = vld [vmem:[%s808 + $0x20] sm:$0xf]
    %v818 = vld [vmem:[%s808 + $0x24] sm:$0xf]
    %v819 = vld [vmem:[%s808 + $0x28] sm:$0xf]
    %v820 = vld [vmem:[%s808 + $0x2c] sm:$0xf]
    %v821 = vld [vmem:[%s808 + $0x30] sm:$0xf]
    %v822 = vld [vmem:[%s808 + $0x34] sm:$0xf]
    %v823 = vld [vmem:[%s808 + $0x38] sm:$0xf]
    %v824 = vld [vmem:[%s808 + $0x3c] sm:$0xf]
    %v841 = vunpack.c.l.b16 %v809
    %v842 = vunpack.c.l.b16 %v810
    %v843 = vunpack.c.l.b16 %v811
    %v844 = vunpack.c.l.b16 %v812
    %v845 = vunpack.c.l.b16 %v813
    %v846 = vunpack.c.l.b16 %v814
    %v847 = vunpack.c.l.b16 %v815
    %v848 = vunpack.c.l.b16 %v816
    %v849 = vunpack.c.l.b16 %v817
    %v850 = vunpack.c.l.b16 %v818
    %v851 = vunpack.c.l.b16 %v819
    %v852 = vunpack.c.l.b16 %v820
    %v853 = vunpack.c.l.b16 %v821
    %v854 = vunpack.c.l.b16 %v822
    %v855 = vunpack.c.l.b16 %v823
    %v856 = vunpack.c.l.b16 %v824
    %v857 = vpack.c.b16 %v842, %v841
    %v858 = vpack.c.b16 %v844, %v843
    %v859 = vpack.c.b16 %v846, %v845
    %v860 = vpack.c.b16 %v848, %v847
    %v861 = vpack.c.b16 %v850, %v849
    %v862 = vpack.c.b16 %v852, %v851
    %v863 = vpack.c.b16 %v854, %v853
    %v864 = vpack.c.b16 %v856, %v855
    %873 = vmatprep.subr.bf16.mxu0 0
    %874 = vmatpush1.bf16.msra.mxu0 %v864
    %875 = vmatprep.subr.bf16.mxu0 0
    %876 = vmatpush1.bf16.msra.mxu0 %v863
    %877 = vmatprep.subr.bf16.mxu0 0
    %878 = vmatpush1.bf16.msra.mxu0 %v862
    %879 = vmatprep.subr.bf16.mxu0 0
    %880 = vmatpush1.bf16.msra.mxu0 %v861
    %881 = vmatprep.subr.bf16.mxu0 0
    %882 = vmatpush1.bf16.msra.mxu0 %v860
    %883 = vmatprep.subr.bf16.mxu0 0
    %884 = vmatpush1.bf16.msra.mxu0 %v859
    %885 = vmatprep.subr.bf16.mxu0 0
    %886 = vmatpush1.bf16.msra.mxu0 %v858
    %887 = vmatprep.subr.bf16.mxu0 0
    %888 = vmatpush1.bf16.msra.mxu0 %v857
    %889 = vmatprep.subr.bf16.mxu0 0
    %890 = vmatpush2.bf16.msra.mxu0 0
    %891 = vmatprep.subr.bf16.mxu0 0
    %892 = vmatpush2.bf16.msra.mxu0 0
    %893 = vmatprep.subr.bf16.mxu0 0
    %894 = vmatpush2.bf16.msra.mxu0 0
    %895 = vmatprep.subr.bf16.mxu0 0
    %896 = vmatpush2.bf16.msra.mxu0 0
    %897 = vmatprep.subr.bf16.mxu0 0
    %898 = vmatpush2.bf16.msra.mxu0 0
    %899 = vmatprep.subr.bf16.mxu0 0
    %900 = vmatpush2.bf16.msra.mxu0 0
    %901 = vmatprep.subr.bf16.mxu0 0
    %902 = vmatpush2.bf16.msra.mxu0 0
    %903 = vmatprep.subr.bf16.mxu0 0
    %904 = vmatpush2.bf16.msra.mxu0 0
    %905 = vmatprep.mubr.bf16.mxu0 0
    %906 = vmatmul.mubr.bf16.gmra.mxu0 %v702
    %v907 = vpop.f32.mrf.mxu0
    %v908 = vadd.f32 0.0, %v907
    %v909 = vpop.f32.mrf.mxu0
    %v910 = vpop.f32.mrf.mxu0
    %v911 = vadd.f32 0.0, %v910
    %v912 = vpop.f32.mrf.mxu0
    %913 = vdwg.mxu0
    %s914 = scalar_lea.vmem %s11, 128
    %v915 = vld [vmem:[%s914] sm:$0xf]
    %v916 = vld [vmem:[%s914 + $0x4] sm:$0xf]
    %v917 = vld [vmem:[%s914 + $0x8] sm:$0xf]
    %v918 = vld [vmem:[%s914 + $0xc] sm:$0xf]
    %v919 = vld [vmem:[%s914 + $0x10] sm:$0xf]
    %v920 = vld [vmem:[%s914 + $0x14] sm:$0xf]
    %v921 = vld [vmem:[%s914 + $0x18] sm:$0xf]
    %v922 = vld [vmem:[%s914 + $0x1c] sm:$0xf]
    %v923 = vld [vmem:[%s914 + $0x20] sm:$0xf]
    %v924 = vld [vmem:[%s914 + $0x24] sm:$0xf]
    %v925 = vld [vmem:[%s914 + $0x28] sm:$0xf]
    %v926 = vld [vmem:[%s914 + $0x2c] sm:$0xf]
    %v927 = vld [vmem:[%s914 + $0x30] sm:$0xf]
    %v928 = vld [vmem:[%s914 + $0x34] sm:$0xf]
    %v929 = vld [vmem:[%s914 + $0x38] sm:$0xf]
    %v930 = vld [vmem:[%s914 + $0x3c] sm:$0xf]
    %v947 = vunpack.c.l.b16 %v915
    %v948 = vunpack.c.l.b16 %v916
    %v949 = vunpack.c.l.b16 %v917
    %v950 = vunpack.c.l.b16 %v918
    %v951 = vunpack.c.l.b16 %v919
    %v952 = vunpack.c.l.b16 %v920
    %v953 = vunpack.c.l.b16 %v921
    %v954 = vunpack.c.l.b16 %v922
    %v955 = vunpack.c.l.b16 %v923
    %v956 = vunpack.c.l.b16 %v924
    %v957 = vunpack.c.l.b16 %v925
    %v958 = vunpack.c.l.b16 %v926
    %v959 = vunpack.c.l.b16 %v927
    %v960 = vunpack.c.l.b16 %v928
    %v961 = vunpack.c.l.b16 %v929
    %v962 = vunpack.c.l.b16 %v930
    %v963 = vpack.c.b16 %v948, %v947
    %v964 = vpack.c.b16 %v950, %v949
    %v965 = vpack.c.b16 %v952, %v951
    %v966 = vpack.c.b16 %v954, %v953
    %v967 = vpack.c.b16 %v956, %v955
    %v968 = vpack.c.b16 %v958, %v957
    %v969 = vpack.c.b16 %v960, %v959
    %v970 = vpack.c.b16 %v962, %v961
    %979 = vmatprep.subr.bf16.mxu0 0
    %980 = vmatpush1.bf16.msra.mxu0 %v970
    %981 = vmatprep.subr.bf16.mxu0 0
    %982 = vmatpush1.bf16.msra.mxu0 %v969
    %983 = vmatprep.subr.bf16.mxu0 0
    %984 = vmatpush1.bf16.msra.mxu0 %v968
    %985 = vmatprep.subr.bf16.mxu0 0
    %986 = vmatpush1.bf16.msra.mxu0 %v967
    %987 = vmatprep.subr.bf16.mxu0 0
    %988 = vmatpush1.bf16.msra.mxu0 %v966
    %989 = vmatprep.subr.bf16.mxu0 0
    %990 = vmatpush1.bf16.msra.mxu0 %v965
    %991 = vmatprep.subr.bf16.mxu0 0
    %992 = vmatpush1.bf16.msra.mxu0 %v964
    %993 = vmatprep.subr.bf16.mxu0 0
    %994 = vmatpush1.bf16.msra.mxu0 %v963
    %995 = vmatprep.subr.bf16.mxu0 0
    %996 = vmatpush2.bf16.msra.mxu0 0
    %997 = vmatprep.subr.bf16.mxu0 0
    %998 = vmatpush2.bf16.msra.mxu0 0
    %999 = vmatprep.subr.bf16.mxu0 0
    %1000 = vmatpush2.bf16.msra.mxu0 0
    %1001 = vmatprep.subr.bf16.mxu0 0
    %1002 = vmatpush2.bf16.msra.mxu0 0
    %1003 = vmatprep.subr.bf16.mxu0 0
    %1004 = vmatpush2.bf16.msra.mxu0 0
    %1005 = vmatprep.subr.bf16.mxu0 0
    %1006 = vmatpush2.bf16.msra.mxu0 0
    %1007 = vmatprep.subr.bf16.mxu0 0
    %1008 = vmatpush2.bf16.msra.mxu0 0
    %1009 = vmatprep.subr.bf16.mxu0 0
    %1010 = vmatpush2.bf16.msra.mxu0 0
    %1011 = vmatprep.mubr.bf16.mxu0 0
    %1012 = vmatmul.mubr.bf16.gmra.mxu0 %v702
    %v1013 = vpop.f32.mrf.mxu0
    %v1014 = vadd.f32 0.0, %v1013
    %v1015 = vpop.f32.mrf.mxu0
    %v1016 = vpop.f32.mrf.mxu0
    %v1017 = vadd.f32 0.0, %v1016
    %v1018 = vpop.f32.mrf.mxu0
    %1019 = vdwg.mxu0
    %v1020 = vld [vmem:[#allocation6] sm:$0xff]
    %v1021 = vld [vmem:[#allocation6 + $0x8] sm:$0xff]
    %v1022 = vld [vmem:[#allocation7] sm:$0x1]
    %v1024 = vlaneseq
    %v1025 = vshrl.u32 %v1024, 7
    %v1026 = vsub.s32 0, %v1025
    %v1027 = vrot.slane %v1022, %v1026
    %v1030 = vsel %vm618, %v1020, 0
    %v1033 = vsel %vm618, %v1021, 0
    %1035 = vmatprep.subr.mxu0 0.0
    %1036 = vmatpush1.msra.mxu0 0.0
    %1037 = vmatprep.subr.mxu0 0.0
    %1038 = vmatpush1.msra.mxu0 0.0
    %1039 = vmatprep.subr.mxu0 0.0
    %1040 = vmatpush1.msra.mxu0 0.0
    %1041 = vmatprep.subr.mxu0 0.0
    %1042 = vmatpush1.msra.mxu0 0.0
    %1043 = vmatprep.subr.mxu0 0.0
    %1044 = vmatpush1.msra.mxu0 0.0
    %1045 = vmatprep.subr.mxu0 0.0
    %1046 = vmatpush1.msra.mxu0 0.0
    %1047 = vmatprep.subr.mxu0 0.0
    %1048 = vmatpush1.msra.mxu0 0.0
    %1049 = vmatprep.subr.mxu0 0.0
    %1050 = vmatpush1.msra.mxu0 0.0
    %1051 = vmatprep.subr.mxu0 0.0
    %1052 = vmatpush1.msra.mxu0 0.0
    %1053 = vmatprep.subr.mxu0 0.0
    %1054 = vmatpush1.msra.mxu0 0.0
    %1055 = vmatprep.subr.mxu0 0.0
    %1056 = vmatpush1.msra.mxu0 %v1017
    %1057 = vmatprep.subr.mxu0 0.0
    %1058 = vmatpush1.msra.mxu0 %v1014
    %1059 = vmatprep.subr.mxu0 0.0
    %1060 = vmatpush1.msra.mxu0 %v911
    %1061 = vmatprep.subr.mxu0 0.0
    %1062 = vmatpush1.msra.mxu0 %v908
    %1063 = vmatprep.subr.mxu0 0.0
    %1064 = vmatpush1.msra.mxu0 %v805
    %1065 = vmatprep.subr.mxu0 0.0
    %1066 = vmatpush1.msra.mxu0 %v802
    %1067 = vmatprep.subr.mxu0 0.0
    %1068 = vmatpush2.msra.mxu0 0.0
    %1069 = vmatprep.subr.mxu0 0.0
    %1070 = vmatpush2.msra.mxu0 0.0
    %1071 = vmatprep.subr.mxu0 0.0
    %1072 = vmatpush2.msra.mxu0 0.0
    %1073 = vmatprep.subr.mxu0 0.0
    %1074 = vmatpush2.msra.mxu0 0.0
    %1075 = vmatprep.subr.mxu0 0.0
    %1076 = vmatpush2.msra.mxu0 0.0
    %1077 = vmatprep.subr.mxu0 0.0
    %1078 = vmatpush2.msra.mxu0 0.0
    %1079 = vmatprep.subr.mxu0 0.0
    %1080 = vmatpush2.msra.mxu0 0.0
    %1081 = vmatprep.subr.mxu0 0.0
    %1082 = vmatpush2.msra.mxu0 0.0
    %1083 = vmatprep.subr.mxu0 0.0
    %1084 = vmatpush2.msra.mxu0 0.0
    %1085 = vmatprep.subr.mxu0 0.0
    %1086 = vmatpush2.msra.mxu0 0.0
    %1087 = vmatprep.subr.mxu0 0.0
    %1088 = vmatpush2.msra.mxu0 0.0
    %1089 = vmatprep.subr.mxu0 0.0
    %1090 = vmatpush2.msra.mxu0 0.0
    %1091 = vmatprep.subr.mxu0 0.0
    %1092 = vmatpush2.msra.mxu0 0.0
    %1093 = vmatprep.subr.mxu0 0.0
    %1094 = vmatpush2.msra.mxu0 0.0
    %1095 = vmatprep.subr.mxu0 0.0
    %1096 = vmatpush2.msra.mxu0 0.0
    %1097 = vmatprep.subr.mxu0 0.0
    %1098 = vmatpush2.msra.mxu0 0.0
    %1099 = vmatprep.mubr.f32.mxu0 0.0
    %1100 = vmatmul.mubr.f32.gmra.mxu0 %v1030
    %v1101 = vpop.f32.mrf.mxu0
    %v1102 = vadd.f32 %v1027, %v1101
    %v1103 = vpop.f32.mrf.mxu0
    %1104 = vmatprep.mubr.f32.mxu0 0.0
    %1105 = vmatmul.mubr.f32.gmra.mxu0 %v1033
    %v1106 = vpop.f32.mrf.mxu0
    %v1107 = vadd.f32 %v1027, %v1106
    %v1108 = vpop.f32.mrf.mxu0
    %1109 = vdwg.mxu0
    %v1110 = vmax.f32 %v1102, 0.0
    %v1111 = vmax.f32 %v1107, 0.0
    %v1112 = vpack.c.bf16 %v1111, %v1110
    %v1113 = vld [vmem:[#allocation10] sm:$0xf]
    %v1114 = vld [vmem:[#allocation10 + $0x4] sm:$0xf]
    %v1115 = vld [vmem:[#allocation10 + $0x8] sm:$0xf]
    %v1116 = vld [vmem:[#allocation10 + $0xc] sm:$0xf]
    %v1117 = vld [vmem:[#allocation10 + $0x10] sm:$0xf]
    %v1118 = vld [vmem:[#allocation10 + $0x14] sm:$0xf]
    %v1119 = vld [vmem:[#allocation10 + $0x18] sm:$0xf]
    %v1120 = vld [vmem:[#allocation10 + $0x1c] sm:$0xf]
    %v1121 = vld [vmem:[#allocation10 + $0x20] sm:$0xf]
    %v1122 = vld [vmem:[#allocation10 + $0x24] sm:$0xf]
    %v1123 = vld [vmem:[#allocation10 + $0x28] sm:$0xf]
    %v1124 = vld [vmem:[#allocation10 + $0x2c] sm:$0xf]
    %v1125 = vld [vmem:[#allocation10 + $0x30] sm:$0xf]
    %v1126 = vld [vmem:[#allocation10 + $0x34] sm:$0xf]
    %v1127 = vld [vmem:[#allocation10 + $0x38] sm:$0xf]
    %v1128 = vld [vmem:[#allocation10 + $0x3c] sm:$0xf]
    %v1145 = vunpack.c.l.b16 %v1113
    %v1146 = vunpack.c.l.b16 %v1114
    %v1147 = vunpack.c.l.b16 %v1115
    %v1148 = vunpack.c.l.b16 %v1116
    %v1149 = vunpack.c.l.b16 %v1117
    %v1150 = vunpack.c.l.b16 %v1118
    %v1151 = vunpack.c.l.b16 %v1119
    %v1152 = vunpack.c.l.b16 %v1120
    %v1153 = vunpack.c.l.b16 %v1121
    %v1154 = vunpack.c.l.b16 %v1122
    %v1155 = vunpack.c.l.b16 %v1123
    %v1156 = vunpack.c.l.b16 %v1124
    %v1157 = vunpack.c.l.b16 %v1125
    %v1158 = vunpack.c.l.b16 %v1126
    %v1159 = vunpack.c.l.b16 %v1127
    %v1160 = vunpack.c.l.b16 %v1128
    %v1161 = vpack.c.b16 %v1146, %v1145
    %v1162 = vpack.c.b16 %v1148, %v1147
    %v1163 = vpack.c.b16 %v1150, %v1149
    %v1164 = vpack.c.b16 %v1152, %v1151
    %v1165 = vpack.c.b16 %v1154, %v1153
    %v1166 = vpack.c.b16 %v1156, %v1155
    %v1167 = vpack.c.b16 %v1158, %v1157
    %v1168 = vpack.c.b16 %v1160, %v1159
    %1177 = vmatprep.subr.bf16.mxu0 0
    %1178 = vmatpush1.bf16.msra.mxu0 %v1168
    %1179 = vmatprep.subr.bf16.mxu0 0
    %1180 = vmatpush1.bf16.msra.mxu0 %v1167
    %1181 = vmatprep.subr.bf16.mxu0 0
    %1182 = vmatpush1.bf16.msra.mxu0 %v1166
    %1183 = vmatprep.subr.bf16.mxu0 0
    %1184 = vmatpush1.bf16.msra.mxu0 %v1165
    %1185 = vmatprep.subr.bf16.mxu0 0
    %1186 = vmatpush1.bf16.msra.mxu0 %v1164
    %1187 = vmatprep.subr.bf16.mxu0 0
    %1188 = vmatpush1.bf16.msra.mxu0 %v1163
    %1189 = vmatprep.subr.bf16.mxu0 0
    %1190 = vmatpush1.bf16.msra.mxu0 %v1162
    %1191 = vmatprep.subr.bf16.mxu0 0
    %1192 = vmatpush1.bf16.msra.mxu0 %v1161
    %1193 = vmatprep.subr.bf16.mxu0 0
    %1194 = vmatpush2.bf16.msra.mxu0 0
    %1195 = vmatprep.subr.bf16.mxu0 0
    %1196 = vmatpush2.bf16.msra.mxu0 0
    %1197 = vmatprep.subr.bf16.mxu0 0
    %1198 = vmatpush2.bf16.msra.mxu0 0
    %1199 = vmatprep.subr.bf16.mxu0 0
    %1200 = vmatpush2.bf16.msra.mxu0 0
    %1201 = vmatprep.subr.bf16.mxu0 0
    %1202 = vmatpush2.bf16.msra.mxu0 0
    %1203 = vmatprep.subr.bf16.mxu0 0
    %1204 = vmatpush2.bf16.msra.mxu0 0
    %1205 = vmatprep.subr.bf16.mxu0 0
    %1206 = vmatpush2.bf16.msra.mxu0 0
    %1207 = vmatprep.subr.bf16.mxu0 0
    %1208 = vmatpush2.bf16.msra.mxu0 0
    %1209 = vmatprep.mubr.bf16.mxu0 0
    %1210 = vmatmul.mubr.bf16.gmra.mxu0 %v1112
    %v1211 = vpop.f32.mrf.mxu0
    %v1212 = vadd.f32 0.0, %v1211
    %v1213 = vpop.f32.mrf.mxu0
    %v1214 = vpop.f32.mrf.mxu0
    %v1215 = vadd.f32 0.0, %v1214
    %v1216 = vpop.f32.mrf.mxu0
    %1217 = vdwg.mxu0
    %s1218 = scalar_lea.vmem [#allocation10], 64
    %v1219 = vld [vmem:[%s1218] sm:$0xf]
    %v1220 = vld [vmem:[%s1218 + $0x4] sm:$0xf]
    %v1221 = vld [vmem:[%s1218 + $0x8] sm:$0xf]
    %v1222 = vld [vmem:[%s1218 + $0xc] sm:$0xf]
    %v1223 = vld [vmem:[%s1218 + $0x10] sm:$0xf]
    %v1224 = vld [vmem:[%s1218 + $0x14] sm:$0xf]
    %v1225 = vld [vmem:[%s1218 + $0x18] sm:$0xf]
    %v1226 = vld [vmem:[%s1218 + $0x1c] sm:$0xf]
    %v1227 = vld [vmem:[%s1218 + $0x20] sm:$0xf]
    %v1228 = vld [vmem:[%s1218 + $0x24] sm:$0xf]
    %v1229 = vld [vmem:[%s1218 + $0x28] sm:$0xf]
    %v1230 = vld [vmem:[%s1218 + $0x2c] sm:$0xf]
    %v1231 = vld [vmem:[%s1218 + $0x30] sm:$0xf]
    %v1232 = vld [vmem:[%s1218 + $0x34] sm:$0xf]
    %v1233 = vld [vmem:[%s1218 + $0x38] sm:$0xf]
    %v1234 = vld [vmem:[%s1218 + $0x3c] sm:$0xf]
    %v1251 = vunpack.c.l.b16 %v1219
    %v1252 = vunpack.c.l.b16 %v1220
    %v1253 = vunpack.c.l.b16 %v1221
    %v1254 = vunpack.c.l.b16 %v1222
    %v1255 = vunpack.c.l.b16 %v1223
    %v1256 = vunpack.c.l.b16 %v1224
    %v1257 = vunpack.c.l.b16 %v1225
    %v1258 = vunpack.c.l.b16 %v1226
    %v1259 = vunpack.c.l.b16 %v1227
    %v1260 = vunpack.c.l.b16 %v1228
    %v1261 = vunpack.c.l.b16 %v1229
    %v1262 = vunpack.c.l.b16 %v1230
    %v1263 = vunpack.c.l.b16 %v1231
    %v1264 = vunpack.c.l.b16 %v1232
    %v1265 = vunpack.c.l.b16 %v1233
    %v1266 = vunpack.c.l.b16 %v1234
    %v1267 = vpack.c.b16 %v1252, %v1251
    %v1268 = vpack.c.b16 %v1254, %v1253
    %v1269 = vpack.c.b16 %v1256, %v1255
    %v1270 = vpack.c.b16 %v1258, %v1257
    %v1271 = vpack.c.b16 %v1260, %v1259
    %v1272 = vpack.c.b16 %v1262, %v1261
    %v1273 = vpack.c.b16 %v1264, %v1263
    %v1274 = vpack.c.b16 %v1266, %v1265
    %1283 = vmatprep.subr.bf16.mxu0 0
    %1284 = vmatpush1.bf16.msra.mxu0 %v1274
    %1285 = vmatprep.subr.bf16.mxu0 0
    %1286 = vmatpush1.bf16.msra.mxu0 %v1273
    %1287 = vmatprep.subr.bf16.mxu0 0
    %1288 = vmatpush1.bf16.msra.mxu0 %v1272
    %1289 = vmatprep.subr.bf16.mxu0 0
    %1290 = vmatpush1.bf16.msra.mxu0 %v1271
    %1291 = vmatprep.subr.bf16.mxu0 0
    %1292 = vmatpush1.bf16.msra.mxu0 %v1270
    %1293 = vmatprep.subr.bf16.mxu0 0
    %1294 = vmatpush1.bf16.msra.mxu0 %v1269
    %1295 = vmatprep.subr.bf16.mxu0 0
    %1296 = vmatpush1.bf16.msra.mxu0 %v1268
    %1297 = vmatprep.subr.bf16.mxu0 0
    %1298 = vmatpush1.bf16.msra.mxu0 %v1267
    %1299 = vmatprep.subr.bf16.mxu0 0
    %1300 = vmatpush2.bf16.msra.mxu0 0
    %1301 = vmatprep.subr.bf16.mxu0 0
    %1302 = vmatpush2.bf16.msra.mxu0 0
    %1303 = vmatprep.subr.bf16.mxu0 0
    %1304 = vmatpush2.bf16.msra.mxu0 0
    %1305 = vmatprep.subr.bf16.mxu0 0
    %1306 = vmatpush2.bf16.msra.mxu0 0
    %1307 = vmatprep.subr.bf16.mxu0 0
    %1308 = vmatpush2.bf16.msra.mxu0 0
    %1309 = vmatprep.subr.bf16.mxu0 0
    %1310 = vmatpush2.bf16.msra.mxu0 0
    %1311 = vmatprep.subr.bf16.mxu0 0
    %1312 = vmatpush2.bf16.msra.mxu0 0
    %1313 = vmatprep.subr.bf16.mxu0 0
    %1314 = vmatpush2.bf16.msra.mxu0 0
    %1315 = vmatprep.mubr.bf16.mxu0 0
    %1316 = vmatmul.mubr.bf16.gmra.mxu0 %v1112
    %v1317 = vpop.f32.mrf.mxu0
    %v1318 = vadd.f32 0.0, %v1317
    %v1319 = vpop.f32.mrf.mxu0
    %v1320 = vpop.f32.mrf.mxu0
    %v1321 = vadd.f32 0.0, %v1320
    %v1322 = vpop.f32.mrf.mxu0
    %1323 = vdwg.mxu0
    %s1324 = scalar_lea.vmem [#allocation10], 128
    %v1325 = vld [vmem:[%s1324] sm:$0xf]
    %v1326 = vld [vmem:[%s1324 + $0x4] sm:$0xf]
    %v1327 = vld [vmem:[%s1324 + $0x8] sm:$0xf]
    %v1328 = vld [vmem:[%s1324 + $0xc] sm:$0xf]
    %v1329 = vld [vmem:[%s1324 + $0x10] sm:$0xf]
    %v1330 = vld [vmem:[%s1324 + $0x14] sm:$0xf]
    %v1331 = vld [vmem:[%s1324 + $0x18] sm:$0xf]
    %v1332 = vld [vmem:[%s1324 + $0x1c] sm:$0xf]
    %v1333 = vld [vmem:[%s1324 + $0x20] sm:$0xf]
    %v1334 = vld [vmem:[%s1324 + $0x24] sm:$0xf]
    %v1335 = vld [vmem:[%s1324 + $0x28] sm:$0xf]
    %v1336 = vld [vmem:[%s1324 + $0x2c] sm:$0xf]
    %v1337 = vld [vmem:[%s1324 + $0x30] sm:$0xf]
    %v1338 = vld [vmem:[%s1324 + $0x34] sm:$0xf]
    %v1339 = vld [vmem:[%s1324 + $0x38] sm:$0xf]
    %v1340 = vld [vmem:[%s1324 + $0x3c] sm:$0xf]
    %v1357 = vunpack.c.l.b16 %v1325
    %v1358 = vunpack.c.l.b16 %v1326
    %v1359 = vunpack.c.l.b16 %v1327
    %v1360 = vunpack.c.l.b16 %v1328
    %v1361 = vunpack.c.l.b16 %v1329
    %v1362 = vunpack.c.l.b16 %v1330
    %v1363 = vunpack.c.l.b16 %v1331
    %v1364 = vunpack.c.l.b16 %v1332
    %v1365 = vunpack.c.l.b16 %v1333
    %v1366 = vunpack.c.l.b16 %v1334
    %v1367 = vunpack.c.l.b16 %v1335
    %v1368 = vunpack.c.l.b16 %v1336
    %v1369 = vunpack.c.l.b16 %v1337
    %v1370 = vunpack.c.l.b16 %v1338
    %v1371 = vunpack.c.l.b16 %v1339
    %v1372 = vunpack.c.l.b16 %v1340
    %v1373 = vpack.c.b16 %v1358, %v1357
    %v1374 = vpack.c.b16 %v1360, %v1359
    %v1375 = vpack.c.b16 %v1362, %v1361
    %v1376 = vpack.c.b16 %v1364, %v1363
    %v1377 = vpack.c.b16 %v1366, %v1365
    %v1378 = vpack.c.b16 %v1368, %v1367
    %v1379 = vpack.c.b16 %v1370, %v1369
    %v1380 = vpack.c.b16 %v1372, %v1371
    %1389 = vmatprep.subr.bf16.mxu0 0
    %1390 = vmatpush1.bf16.msra.mxu0 %v1380
    %1391 = vmatprep.subr.bf16.mxu0 0
    %1392 = vmatpush1.bf16.msra.mxu0 %v1379
    %1393 = vmatprep.subr.bf16.mxu0 0
    %1394 = vmatpush1.bf16.msra.mxu0 %v1378
    %1395 = vmatprep.subr.bf16.mxu0 0
    %1396 = vmatpush1.bf16.msra.mxu0 %v1377
    %1397 = vmatprep.subr.bf16.mxu0 0
    %1398 = vmatpush1.bf16.msra.mxu0 %v1376
    %1399 = vmatprep.subr.bf16.mxu0 0
    %1400 = vmatpush1.bf16.msra.mxu0 %v1375
    %1401 = vmatprep.subr.bf16.mxu0 0
    %1402 = vmatpush1.bf16.msra.mxu0 %v1374
    %1403 = vmatprep.subr.bf16.mxu0 0
    %1404 = vmatpush1.bf16.msra.mxu0 %v1373
    %1405 = vmatprep.subr.bf16.mxu0 0
    %1406 = vmatpush2.bf16.msra.mxu0 0
    %1407 = vmatprep.subr.bf16.mxu0 0
    %1408 = vmatpush2.bf16.msra.mxu0 0
    %1409 = vmatprep.subr.bf16.mxu0 0
    %1410 = vmatpush2.bf16.msra.mxu0 0
    %1411 = vmatprep.subr.bf16.mxu0 0
    %1412 = vmatpush2.bf16.msra.mxu0 0
    %1413 = vmatprep.subr.bf16.mxu0 0
    %1414 = vmatpush2.bf16.msra.mxu0 0
    %1415 = vmatprep.subr.bf16.mxu0 0
    %1416 = vmatpush2.bf16.msra.mxu0 0
    %1417 = vmatprep.subr.bf16.mxu0 0
    %1418 = vmatpush2.bf16.msra.mxu0 0
    %1419 = vmatprep.subr.bf16.mxu0 0
    %1420 = vmatpush2.bf16.msra.mxu0 0
    %1421 = vmatprep.mubr.bf16.mxu0 0
    %1422 = vmatmul.mubr.bf16.gmra.mxu0 %v1112
    %v1423 = vpop.f32.mrf.mxu0
    %v1424 = vadd.f32 0.0, %v1423
    %v1425 = vpop.f32.mrf.mxu0
    %v1426 = vpop.f32.mrf.mxu0
    %v1427 = vadd.f32 0.0, %v1426
    %v1428 = vpop.f32.mrf.mxu0
    %1429 = vdwg.mxu0
    %v1430 = vld [vmem:[#allocation9] sm:$0xff]
    %v1431 = vld [vmem:[#allocation9 + $0x8] sm:$0xff]
    %v1432 = vld [vmem:[#allocation12] sm:$0x1]
    %v1434 = vlaneseq
    %v1435 = vshrl.u32 %v1434, 7
    %v1436 = vsub.s32 0, %v1435
    %v1437 = vrot.slane %v1432, %v1436
    %v1440 = vsel %vm618, %v1430, 0
    %v1443 = vsel %vm618, %v1431, 0
    %1445 = vmatprep.subr.mxu0 0.0
    %1446 = vmatpush1.msra.mxu0 0.0
    %1447 = vmatprep.subr.mxu0 0.0
    %1448 = vmatpush1.msra.mxu0 0.0
    %1449 = vmatprep.subr.mxu0 0.0
    %1450 = vmatpush1.msra.mxu0 0.0
    %1451 = vmatprep.subr.mxu0 0.0
    %1452 = vmatpush1.msra.mxu0 0.0
    %1453 = vmatprep.subr.mxu0 0.0
    %1454 = vmatpush1.msra.mxu0 0.0
    %1455 = vmatprep.subr.mxu0 0.0
    %1456 = vmatpush1.msra.mxu0 0.0
    %1457 = vmatprep.subr.mxu0 0.0
    %1458 = vmatpush1.msra.mxu0 0.0
    %1459 = vmatprep.subr.mxu0 0.0
    %1460 = vmatpush1.msra.mxu0 0.0
    %1461 = vmatprep.subr.mxu0 0.0
    %1462 = vmatpush1.msra.mxu0 0.0
    %1463 = vmatprep.subr.mxu0 0.0
    %1464 = vmatpush1.msra.mxu0 0.0
    %1465 = vmatprep.subr.mxu0 0.0
    %1466 = vmatpush1.msra.mxu0 %v1427
    %1467 = vmatprep.subr.mxu0 0.0
    %1468 = vmatpush1.msra.mxu0 %v1424
    %1469 = vmatprep.subr.mxu0 0.0
    %1470 = vmatpush1.msra.mxu0 %v1321
    %1471 = vmatprep.subr.mxu0 0.0
    %1472 = vmatpush1.msra.mxu0 %v1318
    %1473 = vmatprep.subr.mxu0 0.0
    %1474 = vmatpush1.msra.mxu0 %v1215
    %1475 = vmatprep.subr.mxu0 0.0
    %1476 = vmatpush1.msra.mxu0 %v1212
    %1477 = vmatprep.subr.mxu0 0.0
    %1478 = vmatpush2.msra.mxu0 0.0
    %1479 = vmatprep.subr.mxu0 0.0
    %1480 = vmatpush2.msra.mxu0 0.0
    %1481 = vmatprep.subr.mxu0 0.0
    %1482 = vmatpush2.msra.mxu0 0.0
    %1483 = vmatprep.subr.mxu0 0.0
    %1484 = vmatpush2.msra.mxu0 0.0
    %1485 = vmatprep.subr.mxu0 0.0
    %1486 = vmatpush2.msra.mxu0 0.0
    %1487 = vmatprep.subr.mxu0 0.0
    %1488 = vmatpush2.msra.mxu0 0.0
    %1489 = vmatprep.subr.mxu0 0.0
    %1490 = vmatpush2.msra.mxu0 0.0
    %1491 = vmatprep.subr.mxu0 0.0
    %1492 = vmatpush2.msra.mxu0 0.0
    %1493 = vmatprep.subr.mxu0 0.0
    %1494 = vmatpush2.msra.mxu0 0.0
    %1495 = vmatprep.subr.mxu0 0.0
    %1496 = vmatpush2.msra.mxu0 0.0
    %1497 = vmatprep.subr.mxu0 0.0
    %1498 = vmatpush2.msra.mxu0 0.0
    %1499 = vmatprep.subr.mxu0 0.0
    %1500 = vmatpush2.msra.mxu0 0.0
    %1501 = vmatprep.subr.mxu0 0.0
    %1502 = vmatpush2.msra.mxu0 0.0
    %1503 = vmatprep.subr.mxu0 0.0
    %1504 = vmatpush2.msra.mxu0 0.0
    %1505 = vmatprep.subr.mxu0 0.0
    %1506 = vmatpush2.msra.mxu0 0.0
    %1507 = vmatprep.subr.mxu0 0.0
    %1508 = vmatpush2.msra.mxu0 0.0
    %1509 = vmatprep.mubr.f32.mxu0 0.0
    %1510 = vmatmul.mubr.f32.gmra.mxu0 %v1440
    %v1511 = vpop.f32.mrf.mxu0
    %v1512 = vadd.f32 %v1437, %v1511
    %v1513 = vpop.f32.mrf.mxu0
    %1514 = vmatprep.mubr.f32.mxu0 0.0
    %1515 = vmatmul.mubr.f32.gmra.mxu0 %v1443
    %v1516 = vpop.f32.mrf.mxu0
    %v1517 = vadd.f32 %v1437, %v1516
    %v1518 = vpop.f32.mrf.mxu0
    %1519 = vdwg.mxu0
    %v1520 = vadd.f32 %v1512, %v700
    %v1521 = vadd.f32 %v1517, %v701
    %v1522 = vmax.f32 %v1520, 0.0
    %v1523 = vmax.f32 %v1521, 0.0
    %v1524 = vpack.c.bf16 %v1523, %v1522
    %v1525 = vld [vmem:[#allocation15] sm:$0xf]
    %v1526 = vld [vmem:[#allocation15 + $0x4] sm:$0xf]
    %v1527 = vld [vmem:[#allocation15 + $0x8] sm:$0xf]
    %v1528 = vld [vmem:[#allocation15 + $0xc] sm:$0xf]
    %v1529 = vld [vmem:[#allocation15 + $0x10] sm:$0xf]
    %v1530 = vld [vmem:[#allocation15 + $0x14] sm:$0xf]
    %v1531 = vld [vmem:[#allocation15 + $0x18] sm:$0xf]
    %v1532 = vld [vmem:[#allocation15 + $0x1c] sm:$0xf]
    %v1533 = vld [vmem:[#allocation15 + $0x20] sm:$0xf]
    %v1534 = vld [vmem:[#allocation15 + $0x24] sm:$0xf]
    %v1535 = vld [vmem:[#allocation15 + $0x28] sm:$0xf]
    %v1536 = vld [vmem:[#allocation15 + $0x2c] sm:$0xf]
    %v1537 = vld [vmem:[#allocation15 + $0x30] sm:$0xf]
    %v1538 = vld [vmem:[#allocation15 + $0x34] sm:$0xf]
    %v1539 = vld [vmem:[#allocation15 + $0x38] sm:$0xf]
    %v1540 = vld [vmem:[#allocation15 + $0x3c] sm:$0xf]
    %v1557 = vunpack.c.l.b16 %v1525
    %v1558 = vunpack.c.l.b16 %v1526
    %v1559 = vunpack.c.l.b16 %v1527
    %v1560 = vunpack.c.l.b16 %v1528
    %v1561 = vunpack.c.l.b16 %v1529
    %v1562 = vunpack.c.l.b16 %v1530
    %v1563 = vunpack.c.l.b16 %v1531
    %v1564 = vunpack.c.l.b16 %v1532
    %v1565 = vunpack.c.l.b16 %v1533
    %v1566 = vunpack.c.l.b16 %v1534
    %v1567 = vunpack.c.l.b16 %v1535
    %v1568 = vunpack.c.l.b16 %v1536
    %v1569 = vunpack.c.l.b16 %v1537
    %v1570 = vunpack.c.l.b16 %v1538
    %v1571 = vunpack.c.l.b16 %v1539
    %v1572 = vunpack.c.l.b16 %v1540
    %v1573 = vpack.c.b16 %v1558, %v1557
    %v1574 = vpack.c.b16 %v1560, %v1559
    %v1575 = vpack.c.b16 %v1562, %v1561
    %v1576 = vpack.c.b16 %v1564, %v1563
    %v1577 = vpack.c.b16 %v1566, %v1565
    %v1578 = vpack.c.b16 %v1568, %v1567
    %v1579 = vpack.c.b16 %v1570, %v1569
    %v1580 = vpack.c.b16 %v1572, %v1571
    %1589 = vmatprep.subr.bf16.mxu0 0
    %1590 = vmatpush1.bf16.msra.mxu0 %v1580
    %1591 = vmatprep.subr.bf16.mxu0 0
    %1592 = vmatpush1.bf16.msra.mxu0 %v1579
    %1593 = vmatprep.subr.bf16.mxu0 0
    %1594 = vmatpush1.bf16.msra.mxu0 %v1578
    %1595 = vmatprep.subr.bf16.mxu0 0
    %1596 = vmatpush1.bf16.msra.mxu0 %v1577
    %1597 = vmatprep.subr.bf16.mxu0 0
    %1598 = vmatpush1.bf16.msra.mxu0 %v1576
    %1599 = vmatprep.subr.bf16.mxu0 0
    %1600 = vmatpush1.bf16.msra.mxu0 %v1575
    %1601 = vmatprep.subr.bf16.mxu0 0
    %1602 = vmatpush1.bf16.msra.mxu0 %v1574
    %1603 = vmatprep.subr.bf16.mxu0 0
    %1604 = vmatpush1.bf16.msra.mxu0 %v1573
    %1605 = vmatprep.subr.bf16.mxu0 0
    %1606 = vmatpush2.bf16.msra.mxu0 0
    %1607 = vmatprep.subr.bf16.mxu0 0
    %1608 = vmatpush2.bf16.msra.mxu0 0
    %1609 = vmatprep.subr.bf16.mxu0 0
    %1610 = vmatpush2.bf16.msra.mxu0 0
    %1611 = vmatprep.subr.bf16.mxu0 0
    %1612 = vmatpush2.bf16.msra.mxu0 0
    %1613 = vmatprep.subr.bf16.mxu0 0
    %1614 = vmatpush2.bf16.msra.mxu0 0
    %1615 = vmatprep.subr.bf16.mxu0 0
    %1616 = vmatpush2.bf16.msra.mxu0 0
    %1617 = vmatprep.subr.bf16.mxu0 0
    %1618 = vmatpush2.bf16.msra.mxu0 0
    %1619 = vmatprep.subr.bf16.mxu0 0
    %1620 = vmatpush2.bf16.msra.mxu0 0
    %1621 = vmatprep.mubr.bf16.mxu0 0
    %1622 = vmatmul.mubr.bf16.gmra.mxu0 %v1524
    %v1623 = vpop.f32.mrf.mxu0
    %v1624 = vadd.f32 0.0, %v1623
    %v1625 = vpop.f32.mrf.mxu0
    %v1626 = vpop.f32.mrf.mxu0
    %v1627 = vadd.f32 0.0, %v1626
    %v1628 = vpop.f32.mrf.mxu0
    %1629 = vdwg.mxu0
    %s1630 = scalar_lea.vmem [#allocation15], 64
    %v1631 = vld [vmem:[%s1630] sm:$0xf]
    %v1632 = vld [vmem:[%s1630 + $0x4] sm:$0xf]
    %v1633 = vld [vmem:[%s1630 + $0x8] sm:$0xf]
    %v1634 = vld [vmem:[%s1630 + $0xc] sm:$0xf]
    %v1635 = vld [vmem:[%s1630 + $0x10] sm:$0xf]
    %v1636 = vld [vmem:[%s1630 + $0x14] sm:$0xf]
    %v1637 = vld [vmem:[%s1630 + $0x18] sm:$0xf]
    %v1638 = vld [vmem:[%s1630 + $0x1c] sm:$0xf]
    %v1639 = vld [vmem:[%s1630 + $0x20] sm:$0xf]
    %v1640 = vld [vmem:[%s1630 + $0x24] sm:$0xf]
    %v1641 = vld [vmem:[%s1630 + $0x28] sm:$0xf]
    %v1642 = vld [vmem:[%s1630 + $0x2c] sm:$0xf]
    %v1643 = vld [vmem:[%s1630 + $0x30] sm:$0xf]
    %v1644 = vld [vmem:[%s1630 + $0x34] sm:$0xf]
    %v1645 = vld [vmem:[%s1630 + $0x38] sm:$0xf]
    %v1646 = vld [vmem:[%s1630 + $0x3c] sm:$0xf]
    %v1663 = vunpack.c.l.b16 %v1631
    %v1664 = vunpack.c.l.b16 %v1632
    %v1665 = vunpack.c.l.b16 %v1633
    %v1666 = vunpack.c.l.b16 %v1634
    %v1667 = vunpack.c.l.b16 %v1635
    %v1668 = vunpack.c.l.b16 %v1636
    %v1669 = vunpack.c.l.b16 %v1637
    %v1670 = vunpack.c.l.b16 %v1638
    %v1671 = vunpack.c.l.b16 %v1639
    %v1672 = vunpack.c.l.b16 %v1640
    %v1673 = vunpack.c.l.b16 %v1641
    %v1674 = vunpack.c.l.b16 %v1642
    %v1675 = vunpack.c.l.b16 %v1643
    %v1676 = vunpack.c.l.b16 %v1644
    %v1677 = vunpack.c.l.b16 %v1645
    %v1678 = vunpack.c.l.b16 %v1646
    %v1679 = vpack.c.b16 %v1664, %v1663
    %v1680 = vpack.c.b16 %v1666, %v1665
    %v1681 = vpack.c.b16 %v1668, %v1667
    %v1682 = vpack.c.b16 %v1670, %v1669
    %v1683 = vpack.c.b16 %v1672, %v1671
    %v1684 = vpack.c.b16 %v1674, %v1673
    %v1685 = vpack.c.b16 %v1676, %v1675
    %v1686 = vpack.c.b16 %v1678, %v1677
    %1695 = vmatprep.subr.bf16.mxu0 0
    %1696 = vmatpush1.bf16.msra.mxu0 %v1686
    %1697 = vmatprep.subr.bf16.mxu0 0
    %1698 = vmatpush1.bf16.msra.mxu0 %v1685
    %1699 = vmatprep.subr.bf16.mxu0 0
    %1700 = vmatpush1.bf16.msra.mxu0 %v1684
    %1701 = vmatprep.subr.bf16.mxu0 0
    %1702 = vmatpush1.bf16.msra.mxu0 %v1683
    %1703 = vmatprep.subr.bf16.mxu0 0
    %1704 = vmatpush1.bf16.msra.mxu0 %v1682
    %1705 = vmatprep.subr.bf16.mxu0 0
    %1706 = vmatpush1.bf16.msra.mxu0 %v1681
    %1707 = vmatprep.subr.bf16.mxu0 0
    %1708 = vmatpush1.bf16.msra.mxu0 %v1680
    %1709 = vmatprep.subr.bf16.mxu0 0
    %1710 = vmatpush1.bf16.msra.mxu0 %v1679
    %1711 = vmatprep.subr.bf16.mxu0 0
    %1712 = vmatpush2.bf16.msra.mxu0 0
    %1713 = vmatprep.subr.bf16.mxu0 0
    %1714 = vmatpush2.bf16.msra.mxu0 0
    %1715 = vmatprep.subr.bf16.mxu0 0
    %1716 = vmatpush2.bf16.msra.mxu0 0
    %1717 = vmatprep.subr.bf16.mxu0 0
    %1718 = vmatpush2.bf16.msra.mxu0 0
    %1719 = vmatprep.subr.bf16.mxu0 0
    %1720 = vmatpush2.bf16.msra.mxu0 0
    %1721 = vmatprep.subr.bf16.mxu0 0
    %1722 = vmatpush2.bf16.msra.mxu0 0
    %1723 = vmatprep.subr.bf16.mxu0 0
    %1724 = vmatpush2.bf16.msra.mxu0 0
    %1725 = vmatprep.subr.bf16.mxu0 0
    %1726 = vmatpush2.bf16.msra.mxu0 0
    %1727 = vmatprep.mubr.bf16.mxu0 0
    %1728 = vmatmul.mubr.bf16.gmra.mxu0 %v1524
    %v1729 = vpop.f32.mrf.mxu0
    %v1730 = vadd.f32 0.0, %v1729
    %v1731 = vpop.f32.mrf.mxu0
    %v1732 = vpop.f32.mrf.mxu0
    %v1733 = vadd.f32 0.0, %v1732
    %v1734 = vpop.f32.mrf.mxu0
    %1735 = vdwg.mxu0
    %s1736 = scalar_lea.vmem [#allocation15], 128
    %v1737 = vld [vmem:[%s1736] sm:$0xf]
    %v1738 = vld [vmem:[%s1736 + $0x4] sm:$0xf]
    %v1739 = vld [vmem:[%s1736 + $0x8] sm:$0xf]
    %v1740 = vld [vmem:[%s1736 + $0xc] sm:$0xf]
    %v1741 = vld [vmem:[%s1736 + $0x10] sm:$0xf]
    %v1742 = vld [vmem:[%s1736 + $0x14] sm:$0xf]
    %v1743 = vld [vmem:[%s1736 + $0x18] sm:$0xf]
    %v1744 = vld [vmem:[%s1736 + $0x1c] sm:$0xf]
    %v1745 = vld [vmem:[%s1736 + $0x20] sm:$0xf]
    %v1746 = vld [vmem:[%s1736 + $0x24] sm:$0xf]
    %v1747 = vld [vmem:[%s1736 + $0x28] sm:$0xf]
    %v1748 = vld [vmem:[%s1736 + $0x2c] sm:$0xf]
    %v1749 = vld [vmem:[%s1736 + $0x30] sm:$0xf]
    %v1750 = vld [vmem:[%s1736 + $0x34] sm:$0xf]
    %v1751 = vld [vmem:[%s1736 + $0x38] sm:$0xf]
    %v1752 = vld [vmem:[%s1736 + $0x3c] sm:$0xf]
    %v1769 = vunpack.c.l.b16 %v1737
    %v1770 = vunpack.c.l.b16 %v1738
    %v1771 = vunpack.c.l.b16 %v1739
    %v1772 = vunpack.c.l.b16 %v1740
    %v1773 = vunpack.c.l.b16 %v1741
    %v1774 = vunpack.c.l.b16 %v1742
    %v1775 = vunpack.c.l.b16 %v1743
    %v1776 = vunpack.c.l.b16 %v1744
    %v1777 = vunpack.c.l.b16 %v1745
    %v1778 = vunpack.c.l.b16 %v1746
    %v1779 = vunpack.c.l.b16 %v1747
    %v1780 = vunpack.c.l.b16 %v1748
    %v1781 = vunpack.c.l.b16 %v1749
    %v1782 = vunpack.c.l.b16 %v1750
    %v1783 = vunpack.c.l.b16 %v1751
    %v1784 = vunpack.c.l.b16 %v1752
    %v1785 = vpack.c.b16 %v1770, %v1769
    %v1786 = vpack.c.b16 %v1772, %v1771
    %v1787 = vpack.c.b16 %v1774, %v1773
    %v1788 = vpack.c.b16 %v1776, %v1775
    %v1789 = vpack.c.b16 %v1778, %v1777
    %v1790 = vpack.c.b16 %v1780, %v1779
    %v1791 = vpack.c.b16 %v1782, %v1781
    %v1792 = vpack.c.b16 %v1784, %v1783
    %1801 = vmatprep.subr.bf16.mxu0 0
    %1802 = vmatpush1.bf16.msra.mxu0 %v1792
    %1803 = vmatprep.subr.bf16.mxu0 0
    %1804 = vmatpush1.bf16.msra.mxu0 %v1791
    %1805 = vmatprep.subr.bf16.mxu0 0
    %1806 = vmatpush1.bf16.msra.mxu0 %v1790
    %1807 = vmatprep.subr.bf16.mxu0 0
    %1808 = vmatpush1.bf16.msra.mxu0 %v1789
    %1809 = vmatprep.subr.bf16.mxu0 0
    %1810 = vmatpush1.bf16.msra.mxu0 %v1788
    %1811 = vmatprep.subr.bf16.mxu0 0
    %1812 = vmatpush1.bf16.msra.mxu0 %v1787
    %1813 = vmatprep.subr.bf16.mxu0 0
    %1814 = vmatpush1.bf16.msra.mxu0 %v1786
    %1815 = vmatprep.subr.bf16.mxu0 0
    %1816 = vmatpush1.bf16.msra.mxu0 %v1785
    %1817 = vmatprep.subr.bf16.mxu0 0
    %1818 = vmatpush2.bf16.msra.mxu0 0
    %1819 = vmatprep.subr.bf16.mxu0 0
    %1820 = vmatpush2.bf16.msra.mxu0 0
    %1821 = vmatprep.subr.bf16.mxu0 0
    %1822 = vmatpush2.bf16.msra.mxu0 0
    %1823 = vmatprep.subr.bf16.mxu0 0
    %1824 = vmatpush2.bf16.msra.mxu0 0
    %1825 = vmatprep.subr.bf16.mxu0 0
    %1826 = vmatpush2.bf16.msra.mxu0 0
    %1827 = vmatprep.subr.bf16.mxu0 0
    %1828 = vmatpush2.bf16.msra.mxu0 0
    %1829 = vmatprep.subr.bf16.mxu0 0
    %1830 = vmatpush2.bf16.msra.mxu0 0
    %1831 = vmatprep.subr.bf16.mxu0 0
    %1832 = vmatpush2.bf16.msra.mxu0 0
    %1833 = vmatprep.mubr.bf16.mxu0 0
    %1834 = vmatmul.mubr.bf16.gmra.mxu0 %v1524
    %v1835 = vpop.f32.mrf.mxu0
    %v1836 = vadd.f32 0.0, %v1835
    %v1837 = vpop.f32.mrf.mxu0
    %v1838 = vpop.f32.mrf.mxu0
    %v1839 = vadd.f32 0.0, %v1838
    %v1840 = vpop.f32.mrf.mxu0
    %1841 = vdwg.mxu0
    %v1842 = vld [vmem:[#allocation13] sm:$0xff]
    %v1843 = vld [vmem:[#allocation16] sm:$0x1]
    %v1845 = vlaneseq
    %v1846 = vshrl.u32 %v1845, 7
    %v1847 = vsub.s32 0, %v1846
    %v1848 = vrot.slane %v1843, %v1847
    %v1851 = vsel %vm618, %v1842, 0
    %1853 = vmatprep.subr.mxu0 0.0
    %1854 = vmatpush1.msra.mxu0 0.0
    %1855 = vmatprep.subr.mxu0 0.0
    %1856 = vmatpush1.msra.mxu0 0.0
    %1857 = vmatprep.subr.mxu0 0.0
    %1858 = vmatpush1.msra.mxu0 0.0
    %1859 = vmatprep.subr.mxu0 0.0
    %1860 = vmatpush1.msra.mxu0 0.0
    %1861 = vmatprep.subr.mxu0 0.0
    %1862 = vmatpush1.msra.mxu0 0.0
    %1863 = vmatprep.subr.mxu0 0.0
    %1864 = vmatpush1.msra.mxu0 0.0
    %1865 = vmatprep.subr.mxu0 0.0
    %1866 = vmatpush1.msra.mxu0 0.0
    %1867 = vmatprep.subr.mxu0 0.0
    %1868 = vmatpush1.msra.mxu0 0.0
    %1869 = vmatprep.subr.mxu0 0.0
    %1870 = vmatpush1.msra.mxu0 0.0
    %1871 = vmatprep.subr.mxu0 0.0
    %1872 = vmatpush1.msra.mxu0 0.0
    %1873 = vmatprep.subr.mxu0 0.0
    %1874 = vmatpush1.msra.mxu0 %v1839
    %1875 = vmatprep.subr.mxu0 0.0
    %1876 = vmatpush1.msra.mxu0 %v1836
    %1877 = vmatprep.subr.mxu0 0.0
    %1878 = vmatpush1.msra.mxu0 %v1733
    %1879 = vmatprep.subr.mxu0 0.0
    %1880 = vmatpush1.msra.mxu0 %v1730
    %1881 = vmatprep.subr.mxu0 0.0
    %1882 = vmatpush1.msra.mxu0 %v1627
    %1883 = vmatprep.subr.mxu0 0.0
    %1884 = vmatpush1.msra.mxu0 %v1624
    %1885 = vmatprep.subr.mxu0 0.0
    %1886 = vmatpush2.msra.mxu0 0.0
    %1887 = vmatprep.subr.mxu0 0.0
    %1888 = vmatpush2.msra.mxu0 0.0
    %1889 = vmatprep.subr.mxu0 0.0
    %1890 = vmatpush2.msra.mxu0 0.0
    %1891 = vmatprep.subr.mxu0 0.0
    %1892 = vmatpush2.msra.mxu0 0.0
    %1893 = vmatprep.subr.mxu0 0.0
    %1894 = vmatpush2.msra.mxu0 0.0
    %1895 = vmatprep.subr.mxu0 0.0
    %1896 = vmatpush2.msra.mxu0 0.0
    %1897 = vmatprep.subr.mxu0 0.0
    %1898 = vmatpush2.msra.mxu0 0.0
    %1899 = vmatprep.subr.mxu0 0.0
    %1900 = vmatpush2.msra.mxu0 0.0
    %1901 = vmatprep.subr.mxu0 0.0
    %1902 = vmatpush2.msra.mxu0 0.0
    %1903 = vmatprep.subr.mxu0 0.0
    %1904 = vmatpush2.msra.mxu0 0.0
    %1905 = vmatprep.subr.mxu0 0.0
    %1906 = vmatpush2.msra.mxu0 0.0
    %1907 = vmatprep.subr.mxu0 0.0
    %1908 = vmatpush2.msra.mxu0 0.0
    %1909 = vmatprep.subr.mxu0 0.0
    %1910 = vmatpush2.msra.mxu0 0.0
    %1911 = vmatprep.subr.mxu0 0.0
    %1912 = vmatpush2.msra.mxu0 0.0
    %1913 = vmatprep.subr.mxu0 0.0
    %1914 = vmatpush2.msra.mxu0 0.0
    %1915 = vmatprep.subr.mxu0 0.0
    %1916 = vmatpush2.msra.mxu0 0.0
    %1917 = vmatprep.mubr.f32.mxu0 0.0
    %1918 = vmatmul.mubr.f32.gmra.mxu0 %v1851
    %v1919 = vpop.f32.mrf.mxu0
    %v1920 = vadd.f32 %v1848, %v1919
    %v1921 = vpop.f32.mrf.mxu0
    %1922 = vdwg.mxu0
    %v1923 = vmax.f32 %v1920, 0.0
    %v1924 = vld [vmem:[#allocation18] sm:$0xff]
    %vm1925 = vcmask 130048
    %v1927 = vsel %vm1925, %v1924, 0
    %1929 = vmatprep.subr.mxu0 0.0
    %1930 = vmatpush1.msra.mxu0 0.0
    %1931 = vmatprep.subr.mxu0 0.0
    %1932 = vmatpush1.msra.mxu0 0.0
    %1933 = vmatprep.subr.mxu0 0.0
    %1934 = vmatpush1.msra.mxu0 0.0
    %1935 = vmatprep.subr.mxu0 0.0
    %1936 = vmatpush1.msra.mxu0 0.0
    %1937 = vmatprep.subr.mxu0 0.0
    %1938 = vmatpush1.msra.mxu0 0.0
    %1939 = vmatprep.subr.mxu0 0.0
    %1940 = vmatpush1.msra.mxu0 0.0
    %1941 = vmatprep.subr.mxu0 0.0
    %1942 = vmatpush1.msra.mxu0 0.0
    %1943 = vmatprep.subr.mxu0 0.0
    %1944 = vmatpush1.msra.mxu0 0.0
    %1945 = vmatprep.subr.mxu0 0.0
    %1946 = vmatpush1.msra.mxu0 0.0
    %1947 = vmatprep.subr.mxu0 0.0
    %1948 = vmatpush1.msra.mxu0 0.0
    %1949 = vmatprep.subr.mxu0 0.0
    %1950 = vmatpush1.msra.mxu0 0.0
    %1951 = vmatprep.subr.mxu0 0.0
    %1952 = vmatpush1.msra.mxu0 0.0
    %1953 = vmatprep.subr.mxu0 0.0
    %1954 = vmatpush1.msra.mxu0 0.0
    %1955 = vmatprep.subr.mxu0 0.0
    %1956 = vmatpush1.msra.mxu0 0.0
    %1957 = vmatprep.subr.mxu0 0.0
    %1958 = vmatpush1.msra.mxu0 %v1523
    %1959 = vmatprep.subr.mxu0 0.0
    %1960 = vmatpush1.msra.mxu0 %v1522
    %1961 = vmatprep.subr.mxu0 0.0
    %1962 = vmatpush2.msra.mxu0 0.0
    %1963 = vmatprep.subr.mxu0 0.0
    %1964 = vmatpush2.msra.mxu0 0.0
    %1965 = vmatprep.subr.mxu0 0.0
    %1966 = vmatpush2.msra.mxu0 0.0
    %1967 = vmatprep.subr.mxu0 0.0
    %1968 = vmatpush2.msra.mxu0 0.0
    %1969 = vmatprep.subr.mxu0 0.0
    %1970 = vmatpush2.msra.mxu0 0.0
    %1971 = vmatprep.subr.mxu0 0.0
    %1972 = vmatpush2.msra.mxu0 0.0
    %1973 = vmatprep.subr.mxu0 0.0
    %1974 = vmatpush2.msra.mxu0 0.0
    %1975 = vmatprep.subr.mxu0 0.0
    %1976 = vmatpush2.msra.mxu0 0.0
    %1977 = vmatprep.subr.mxu0 0.0
    %1978 = vmatpush2.msra.mxu0 0.0
    %1979 = vmatprep.subr.mxu0 0.0
    %1980 = vmatpush2.msra.mxu0 0.0
    %1981 = vmatprep.subr.mxu0 0.0
    %1982 = vmatpush2.msra.mxu0 0.0
    %1983 = vmatprep.subr.mxu0 0.0
    %1984 = vmatpush2.msra.mxu0 0.0
    %1985 = vmatprep.subr.mxu0 0.0
    %1986 = vmatpush2.msra.mxu0 0.0
    %1987 = vmatprep.subr.mxu0 0.0
    %1988 = vmatpush2.msra.mxu0 0.0
    %1989 = vmatprep.subr.mxu0 0.0
    %1990 = vmatpush2.msra.mxu0 0.0
    %1991 = vmatprep.subr.mxu0 0.0
    %1992 = vmatpush2.msra.mxu0 0.0
    %1993 = vmatprep.mubr.f32.mxu0 0.0
    %1994 = vmatmul.mubr.f32.gmra.mxu0 %v1927
    %v1995 = vpop.f32.mrf.mxu0
    %v1996 = vadd.f32 0.0, %v1995
    %v1997 = vpop.f32.mrf.mxu0
    %1998 = vdwg.mxu0
    %v1999 = vpack.c.bf16 %v1996, %v1996
    %v2000 = vld [vmem:[%s29] sm:$0xf]
    %v2001 = vld [vmem:[%s29 + $0x4] sm:$0xf]
    %v2002 = vld [vmem:[%s29 + $0x8] sm:$0xf]
    %v2003 = vld [vmem:[%s29 + $0xc] sm:$0xf]
    %v2004 = vld [vmem:[%s29 + $0x10] sm:$0xf]
    %v2005 = vld [vmem:[%s29 + $0x14] sm:$0xf]
    %v2006 = vld [vmem:[%s29 + $0x18] sm:$0xf]
    %v2007 = vld [vmem:[%s29 + $0x1c] sm:$0xf]
    %v2008 = vld [vmem:[%s29 + $0x20] sm:$0xf]
    %v2009 = vld [vmem:[%s29 + $0x24] sm:$0xf]
    %v2010 = vld [vmem:[%s29 + $0x28] sm:$0xf]
    %v2011 = vld [vmem:[%s29 + $0x2c] sm:$0xf]
    %v2012 = vld [vmem:[%s29 + $0x30] sm:$0xf]
    %v2013 = vld [vmem:[%s29 + $0x34] sm:$0xf]
    %v2014 = vld [vmem:[%s29 + $0x38] sm:$0xf]
    %v2015 = vld [vmem:[%s29 + $0x3c] sm:$0xf]
    %v2016 = vld [vmem:[#allocation19] sm:$0x1]
    %v2018 = vlaneseq
    %v2019 = vshrl.u32 %v2018, 7
    %v2020 = vsub.s32 0, %v2019
    %v2021 = vrot.slane %v2016, %v2020
    %v2039 = vunpack.c.l.b16 %v2000
    %v2040 = vunpack.c.l.b16 %v2001
    %v2041 = vunpack.c.l.b16 %v2002
    %v2042 = vunpack.c.l.b16 %v2003
    %v2043 = vunpack.c.l.b16 %v2004
    %v2044 = vunpack.c.l.b16 %v2005
    %v2045 = vunpack.c.l.b16 %v2006
    %v2046 = vunpack.c.l.b16 %v2007
    %v2047 = vunpack.c.l.b16 %v2008
    %v2048 = vunpack.c.l.b16 %v2009
    %v2049 = vunpack.c.l.b16 %v2010
    %v2050 = vunpack.c.l.b16 %v2011
    %v2051 = vunpack.c.l.b16 %v2012
    %v2052 = vunpack.c.l.b16 %v2013
    %v2053 = vunpack.c.l.b16 %v2014
    %v2054 = vunpack.c.l.b16 %v2015
    %v2055 = vpack.c.b16 %v2040, %v2039
    %v2056 = vpack.c.b16 %v2042, %v2041
    %v2057 = vpack.c.b16 %v2044, %v2043
    %v2058 = vpack.c.b16 %v2046, %v2045
    %v2059 = vpack.c.b16 %v2048, %v2047
    %v2060 = vpack.c.b16 %v2050, %v2049
    %v2061 = vpack.c.b16 %v2052, %v2051
    %v2062 = vpack.c.b16 %v2054, %v2053
    %2071 = vmatprep.subr.bf16.mxu0 0
    %2072 = vmatpush1.bf16.msra.mxu0 %v2062
    %2073 = vmatprep.subr.bf16.mxu0 0
    %2074 = vmatpush1.bf16.msra.mxu0 %v2061
    %2075 = vmatprep.subr.bf16.mxu0 0
    %2076 = vmatpush1.bf16.msra.mxu0 %v2060
    %2077 = vmatprep.subr.bf16.mxu0 0
    %2078 = vmatpush1.bf16.msra.mxu0 %v2059
    %2079 = vmatprep.subr.bf16.mxu0 0
    %2080 = vmatpush1.bf16.msra.mxu0 %v2058
    %2081 = vmatprep.subr.bf16.mxu0 0
    %2082 = vmatpush1.bf16.msra.mxu0 %v2057
    %2083 = vmatprep.subr.bf16.mxu0 0
    %2084 = vmatpush1.bf16.msra.mxu0 %v2056
    %2085 = vmatprep.subr.bf16.mxu0 0
    %2086 = vmatpush1.bf16.msra.mxu0 %v2055
    %2087 = vmatprep.subr.bf16.mxu0 0
    %2088 = vmatpush2.bf16.msra.mxu0 0
    %2089 = vmatprep.subr.bf16.mxu0 0
    %2090 = vmatpush2.bf16.msra.mxu0 0
    %2091 = vmatprep.subr.bf16.mxu0 0
    %2092 = vmatpush2.bf16.msra.mxu0 0
    %2093 = vmatprep.subr.bf16.mxu0 0
    %2094 = vmatpush2.bf16.msra.mxu0 0
    %2095 = vmatprep.subr.bf16.mxu0 0
    %2096 = vmatpush2.bf16.msra.mxu0 0
    %2097 = vmatprep.subr.bf16.mxu0 0
    %2098 = vmatpush2.bf16.msra.mxu0 0
    %2099 = vmatprep.subr.bf16.mxu0 0
    %2100 = vmatpush2.bf16.msra.mxu0 0
    %2101 = vmatprep.subr.bf16.mxu0 0
    %2102 = vmatpush2.bf16.msra.mxu0 0
    %2103 = vmatprep.mubr.bf16.mxu0 0
    %2104 = vmatmul.mubr.bf16.gmra.mxu0 %v1999
    %v2105 = vpop.f32.mrf.mxu0
    %v2106 = vadd.f32 %v2021, %v2105
    %v2107 = vpop.f32.mrf.mxu0
    %v2108 = vpop.f32.mrf.mxu0
    %v2109 = vpop.f32.mrf.mxu0
    %2110 = vdwg.mxu0
    %v2111 = vpack.c.bf16 %v1923, %v1923
    %v2112 = vld [vmem:[#allocation22] sm:$0xf]
    %v2113 = vld [vmem:[#allocation22 + $0x4] sm:$0xf]
    %v2114 = vld [vmem:[#allocation22 + $0x8] sm:$0xf]
    %v2115 = vld [vmem:[#allocation22 + $0xc] sm:$0xf]
    %v2116 = vld [vmem:[#allocation22 + $0x10] sm:$0xf]
    %v2117 = vld [vmem:[#allocation22 + $0x14] sm:$0xf]
    %v2118 = vld [vmem:[#allocation22 + $0x18] sm:$0xf]
    %v2119 = vld [vmem:[#allocation22 + $0x1c] sm:$0xf]
    %v2120 = vld [vmem:[#allocation22 + $0x20] sm:$0xf]
    %v2121 = vld [vmem:[#allocation22 + $0x24] sm:$0xf]
    %v2122 = vld [vmem:[#allocation22 + $0x28] sm:$0xf]
    %v2123 = vld [vmem:[#allocation22 + $0x2c] sm:$0xf]
    %v2124 = vld [vmem:[#allocation22 + $0x30] sm:$0xf]
    %v2125 = vld [vmem:[#allocation22 + $0x34] sm:$0xf]
    %v2126 = vld [vmem:[#allocation22 + $0x38] sm:$0xf]
    %v2127 = vld [vmem:[#allocation22 + $0x3c] sm:$0xf]
    %v2144 = vunpack.c.l.b16 %v2112
    %v2145 = vunpack.c.l.b16 %v2113
    %v2146 = vunpack.c.l.b16 %v2114
    %v2147 = vunpack.c.l.b16 %v2115
    %v2148 = vunpack.c.l.b16 %v2116
    %v2149 = vunpack.c.l.b16 %v2117
    %v2150 = vunpack.c.l.b16 %v2118
    %v2151 = vunpack.c.l.b16 %v2119
    %v2152 = vunpack.c.l.b16 %v2120
    %v2153 = vunpack.c.l.b16 %v2121
    %v2154 = vunpack.c.l.b16 %v2122
    %v2155 = vunpack.c.l.b16 %v2123
    %v2156 = vunpack.c.l.b16 %v2124
    %v2157 = vunpack.c.l.b16 %v2125
    %v2158 = vunpack.c.l.b16 %v2126
    %v2159 = vunpack.c.l.b16 %v2127
    %v2160 = vpack.c.b16 %v2145, %v2144
    %v2161 = vpack.c.b16 %v2147, %v2146
    %v2162 = vpack.c.b16 %v2149, %v2148
    %v2163 = vpack.c.b16 %v2151, %v2150
    %v2164 = vpack.c.b16 %v2153, %v2152
    %v2165 = vpack.c.b16 %v2155, %v2154
    %v2166 = vpack.c.b16 %v2157, %v2156
    %v2167 = vpack.c.b16 %v2159, %v2158
    %2176 = vmatprep.subr.bf16.mxu0 0
    %2177 = vmatpush1.bf16.msra.mxu0 %v2167
    %2178 = vmatprep.subr.bf16.mxu0 0
    %2179 = vmatpush1.bf16.msra.mxu0 %v2166
    %2180 = vmatprep.subr.bf16.mxu0 0
    %2181 = vmatpush1.bf16.msra.mxu0 %v2165
    %2182 = vmatprep.subr.bf16.mxu0 0
    %2183 = vmatpush1.bf16.msra.mxu0 %v2164
    %2184 = vmatprep.subr.bf16.mxu0 0
    %2185 = vmatpush1.bf16.msra.mxu0 %v2163
    %2186 = vmatprep.subr.bf16.mxu0 0
    %2187 = vmatpush1.bf16.msra.mxu0 %v2162
    %2188 = vmatprep.subr.bf16.mxu0 0
    %2189 = vmatpush1.bf16.msra.mxu0 %v2161
    %2190 = vmatprep.subr.bf16.mxu0 0
    %2191 = vmatpush1.bf16.msra.mxu0 %v2160
    %2192 = vmatprep.subr.bf16.mxu0 0
    %2193 = vmatpush2.bf16.msra.mxu0 0
    %2194 = vmatprep.subr.bf16.mxu0 0
    %2195 = vmatpush2.bf16.msra.mxu0 0
    %2196 = vmatprep.subr.bf16.mxu0 0
    %2197 = vmatpush2.bf16.msra.mxu0 0
    %2198 = vmatprep.subr.bf16.mxu0 0
    %2199 = vmatpush2.bf16.msra.mxu0 0
    %2200 = vmatprep.subr.bf16.mxu0 0
    %2201 = vmatpush2.bf16.msra.mxu0 0
    %2202 = vmatprep.subr.bf16.mxu0 0
    %2203 = vmatpush2.bf16.msra.mxu0 0
    %2204 = vmatprep.subr.bf16.mxu0 0
    %2205 = vmatpush2.bf16.msra.mxu0 0
    %2206 = vmatprep.subr.bf16.mxu0 0
    %2207 = vmatpush2.bf16.msra.mxu0 0
    %2208 = vmatprep.mubr.bf16.mxu0 0
    %2209 = vmatmul.mubr.bf16.gmra.mxu0 %v2111
    %v2210 = vpop.f32.mrf.mxu0
    %v2211 = vadd.f32 0.0, %v2210
    %v2212 = vpop.f32.mrf.mxu0
    %v2213 = vpop.f32.mrf.mxu0
    %v2214 = vpop.f32.mrf.mxu0
    %2215 = vdwg.mxu0
    %s2216 = scalar_lea.vmem [#allocation22], 64
    %v2217 = vld [vmem:[%s2216] sm:$0xf]
    %v2218 = vld [vmem:[%s2216 + $0x4] sm:$0xf]
    %v2219 = vld [vmem:[%s2216 + $0x8] sm:$0xf]
    %v2220 = vld [vmem:[%s2216 + $0xc] sm:$0xf]
    %v2221 = vld [vmem:[%s2216 + $0x10] sm:$0xf]
    %v2222 = vld [vmem:[%s2216 + $0x14] sm:$0xf]
    %v2223 = vld [vmem:[%s2216 + $0x18] sm:$0xf]
    %v2224 = vld [vmem:[%s2216 + $0x1c] sm:$0xf]
    %v2225 = vld [vmem:[%s2216 + $0x20] sm:$0xf]
    %v2226 = vld [vmem:[%s2216 + $0x24] sm:$0xf]
    %v2227 = vld [vmem:[%s2216 + $0x28] sm:$0xf]
    %v2228 = vld [vmem:[%s2216 + $0x2c] sm:$0xf]
    %v2229 = vld [vmem:[%s2216 + $0x30] sm:$0xf]
    %v2230 = vld [vmem:[%s2216 + $0x34] sm:$0xf]
    %v2231 = vld [vmem:[%s2216 + $0x38] sm:$0xf]
    %v2232 = vld [vmem:[%s2216 + $0x3c] sm:$0xf]
    %v2249 = vunpack.c.l.b16 %v2217
    %v2250 = vunpack.c.l.b16 %v2218
    %v2251 = vunpack.c.l.b16 %v2219
    %v2252 = vunpack.c.l.b16 %v2220
    %v2253 = vunpack.c.l.b16 %v2221
    %v2254 = vunpack.c.l.b16 %v2222
    %v2255 = vunpack.c.l.b16 %v2223
    %v2256 = vunpack.c.l.b16 %v2224
    %v2257 = vunpack.c.l.b16 %v2225
    %v2258 = vunpack.c.l.b16 %v2226
    %v2259 = vunpack.c.l.b16 %v2227
    %v2260 = vunpack.c.l.b16 %v2228
    %v2261 = vunpack.c.l.b16 %v2229
    %v2262 = vunpack.c.l.b16 %v2230
    %v2263 = vunpack.c.l.b16 %v2231
    %v2264 = vunpack.c.l.b16 %v2232
    %v2265 = vpack.c.b16 %v2250, %v2249
    %v2266 = vpack.c.b16 %v2252, %v2251
    %v2267 = vpack.c.b16 %v2254, %v2253
    %v2268 = vpack.c.b16 %v2256, %v2255
    %v2269 = vpack.c.b16 %v2258, %v2257
    %v2270 = vpack.c.b16 %v2260, %v2259
    %v2271 = vpack.c.b16 %v2262, %v2261
    %v2272 = vpack.c.b16 %v2264, %v2263
    %2281 = vmatprep.subr.bf16.mxu0 0
    %2282 = vmatpush1.bf16.msra.mxu0 %v2272
    %2283 = vmatprep.subr.bf16.mxu0 0
    %2284 = vmatpush1.bf16.msra.mxu0 %v2271
    %2285 = vmatprep.subr.bf16.mxu0 0
    %2286 = vmatpush1.bf16.msra.mxu0 %v2270
    %2287 = vmatprep.subr.bf16.mxu0 0
    %2288 = vmatpush1.bf16.msra.mxu0 %v2269
    %2289 = vmatprep.subr.bf16.mxu0 0
    %2290 = vmatpush1.bf16.msra.mxu0 %v2268
    %2291 = vmatprep.subr.bf16.mxu0 0
    %2292 = vmatpush1.bf16.msra.mxu0 %v2267
    %2293 = vmatprep.subr.bf16.mxu0 0
    %2294 = vmatpush1.bf16.msra.mxu0 %v2266
    %2295 = vmatprep.subr.bf16.mxu0 0
    %2296 = vmatpush1.bf16.msra.mxu0 %v2265
    %2297 = vmatprep.subr.bf16.mxu0 0
    %2298 = vmatpush2.bf16.msra.mxu0 0
    %2299 = vmatprep.subr.bf16.mxu0 0
    %2300 = vmatpush2.bf16.msra.mxu0 0
    %2301 = vmatprep.subr.bf16.mxu0 0
    %2302 = vmatpush2.bf16.msra.mxu0 0
    %2303 = vmatprep.subr.bf16.mxu0 0
    %2304 = vmatpush2.bf16.msra.mxu0 0
    %2305 = vmatprep.subr.bf16.mxu0 0
    %2306 = vmatpush2.bf16.msra.mxu0 0
    %2307 = vmatprep.subr.bf16.mxu0 0
    %2308 = vmatpush2.bf16.msra.mxu0 0
    %2309 = vmatprep.subr.bf16.mxu0 0
    %2310 = vmatpush2.bf16.msra.mxu0 0
    %2311 = vmatprep.subr.bf16.mxu0 0
    %2312 = vmatpush2.bf16.msra.mxu0 0
    %2313 = vmatprep.mubr.bf16.mxu0 0
    %2314 = vmatmul.mubr.bf16.gmra.mxu0 %v2111
    %v2315 = vpop.f32.mrf.mxu0
    %v2316 = vadd.f32 0.0, %v2315
    %v2317 = vpop.f32.mrf.mxu0
    %v2318 = vpop.f32.mrf.mxu0
    %v2319 = vpop.f32.mrf.mxu0
    %2320 = vdwg.mxu0
    %s2321 = scalar_lea.vmem [#allocation22], 128
    %v2322 = vld [vmem:[%s2321] sm:$0xf]
    %v2323 = vld [vmem:[%s2321 + $0x4] sm:$0xf]
    %v2324 = vld [vmem:[%s2321 + $0x8] sm:$0xf]
    %v2325 = vld [vmem:[%s2321 + $0xc] sm:$0xf]
    %v2326 = vld [vmem:[%s2321 + $0x10] sm:$0xf]
    %v2327 = vld [vmem:[%s2321 + $0x14] sm:$0xf]
    %v2328 = vld [vmem:[%s2321 + $0x18] sm:$0xf]
    %v2329 = vld [vmem:[%s2321 + $0x1c] sm:$0xf]
    %v2330 = vld [vmem:[%s2321 + $0x20] sm:$0xf]
    %v2331 = vld [vmem:[%s2321 + $0x24] sm:$0xf]
    %v2332 = vld [vmem:[%s2321 + $0x28] sm:$0xf]
    %v2333 = vld [vmem:[%s2321 + $0x2c] sm:$0xf]
    %v2334 = vld [vmem:[%s2321 + $0x30] sm:$0xf]
    %v2335 = vld [vmem:[%s2321 + $0x34] sm:$0xf]
    %v2336 = vld [vmem:[%s2321 + $0x38] sm:$0xf]
    %v2337 = vld [vmem:[%s2321 + $0x3c] sm:$0xf]
    %v2354 = vunpack.c.l.b16 %v2322
    %v2355 = vunpack.c.l.b16 %v2323
    %v2356 = vunpack.c.l.b16 %v2324
    %v2357 = vunpack.c.l.b16 %v2325
    %v2358 = vunpack.c.l.b16 %v2326
    %v2359 = vunpack.c.l.b16 %v2327
    %v2360 = vunpack.c.l.b16 %v2328
    %v2361 = vunpack.c.l.b16 %v2329
    %v2362 = vunpack.c.l.b16 %v2330
    %v2363 = vunpack.c.l.b16 %v2331
    %v2364 = vunpack.c.l.b16 %v2332
    %v2365 = vunpack.c.l.b16 %v2333
    %v2366 = vunpack.c.l.b16 %v2334
    %v2367 = vunpack.c.l.b16 %v2335
    %v2368 = vunpack.c.l.b16 %v2336
    %v2369 = vunpack.c.l.b16 %v2337
    %v2370 = vpack.c.b16 %v2355, %v2354
    %v2371 = vpack.c.b16 %v2357, %v2356
    %v2372 = vpack.c.b16 %v2359, %v2358
    %v2373 = vpack.c.b16 %v2361, %v2360
    %v2374 = vpack.c.b16 %v2363, %v2362
    %v2375 = vpack.c.b16 %v2365, %v2364
    %v2376 = vpack.c.b16 %v2367, %v2366
    %v2377 = vpack.c.b16 %v2369, %v2368
    %2386 = vmatprep.subr.bf16.mxu0 0
    %2387 = vmatpush1.bf16.msra.mxu0 %v2377
    %2388 = vmatprep.subr.bf16.mxu0 0
    %2389 = vmatpush1.bf16.msra.mxu0 %v2376
    %2390 = vmatprep.subr.bf16.mxu0 0
    %2391 = vmatpush1.bf16.msra.mxu0 %v2375
    %2392 = vmatprep.subr.bf16.mxu0 0
    %2393 = vmatpush1.bf16.msra.mxu0 %v2374
    %2394 = vmatprep.subr.bf16.mxu0 0
    %2395 = vmatpush1.bf16.msra.mxu0 %v2373
    %2396 = vmatprep.subr.bf16.mxu0 0
    %2397 = vmatpush1.bf16.msra.mxu0 %v2372
    %2398 = vmatprep.subr.bf16.mxu0 0
    %2399 = vmatpush1.bf16.msra.mxu0 %v2371
    %2400 = vmatprep.subr.bf16.mxu0 0
    %2401 = vmatpush1.bf16.msra.mxu0 %v2370
    %2402 = vmatprep.subr.bf16.mxu0 0
    %2403 = vmatpush2.bf16.msra.mxu0 0
    %2404 = vmatprep.subr.bf16.mxu0 0
    %2405 = vmatpush2.bf16.msra.mxu0 0
    %2406 = vmatprep.subr.bf16.mxu0 0
    %2407 = vmatpush2.bf16.msra.mxu0 0
    %2408 = vmatprep.subr.bf16.mxu0 0
    %2409 = vmatpush2.bf16.msra.mxu0 0
    %2410 = vmatprep.subr.bf16.mxu0 0
    %2411 = vmatpush2.bf16.msra.mxu0 0
    %2412 = vmatprep.subr.bf16.mxu0 0
    %2413 = vmatpush2.bf16.msra.mxu0 0
    %2414 = vmatprep.subr.bf16.mxu0 0
    %2415 = vmatpush2.bf16.msra.mxu0 0
    %2416 = vmatprep.subr.bf16.mxu0 0
    %2417 = vmatpush2.bf16.msra.mxu0 0
    %2418 = vmatprep.mubr.bf16.mxu0 0
    %2419 = vmatmul.mubr.bf16.gmra.mxu0 %v2111
    %v2420 = vpop.f32.mrf.mxu0
    %v2421 = vadd.f32 0.0, %v2420
    %v2422 = vpop.f32.mrf.mxu0
    %v2423 = vpop.f32.mrf.mxu0
    %v2424 = vpop.f32.mrf.mxu0
    %2425 = vdwg.mxu0
    %v2426 = vld [vmem:[#allocation21] sm:$0xff]
    %v2427 = vld [vmem:[#allocation24] sm:$0x1]
    %v2429 = vlaneseq
    %v2430 = vshrl.u32 %v2429, 7
    %v2431 = vsub.s32 0, %v2430
    %v2432 = vrot.slane %v2427, %v2431
    %vm2434 = vcmask 195584
    %v2436 = vsel %vm2434, %v2426, 0
    %2438 = vmatprep.subr.mxu0 0.0
    %2439 = vmatpush1.msra.mxu0 0.0
    %2440 = vmatprep.subr.mxu0 0.0
    %2441 = vmatpush1.msra.mxu0 0.0
    %2442 = vmatprep.subr.mxu0 0.0
    %2443 = vmatpush1.msra.mxu0 0.0
    %2444 = vmatprep.subr.mxu0 0.0
    %2445 = vmatpush1.msra.mxu0 0.0
    %2446 = vmatprep.subr.mxu0 0.0
    %2447 = vmatpush1.msra.mxu0 0.0
    %2448 = vmatprep.subr.mxu0 0.0
    %2449 = vmatpush1.msra.mxu0 0.0
    %2450 = vmatprep.subr.mxu0 0.0
    %2451 = vmatpush1.msra.mxu0 0.0
    %2452 = vmatprep.subr.mxu0 0.0
    %2453 = vmatpush1.msra.mxu0 0.0
    %2454 = vmatprep.subr.mxu0 0.0
    %2455 = vmatpush1.msra.mxu0 0.0
    %2456 = vmatprep.subr.mxu0 0.0
    %2457 = vmatpush1.msra.mxu0 0.0
    %2458 = vmatprep.subr.mxu0 0.0
    %2459 = vmatpush1.msra.mxu0 0.0
    %2460 = vmatprep.subr.mxu0 0.0
    %2461 = vmatpush1.msra.mxu0 0.0
    %2462 = vmatprep.subr.mxu0 0.0
    %2463 = vmatpush1.msra.mxu0 0.0
    %2464 = vmatprep.subr.mxu0 0.0
    %2465 = vmatpush1.msra.mxu0 %v2421
    %2466 = vmatprep.subr.mxu0 0.0
    %2467 = vmatpush1.msra.mxu0 %v2316
    %2468 = vmatprep.subr.mxu0 0.0
    %2469 = vmatpush1.msra.mxu0 %v2211
    %2470 = vmatprep.subr.mxu0 0.0
    %2471 = vmatpush2.msra.mxu0 0.0
    %2472 = vmatprep.subr.mxu0 0.0
    %2473 = vmatpush2.msra.mxu0 0.0
    %2474 = vmatprep.subr.mxu0 0.0
    %2475 = vmatpush2.msra.mxu0 0.0
    %2476 = vmatprep.subr.mxu0 0.0
    %2477 = vmatpush2.msra.mxu0 0.0
    %2478 = vmatprep.subr.mxu0 0.0
    %2479 = vmatpush2.msra.mxu0 0.0
    %2480 = vmatprep.subr.mxu0 0.0
    %2481 = vmatpush2.msra.mxu0 0.0
    %2482 = vmatprep.subr.mxu0 0.0
    %2483 = vmatpush2.msra.mxu0 0.0
    %2484 = vmatprep.subr.mxu0 0.0
    %2485 = vmatpush2.msra.mxu0 0.0
    %2486 = vmatprep.subr.mxu0 0.0
    %2487 = vmatpush2.msra.mxu0 0.0
    %2488 = vmatprep.subr.mxu0 0.0
    %2489 = vmatpush2.msra.mxu0 0.0
    %2490 = vmatprep.subr.mxu0 0.0
    %2491 = vmatpush2.msra.mxu0 0.0
    %2492 = vmatprep.subr.mxu0 0.0
    %2493 = vmatpush2.msra.mxu0 0.0
    %2494 = vmatprep.subr.mxu0 0.0
    %2495 = vmatpush2.msra.mxu0 0.0
    %2496 = vmatprep.subr.mxu0 0.0
    %2497 = vmatpush2.msra.mxu0 0.0
    %2498 = vmatprep.subr.mxu0 0.0
    %2499 = vmatpush2.msra.mxu0 0.0
    %2500 = vmatprep.subr.mxu0 0.0
    %2501 = vmatpush2.msra.mxu0 0.0
    %2502 = vmatprep.mubr.f32.mxu0 0.0
    %2503 = vmatmul.mubr.f32.gmra.mxu0 %v2436
    %v2504 = vpop.f32.mrf.mxu0
    %v2505 = vadd.f32 %v2432, %v2504
    %v2506 = vpop.f32.mrf.mxu0
    %2507 = vdwg.mxu0
    %v2508 = vadd.f32 %v2505, %v2106
    %v2509 = vmax.f32 %v2508, 0.0
    %v2510 = vpack.c.bf16 %v2509, %v2509
    %v2511 = vld [vmem:[#allocation27] sm:$0xf]
    %v2512 = vld [vmem:[#allocation27 + $0x4] sm:$0xf]
    %v2513 = vld [vmem:[#allocation27 + $0x8] sm:$0xf]
    %v2514 = vld [vmem:[#allocation27 + $0xc] sm:$0xf]
    %v2515 = vld [vmem:[#allocation27 + $0x10] sm:$0xf]
    %v2516 = vld [vmem:[#allocation27 + $0x14] sm:$0xf]
    %v2517 = vld [vmem:[#allocation27 + $0x18] sm:$0xf]
    %v2518 = vld [vmem:[#allocation27 + $0x1c] sm:$0xf]
    %v2519 = vld [vmem:[#allocation27 + $0x20] sm:$0xf]
    %v2520 = vld [vmem:[#allocation27 + $0x24] sm:$0xf]
    %v2521 = vld [vmem:[#allocation27 + $0x28] sm:$0xf]
    %v2522 = vld [vmem:[#allocation27 + $0x2c] sm:$0xf]
    %v2523 = vld [vmem:[#allocation27 + $0x30] sm:$0xf]
    %v2524 = vld [vmem:[#allocation27 + $0x34] sm:$0xf]
    %v2525 = vld [vmem:[#allocation27 + $0x38] sm:$0xf]
    %v2526 = vld [vmem:[#allocation27 + $0x3c] sm:$0xf]
    %v2543 = vunpack.c.l.b16 %v2511
    %v2544 = vunpack.c.l.b16 %v2512
    %v2545 = vunpack.c.l.b16 %v2513
    %v2546 = vunpack.c.l.b16 %v2514
    %v2547 = vunpack.c.l.b16 %v2515
    %v2548 = vunpack.c.l.b16 %v2516
    %v2549 = vunpack.c.l.b16 %v2517
    %v2550 = vunpack.c.l.b16 %v2518
    %v2551 = vunpack.c.l.b16 %v2519
    %v2552 = vunpack.c.l.b16 %v2520
    %v2553 = vunpack.c.l.b16 %v2521
    %v2554 = vunpack.c.l.b16 %v2522
    %v2555 = vunpack.c.l.b16 %v2523
    %v2556 = vunpack.c.l.b16 %v2524
    %v2557 = vunpack.c.l.b16 %v2525
    %v2558 = vunpack.c.l.b16 %v2526
    %v2559 = vpack.c.b16 %v2544, %v2543
    %v2560 = vpack.c.b16 %v2546, %v2545
    %v2561 = vpack.c.b16 %v2548, %v2547
    %v2562 = vpack.c.b16 %v2550, %v2549
    %v2563 = vpack.c.b16 %v2552, %v2551
    %v2564 = vpack.c.b16 %v2554, %v2553
    %v2565 = vpack.c.b16 %v2556, %v2555
    %v2566 = vpack.c.b16 %v2558, %v2557
    %2575 = vmatprep.subr.bf16.mxu0 0
    %2576 = vmatpush1.bf16.msra.mxu0 %v2566
    %2577 = vmatprep.subr.bf16.mxu0 0
    %2578 = vmatpush1.bf16.msra.mxu0 %v2565
    %2579 = vmatprep.subr.bf16.mxu0 0
    %2580 = vmatpush1.bf16.msra.mxu0 %v2564
    %2581 = vmatprep.subr.bf16.mxu0 0
    %2582 = vmatpush1.bf16.msra.mxu0 %v2563
    %2583 = vmatprep.subr.bf16.mxu0 0
    %2584 = vmatpush1.bf16.msra.mxu0 %v2562
    %2585 = vmatprep.subr.bf16.mxu0 0
    %2586 = vmatpush1.bf16.msra.mxu0 %v2561
    %2587 = vmatprep.subr.bf16.mxu0 0
    %2588 = vmatpush1.bf16.msra.mxu0 %v2560
    %2589 = vmatprep.subr.bf16.mxu0 0
    %2590 = vmatpush1.bf16.msra.mxu0 %v2559
    %2591 = vmatprep.subr.bf16.mxu0 0
    %2592 = vmatpush2.bf16.msra.mxu0 0
    %2593 = vmatprep.subr.bf16.mxu0 0
    %2594 = vmatpush2.bf16.msra.mxu0 0
    %2595 = vmatprep.subr.bf16.mxu0 0
    %2596 = vmatpush2.bf16.msra.mxu0 0
    %2597 = vmatprep.subr.bf16.mxu0 0
    %2598 = vmatpush2.bf16.msra.mxu0 0
    %2599 = vmatprep.subr.bf16.mxu0 0
    %2600 = vmatpush2.bf16.msra.mxu0 0
    %2601 = vmatprep.subr.bf16.mxu0 0
    %2602 = vmatpush2.bf16.msra.mxu0 0
    %2603 = vmatprep.subr.bf16.mxu0 0
    %2604 = vmatpush2.bf16.msra.mxu0 0
    %2605 = vmatprep.subr.bf16.mxu0 0
    %2606 = vmatpush2.bf16.msra.mxu0 0
    %2607 = vmatprep.mubr.bf16.mxu0 0
    %2608 = vmatmul.mubr.bf16.gmra.mxu0 %v2510
    %v2609 = vpop.f32.mrf.mxu0
    %v2610 = vadd.f32 0.0, %v2609
    %v2611 = vpop.f32.mrf.mxu0
    %v2612 = vpop.f32.mrf.mxu0
    %v2613 = vpop.f32.mrf.mxu0
    %2614 = vdwg.mxu0
    %s2615 = scalar_lea.vmem [#allocation27], 64
    %v2616 = vld [vmem:[%s2615] sm:$0xf]
    %v2617 = vld [vmem:[%s2615 + $0x4] sm:$0xf]
    %v2618 = vld [vmem:[%s2615 + $0x8] sm:$0xf]
    %v2619 = vld [vmem:[%s2615 + $0xc] sm:$0xf]
    %v2620 = vld [vmem:[%s2615 + $0x10] sm:$0xf]
    %v2621 = vld [vmem:[%s2615 + $0x14] sm:$0xf]
    %v2622 = vld [vmem:[%s2615 + $0x18] sm:$0xf]
    %v2623 = vld [vmem:[%s2615 + $0x1c] sm:$0xf]
    %v2624 = vld [vmem:[%s2615 + $0x20] sm:$0xf]
    %v2625 = vld [vmem:[%s2615 + $0x24] sm:$0xf]
    %v2626 = vld [vmem:[%s2615 + $0x28] sm:$0xf]
    %v2627 = vld [vmem:[%s2615 + $0x2c] sm:$0xf]
    %v2628 = vld [vmem:[%s2615 + $0x30] sm:$0xf]
    %v2629 = vld [vmem:[%s2615 + $0x34] sm:$0xf]
    %v2630 = vld [vmem:[%s2615 + $0x38] sm:$0xf]
    %v2631 = vld [vmem:[%s2615 + $0x3c] sm:$0xf]
    %v2648 = vunpack.c.l.b16 %v2616
    %v2649 = vunpack.c.l.b16 %v2617
    %v2650 = vunpack.c.l.b16 %v2618
    %v2651 = vunpack.c.l.b16 %v2619
    %v2652 = vunpack.c.l.b16 %v2620
    %v2653 = vunpack.c.l.b16 %v2621
    %v2654 = vunpack.c.l.b16 %v2622
    %v2655 = vunpack.c.l.b16 %v2623
    %v2656 = vunpack.c.l.b16 %v2624
    %v2657 = vunpack.c.l.b16 %v2625
    %v2658 = vunpack.c.l.b16 %v2626
    %v2659 = vunpack.c.l.b16 %v2627
    %v2660 = vunpack.c.l.b16 %v2628
    %v2661 = vunpack.c.l.b16 %v2629
    %v2662 = vunpack.c.l.b16 %v2630
    %v2663 = vunpack.c.l.b16 %v2631
    %v2664 = vpack.c.b16 %v2649, %v2648
    %v2665 = vpack.c.b16 %v2651, %v2650
    %v2666 = vpack.c.b16 %v2653, %v2652
    %v2667 = vpack.c.b16 %v2655, %v2654
    %v2668 = vpack.c.b16 %v2657, %v2656
    %v2669 = vpack.c.b16 %v2659, %v2658
    %v2670 = vpack.c.b16 %v2661, %v2660
    %v2671 = vpack.c.b16 %v2663, %v2662
    %2680 = vmatprep.subr.bf16.mxu0 0
    %2681 = vmatpush1.bf16.msra.mxu0 %v2671
    %2682 = vmatprep.subr.bf16.mxu0 0
    %2683 = vmatpush1.bf16.msra.mxu0 %v2670
    %2684 = vmatprep.subr.bf16.mxu0 0
    %2685 = vmatpush1.bf16.msra.mxu0 %v2669
    %2686 = vmatprep.subr.bf16.mxu0 0
    %2687 = vmatpush1.bf16.msra.mxu0 %v2668
    %2688 = vmatprep.subr.bf16.mxu0 0
    %2689 = vmatpush1.bf16.msra.mxu0 %v2667
    %2690 = vmatprep.subr.bf16.mxu0 0
    %2691 = vmatpush1.bf16.msra.mxu0 %v2666
    %2692 = vmatprep.subr.bf16.mxu0 0
    %2693 = vmatpush1.bf16.msra.mxu0 %v2665
    %2694 = vmatprep.subr.bf16.mxu0 0
    %2695 = vmatpush1.bf16.msra.mxu0 %v2664
    %2696 = vmatprep.subr.bf16.mxu0 0
    %2697 = vmatpush2.bf16.msra.mxu0 0
    %2698 = vmatprep.subr.bf16.mxu0 0
    %2699 = vmatpush2.bf16.msra.mxu0 0
    %2700 = vmatprep.subr.bf16.mxu0 0
    %2701 = vmatpush2.bf16.msra.mxu0 0
    %2702 = vmatprep.subr.bf16.mxu0 0
    %2703 = vmatpush2.bf16.msra.mxu0 0
    %2704 = vmatprep.subr.bf16.mxu0 0
    %2705 = vmatpush2.bf16.msra.mxu0 0
    %2706 = vmatprep.subr.bf16.mxu0 0
    %2707 = vmatpush2.bf16.msra.mxu0 0
    %2708 = vmatprep.subr.bf16.mxu0 0
    %2709 = vmatpush2.bf16.msra.mxu0 0
    %2710 = vmatprep.subr.bf16.mxu0 0
    %2711 = vmatpush2.bf16.msra.mxu0 0
    %2712 = vmatprep.mubr.bf16.mxu0 0
    %2713 = vmatmul.mubr.bf16.gmra.mxu0 %v2510
    %v2714 = vpop.f32.mrf.mxu0
    %v2715 = vadd.f32 0.0, %v2714
    %v2716 = vpop.f32.mrf.mxu0
    %v2717 = vpop.f32.mrf.mxu0
    %v2718 = vpop.f32.mrf.mxu0
    %2719 = vdwg.mxu0
    %s2720 = scalar_lea.vmem [#allocation27], 128
    %v2721 = vld [vmem:[%s2720] sm:$0xf]
    %v2722 = vld [vmem:[%s2720 + $0x4] sm:$0xf]
    %v2723 = vld [vmem:[%s2720 + $0x8] sm:$0xf]
    %v2724 = vld [vmem:[%s2720 + $0xc] sm:$0xf]
    %v2725 = vld [vmem:[%s2720 + $0x10] sm:$0xf]
    %v2726 = vld [vmem:[%s2720 + $0x14] sm:$0xf]
    %v2727 = vld [vmem:[%s2720 + $0x18] sm:$0xf]
    %v2728 = vld [vmem:[%s2720 + $0x1c] sm:$0xf]
    %v2729 = vld [vmem:[%s2720 + $0x20] sm:$0xf]
    %v2730 = vld [vmem:[%s2720 + $0x24] sm:$0xf]
    %v2731 = vld [vmem:[%s2720 + $0x28] sm:$0xf]
    %v2732 = vld [vmem:[%s2720 + $0x2c] sm:$0xf]
    %v2733 = vld [vmem:[%s2720 + $0x30] sm:$0xf]
    %v2734 = vld [vmem:[%s2720 + $0x34] sm:$0xf]
    %v2735 = vld [vmem:[%s2720 + $0x38] sm:$0xf]
    %v2736 = vld [vmem:[%s2720 + $0x3c] sm:$0xf]
    %v2753 = vunpack.c.l.b16 %v2721
    %v2754 = vunpack.c.l.b16 %v2722
    %v2755 = vunpack.c.l.b16 %v2723
    %v2756 = vunpack.c.l.b16 %v2724
    %v2757 = vunpack.c.l.b16 %v2725
    %v2758 = vunpack.c.l.b16 %v2726
    %v2759 = vunpack.c.l.b16 %v2727
    %v2760 = vunpack.c.l.b16 %v2728
    %v2761 = vunpack.c.l.b16 %v2729
    %v2762 = vunpack.c.l.b16 %v2730
    %v2763 = vunpack.c.l.b16 %v2731
    %v2764 = vunpack.c.l.b16 %v2732
    %v2765 = vunpack.c.l.b16 %v2733
    %v2766 = vunpack.c.l.b16 %v2734
    %v2767 = vunpack.c.l.b16 %v2735
    %v2768 = vunpack.c.l.b16 %v2736
    %v2769 = vpack.c.b16 %v2754, %v2753
    %v2770 = vpack.c.b16 %v2756, %v2755
    %v2771 = vpack.c.b16 %v2758, %v2757
    %v2772 = vpack.c.b16 %v2760, %v2759
    %v2773 = vpack.c.b16 %v2762, %v2761
    %v2774 = vpack.c.b16 %v2764, %v2763
    %v2775 = vpack.c.b16 %v2766, %v2765
    %v2776 = vpack.c.b16 %v2768, %v2767
    %2785 = vmatprep.subr.bf16.mxu0 0
    %2786 = vmatpush1.bf16.msra.mxu0 %v2776
    %2787 = vmatprep.subr.bf16.mxu0 0
    %2788 = vmatpush1.bf16.msra.mxu0 %v2775
    %2789 = vmatprep.subr.bf16.mxu0 0
    %2790 = vmatpush1.bf16.msra.mxu0 %v2774
    %2791 = vmatprep.subr.bf16.mxu0 0
    %2792 = vmatpush1.bf16.msra.mxu0 %v2773
    %2793 = vmatprep.subr.bf16.mxu0 0
    %2794 = vmatpush1.bf16.msra.mxu0 %v2772
    %2795 = vmatprep.subr.bf16.mxu0 0
    %2796 = vmatpush1.bf16.msra.mxu0 %v2771
    %2797 = vmatprep.subr.bf16.mxu0 0
    %2798 = vmatpush1.bf16.msra.mxu0 %v2770
    %2799 = vmatprep.subr.bf16.mxu0 0
    %2800 = vmatpush1.bf16.msra.mxu0 %v2769
    %2801 = vmatprep.subr.bf16.mxu0 0
    %2802 = vmatpush2.bf16.msra.mxu0 0
    %2803 = vmatprep.subr.bf16.mxu0 0
    %2804 = vmatpush2.bf16.msra.mxu0 0
    %2805 = vmatprep.subr.bf16.mxu0 0
    %2806 = vmatpush2.bf16.msra.mxu0 0
    %2807 = vmatprep.subr.bf16.mxu0 0
    %2808 = vmatpush2.bf16.msra.mxu0 0
    %2809 = vmatprep.subr.bf16.mxu0 0
    %2810 = vmatpush2.bf16.msra.mxu0 0
    %2811 = vmatprep.subr.bf16.mxu0 0
    %2812 = vmatpush2.bf16.msra.mxu0 0
    %2813 = vmatprep.subr.bf16.mxu0 0
    %2814 = vmatpush2.bf16.msra.mxu0 0
    %2815 = vmatprep.subr.bf16.mxu0 0
    %2816 = vmatpush2.bf16.msra.mxu0 0
    %2817 = vmatprep.mubr.bf16.mxu0 0
    %2818 = vmatmul.mubr.bf16.gmra.mxu0 %v2510
    %v2819 = vpop.f32.mrf.mxu0
    %v2820 = vadd.f32 0.0, %v2819
    %v2821 = vpop.f32.mrf.mxu0
    %v2822 = vpop.f32.mrf.mxu0
    %v2823 = vpop.f32.mrf.mxu0
    %2824 = vdwg.mxu0
    %v2825 = vld [vmem:[#allocation25] sm:$0xf]
    %v2826 = vld [vmem:[#allocation28] sm:$0x1]
    %v2828 = vlaneseq
    %v2829 = vshrl.u32 %v2828, 7
    %v2830 = vsub.s32 0, %v2829
    %v2831 = vrot.slane %v2826, %v2830
    %v2834 = vsel %vm2434, %v2825, 0
    %2836 = vmatprep.subr.mxu0 0.0
    %2837 = vmatpush1.msra.mxu0 0.0
    %2838 = vmatprep.subr.mxu0 0.0
    %2839 = vmatpush1.msra.mxu0 0.0
    %2840 = vmatprep.subr.mxu0 0.0
    %2841 = vmatpush1.msra.mxu0 0.0
    %2842 = vmatprep.subr.mxu0 0.0
    %2843 = vmatpush1.msra.mxu0 0.0
    %2844 = vmatprep.subr.mxu0 0.0
    %2845 = vmatpush1.msra.mxu0 0.0
    %2846 = vmatprep.subr.mxu0 0.0
    %2847 = vmatpush1.msra.mxu0 0.0
    %2848 = vmatprep.subr.mxu0 0.0
    %2849 = vmatpush1.msra.mxu0 0.0
    %2850 = vmatprep.subr.mxu0 0.0
    %2851 = vmatpush1.msra.mxu0 0.0
    %2852 = vmatprep.subr.mxu0 0.0
    %2853 = vmatpush1.msra.mxu0 0.0
    %2854 = vmatprep.subr.mxu0 0.0
    %2855 = vmatpush1.msra.mxu0 0.0
    %2856 = vmatprep.subr.mxu0 0.0
    %2857 = vmatpush1.msra.mxu0 0.0
    %2858 = vmatprep.subr.mxu0 0.0
    %2859 = vmatpush1.msra.mxu0 0.0
    %2860 = vmatprep.subr.mxu0 0.0
    %2861 = vmatpush1.msra.mxu0 0.0
    %2862 = vmatprep.subr.mxu0 0.0
    %2863 = vmatpush1.msra.mxu0 %v2820
    %2864 = vmatprep.subr.mxu0 0.0
    %2865 = vmatpush1.msra.mxu0 %v2715
    %2866 = vmatprep.subr.mxu0 0.0
    %2867 = vmatpush1.msra.mxu0 %v2610
    %2868 = vmatprep.subr.mxu0 0.0
    %2869 = vmatpush2.msra.mxu0 0.0
    %2870 = vmatprep.subr.mxu0 0.0
    %2871 = vmatpush2.msra.mxu0 0.0
    %2872 = vmatprep.subr.mxu0 0.0
    %2873 = vmatpush2.msra.mxu0 0.0
    %2874 = vmatprep.subr.mxu0 0.0
    %2875 = vmatpush2.msra.mxu0 0.0
    %2876 = vmatprep.subr.mxu0 0.0
    %2877 = vmatpush2.msra.mxu0 0.0
    %2878 = vmatprep.subr.mxu0 0.0
    %2879 = vmatpush2.msra.mxu0 0.0
    %2880 = vmatprep.subr.mxu0 0.0
    %2881 = vmatpush2.msra.mxu0 0.0
    %2882 = vmatprep.subr.mxu0 0.0
    %2883 = vmatpush2.msra.mxu0 0.0
    %2884 = vmatprep.subr.mxu0 0.0
    %2885 = vmatpush2.msra.mxu0 0.0
    %2886 = vmatprep.subr.mxu0 0.0
    %2887 = vmatpush2.msra.mxu0 0.0
    %2888 = vmatprep.subr.mxu0 0.0
    %2889 = vmatpush2.msra.mxu0 0.0
    %2890 = vmatprep.subr.mxu0 0.0
    %2891 = vmatpush2.msra.mxu0 0.0
    %2892 = vmatprep.subr.mxu0 0.0
    %2893 = vmatpush2.msra.mxu0 0.0
    %2894 = vmatprep.subr.mxu0 0.0
    %2895 = vmatpush2.msra.mxu0 0.0
    %2896 = vmatprep.subr.mxu0 0.0
    %2897 = vmatpush2.msra.mxu0 0.0
    %2898 = vmatprep.subr.mxu0 0.0
    %2899 = vmatpush2.msra.mxu0 0.0
    %2900 = vmatprep.mubr.f32.mxu0 0.0
    %2901 = vmatmul.mubr.f32.gmra.mxu0 %v2834
    %v2902 = vpop.f32.mrf.mxu0
    %v2903 = vadd.f32 %v2831, %v2902
    %v2904 = vpop.f32.mrf.mxu0
    %2905 = vdwg.mxu0
    %v2906 = vmax.f32 %v2903, 0.0
    %v2907 = vld [vmem:[#allocation30] sm:$0xf]
    %vm2908 = vcmask 64512
    %v2910 = vsel %vm2908, %v2907, 0
    %2912 = vmatprep.subr.mxu0 0.0
    %2913 = vmatpush1.msra.mxu0 0.0
    %2914 = vmatprep.subr.mxu0 0.0
    %2915 = vmatpush1.msra.mxu0 0.0
    %2916 = vmatprep.subr.mxu0 0.0
    %2917 = vmatpush1.msra.mxu0 0.0
    %2918 = vmatprep.subr.mxu0 0.0
    %2919 = vmatpush1.msra.mxu0 0.0
    %2920 = vmatprep.subr.mxu0 0.0
    %2921 = vmatpush1.msra.mxu0 0.0
    %2922 = vmatprep.subr.mxu0 0.0
    %2923 = vmatpush1.msra.mxu0 0.0
    %2924 = vmatprep.subr.mxu0 0.0
    %2925 = vmatpush1.msra.mxu0 0.0
    %2926 = vmatprep.subr.mxu0 0.0
    %2927 = vmatpush1.msra.mxu0 0.0
    %2928 = vmatprep.subr.mxu0 0.0
    %2929 = vmatpush1.msra.mxu0 0.0
    %2930 = vmatprep.subr.mxu0 0.0
    %2931 = vmatpush1.msra.mxu0 0.0
    %2932 = vmatprep.subr.mxu0 0.0
    %2933 = vmatpush1.msra.mxu0 0.0
    %2934 = vmatprep.subr.mxu0 0.0
    %2935 = vmatpush1.msra.mxu0 0.0
    %2936 = vmatprep.subr.mxu0 0.0
    %2937 = vmatpush1.msra.mxu0 0.0
    %2938 = vmatprep.subr.mxu0 0.0
    %2939 = vmatpush1.msra.mxu0 0.0
    %2940 = vmatprep.subr.mxu0 0.0
    %2941 = vmatpush1.msra.mxu0 0.0
    %2942 = vmatprep.subr.mxu0 0.0
    %2943 = vmatpush1.msra.mxu0 %v2509
    %2944 = vmatprep.subr.mxu0 0.0
    %2945 = vmatpush2.msra.mxu0 0.0
    %2946 = vmatprep.subr.mxu0 0.0
    %2947 = vmatpush2.msra.mxu0 0.0
    %2948 = vmatprep.subr.mxu0 0.0
    %2949 = vmatpush2.msra.mxu0 0.0
    %2950 = vmatprep.subr.mxu0 0.0
    %2951 = vmatpush2.msra.mxu0 0.0
    %2952 = vmatprep.subr.mxu0 0.0
    %2953 = vmatpush2.msra.mxu0 0.0
    %2954 = vmatprep.subr.mxu0 0.0
    %2955 = vmatpush2.msra.mxu0 0.0
    %2956 = vmatprep.subr.mxu0 0.0
    %2957 = vmatpush2.msra.mxu0 0.0
    %2958 = vmatprep.subr.mxu0 0.0
    %2959 = vmatpush2.msra.mxu0 0.0
    %2960 = vmatprep.subr.mxu0 0.0
    %2961 = vmatpush2.msra.mxu0 0.0
    %2962 = vmatprep.subr.mxu0 0.0
    %2963 = vmatpush2.msra.mxu0 0.0
    %2964 = vmatprep.subr.mxu0 0.0
    %2965 = vmatpush2.msra.mxu0 0.0
    %2966 = vmatprep.subr.mxu0 0.0
    %2967 = vmatpush2.msra.mxu0 0.0
    %2968 = vmatprep.subr.mxu0 0.0
    %2969 = vmatpush2.msra.mxu0 0.0
    %2970 = vmatprep.subr.mxu0 0.0
    %2971 = vmatpush2.msra.mxu0 0.0
    %2972 = vmatprep.subr.mxu0 0.0
    %2973 = vmatpush2.msra.mxu0 0.0
    %2974 = vmatprep.subr.mxu0 0.0
    %2975 = vmatpush2.msra.mxu0 0.0
    %2976 = vmatprep.mubr.f32.mxu0 0.0
    %2977 = vmatmul.mubr.f32.gmra.mxu0 %v2910
    %v2978 = vpop.f32.mrf.mxu0
    %v2979 = vadd.f32 0.0, %v2978
    %v2980 = vpop.f32.mrf.mxu0
    %2981 = vdwg.mxu0
    %v2982 = vpack.c.bf16 %v2979, %v2979
    %v2983 = vld [vmem:[%s47] sm:$0xf]
    %v2984 = vld [vmem:[%s47 + $0x4] sm:$0xf]
    %v2985 = vld [vmem:[%s47 + $0x8] sm:$0xf]
    %v2986 = vld [vmem:[%s47 + $0xc] sm:$0xf]
    %v2987 = vld [vmem:[%s47 + $0x10] sm:$0xf]
    %v2988 = vld [vmem:[%s47 + $0x14] sm:$0xf]
    %v2989 = vld [vmem:[%s47 + $0x18] sm:$0xf]
    %v2990 = vld [vmem:[%s47 + $0x1c] sm:$0xf]
    %v2991 = vld [vmem:[%s47 + $0x20] sm:$0xf]
    %v2992 = vld [vmem:[%s47 + $0x24] sm:$0xf]
    %v2993 = vld [vmem:[%s47 + $0x28] sm:$0xf]
    %v2994 = vld [vmem:[%s47 + $0x2c] sm:$0xf]
    %v2995 = vld [vmem:[%s47 + $0x30] sm:$0xf]
    %v2996 = vld [vmem:[%s47 + $0x34] sm:$0xf]
    %v2997 = vld [vmem:[%s47 + $0x38] sm:$0xf]
    %v2998 = vld [vmem:[%s47 + $0x3c] sm:$0xf]
    %v2999 = vld [vmem:[#allocation31] sm:$0x1]
    %v3001 = vlaneseq
    %v3002 = vshrl.u32 %v3001, 7
    %v3003 = vsub.s32 0, %v3002
    %v3004 = vrot.slane %v2999, %v3003
    %v3022 = vunpack.c.l.b16 %v2983
    %v3023 = vunpack.c.l.b16 %v2984
    %v3024 = vunpack.c.l.b16 %v2985
    %v3025 = vunpack.c.l.b16 %v2986
    %v3026 = vunpack.c.l.b16 %v2987
    %v3027 = vunpack.c.l.b16 %v2988
    %v3028 = vunpack.c.l.b16 %v2989
    %v3029 = vunpack.c.l.b16 %v2990
    %v3030 = vunpack.c.l.b16 %v2991
    %v3031 = vunpack.c.l.b16 %v2992
    %v3032 = vunpack.c.l.b16 %v2993
    %v3033 = vunpack.c.l.b16 %v2994
    %v3034 = vunpack.c.l.b16 %v2995
    %v3035 = vunpack.c.l.b16 %v2996
    %v3036 = vunpack.c.l.b16 %v2997
    %v3037 = vunpack.c.l.b16 %v2998
    %v3038 = vpack.c.b16 %v3023, %v3022
    %v3039 = vpack.c.b16 %v3025, %v3024
    %v3040 = vpack.c.b16 %v3027, %v3026
    %v3041 = vpack.c.b16 %v3029, %v3028
    %v3042 = vpack.c.b16 %v3031, %v3030
    %v3043 = vpack.c.b16 %v3033, %v3032
    %v3044 = vpack.c.b16 %v3035, %v3034
    %v3045 = vpack.c.b16 %v3037, %v3036
    %3054 = vmatprep.subr.bf16.mxu0 0
    %3055 = vmatpush1.bf16.msra.mxu0 %v3045
    %3056 = vmatprep.subr.bf16.mxu0 0
    %3057 = vmatpush1.bf16.msra.mxu0 %v3044
    %3058 = vmatprep.subr.bf16.mxu0 0
    %3059 = vmatpush1.bf16.msra.mxu0 %v3043
    %3060 = vmatprep.subr.bf16.mxu0 0
    %3061 = vmatpush1.bf16.msra.mxu0 %v3042
    %3062 = vmatprep.subr.bf16.mxu0 0
    %3063 = vmatpush1.bf16.msra.mxu0 %v3041
    %3064 = vmatprep.subr.bf16.mxu0 0
    %3065 = vmatpush1.bf16.msra.mxu0 %v3040
    %3066 = vmatprep.subr.bf16.mxu0 0
    %3067 = vmatpush1.bf16.msra.mxu0 %v3039
    %3068 = vmatprep.subr.bf16.mxu0 0
    %3069 = vmatpush1.bf16.msra.mxu0 %v3038
    %3070 = vmatprep.subr.bf16.mxu0 0
    %3071 = vmatpush2.bf16.msra.mxu0 0
    %3072 = vmatprep.subr.bf16.mxu0 0
    %3073 = vmatpush2.bf16.msra.mxu0 0
    %3074 = vmatprep.subr.bf16.mxu0 0
    %3075 = vmatpush2.bf16.msra.mxu0 0
    %3076 = vmatprep.subr.bf16.mxu0 0
    %3077 = vmatpush2.bf16.msra.mxu0 0
    %3078 = vmatprep.subr.bf16.mxu0 0
    %3079 = vmatpush2.bf16.msra.mxu0 0
    %3080 = vmatprep.subr.bf16.mxu0 0
    %3081 = vmatpush2.bf16.msra.mxu0 0
    %3082 = vmatprep.subr.bf16.mxu0 0
    %3083 = vmatpush2.bf16.msra.mxu0 0
    %3084 = vmatprep.subr.bf16.mxu0 0
    %3085 = vmatpush2.bf16.msra.mxu0 0
    %3086 = vmatprep.mubr.bf16.mxu0 0
    %3087 = vmatmul.mubr.bf16.gmra.mxu0 %v2982
    %v3088 = vpop.f32.mrf.mxu0
    %v3089 = vadd.f32 %v3004, %v3088
    %v3090 = vpop.f32.mrf.mxu0
    %v3091 = vpop.f32.mrf.mxu0
    %v3092 = vpop.f32.mrf.mxu0
    %3093 = vdwg.mxu0
    %v3094 = vld [vmem:[#allocation33] sm:$0xf]
    %vm3095 = vcmask 31744
    %v3097 = vsel %vm3095, %v3094, 0
    %vm3099 = vcmask 1043456
    %v3101 = vsel %vm3099, %v2906, 0
    %3103 = vmatprep.subr.mxu0 0.0
    %3104 = vmatpush1.msra.mxu0 0.0
    %3105 = vmatprep.subr.mxu0 0.0
    %3106 = vmatpush1.msra.mxu0 0.0
    %3107 = vmatprep.subr.mxu0 0.0
    %3108 = vmatpush1.msra.mxu0 0.0
    %3109 = vmatprep.subr.mxu0 0.0
    %3110 = vmatpush1.msra.mxu0 0.0
    %3111 = vmatprep.subr.mxu0 0.0
    %3112 = vmatpush1.msra.mxu0 0.0
    %3113 = vmatprep.subr.mxu0 0.0
    %3114 = vmatpush1.msra.mxu0 0.0
    %3115 = vmatprep.subr.mxu0 0.0
    %3116 = vmatpush1.msra.mxu0 0.0
    %3117 = vmatprep.subr.mxu0 0.0
    %3118 = vmatpush1.msra.mxu0 0.0
    %3119 = vmatprep.subr.mxu0 0.0
    %3120 = vmatpush1.msra.mxu0 0.0
    %3121 = vmatprep.subr.mxu0 0.0
    %3122 = vmatpush1.msra.mxu0 0.0
    %3123 = vmatprep.subr.mxu0 0.0
    %3124 = vmatpush1.msra.mxu0 0.0
    %3125 = vmatprep.subr.mxu0 0.0
    %3126 = vmatpush1.msra.mxu0 0.0
    %3127 = vmatprep.subr.mxu0 0.0
    %3128 = vmatpush1.msra.mxu0 0.0
    %3129 = vmatprep.subr.mxu0 0.0
    %3130 = vmatpush1.msra.mxu0 0.0
    %3131 = vmatprep.subr.mxu0 0.0
    %3132 = vmatpush1.msra.mxu0 0.0
    %3133 = vmatprep.subr.mxu0 0.0
    %3134 = vmatpush1.msra.mxu0 %v3101
    %3135 = vmatprep.subr.mxu0 0.0
    %3136 = vmatpush2.msra.mxu0 0.0
    %3137 = vmatprep.subr.mxu0 0.0
    %3138 = vmatpush2.msra.mxu0 0.0
    %3139 = vmatprep.subr.mxu0 0.0
    %3140 = vmatpush2.msra.mxu0 0.0
    %3141 = vmatprep.subr.mxu0 0.0
    %3142 = vmatpush2.msra.mxu0 0.0
    %3143 = vmatprep.subr.mxu0 0.0
    %3144 = vmatpush2.msra.mxu0 0.0
    %3145 = vmatprep.subr.mxu0 0.0
    %3146 = vmatpush2.msra.mxu0 0.0
    %3147 = vmatprep.subr.mxu0 0.0
    %3148 = vmatpush2.msra.mxu0 0.0
    %3149 = vmatprep.subr.mxu0 0.0
    %3150 = vmatpush2.msra.mxu0 0.0
    %3151 = vmatprep.subr.mxu0 0.0
    %3152 = vmatpush2.msra.mxu0 0.0
    %3153 = vmatprep.subr.mxu0 0.0
    %3154 = vmatpush2.msra.mxu0 0.0
    %3155 = vmatprep.subr.mxu0 0.0
    %3156 = vmatpush2.msra.mxu0 0.0
    %3157 = vmatprep.subr.mxu0 0.0
    %3158 = vmatpush2.msra.mxu0 0.0
    %3159 = vmatprep.subr.mxu0 0.0
    %3160 = vmatpush2.msra.mxu0 0.0
    %3161 = vmatprep.subr.mxu0 0.0
    %3162 = vmatpush2.msra.mxu0 0.0
    %3163 = vmatprep.subr.mxu0 0.0
    %3164 = vmatpush2.msra.mxu0 0.0
    %3165 = vmatprep.subr.mxu0 0.0
    %3166 = vmatpush2.msra.mxu0 0.0
    %3167 = vmatprep.mubr.f32.mxu0 0.0
    %3168 = vmatmul.mubr.f32.gmra.mxu0 %v3097
    %v3169 = vpop.f32.mrf.mxu0
    %v3170 = vadd.f32 0.0, %v3169
    %v3171 = vpop.f32.mrf.mxu0
    %3172 = vdwg.mxu0
    %v3173 = vpack.c.bf16 %v3170, %v3170
    %v3174 = vld [vmem:[#allocation34] sm:$0xf]
    %v3175 = vld [vmem:[#allocation34 + $0x4] sm:$0xf]
    %v3176 = vld [vmem:[#allocation34 + $0x8] sm:$0xf]
    %v3177 = vld [vmem:[#allocation34 + $0xc] sm:$0xf]
    %v3178 = vld [vmem:[#allocation34 + $0x10] sm:$0xf]
    %v3179 = vld [vmem:[#allocation34 + $0x14] sm:$0xf]
    %v3180 = vld [vmem:[#allocation34 + $0x18] sm:$0xf]
    %v3181 = vld [vmem:[#allocation34 + $0x1c] sm:$0xf]
    %v3182 = vld [vmem:[#allocation34 + $0x20] sm:$0xf]
    %v3183 = vld [vmem:[#allocation34 + $0x24] sm:$0xf]
    %v3184 = vld [vmem:[#allocation34 + $0x28] sm:$0xf]
    %v3185 = vld [vmem:[#allocation34 + $0x2c] sm:$0xf]
    %v3186 = vld [vmem:[#allocation34 + $0x30] sm:$0xf]
    %v3187 = vld [vmem:[#allocation34 + $0x34] sm:$0xf]
    %v3188 = vld [vmem:[#allocation34 + $0x38] sm:$0xf]
    %v3189 = vld [vmem:[#allocation34 + $0x3c] sm:$0xf]
    %s3190 = scalar_lea.vmem [#allocation33], 4
    %v3191 = vld [vmem:[%s3190] sm:$0xf]
    %v3193 = vsel %vm3095, %v3191, 0
    %3195 = vmatprep.subr.mxu0 0.0
    %3196 = vmatpush1.msra.mxu0 0.0
    %3197 = vmatprep.subr.mxu0 0.0
    %3198 = vmatpush1.msra.mxu0 0.0
    %3199 = vmatprep.subr.mxu0 0.0
    %3200 = vmatpush1.msra.mxu0 0.0
    %3201 = vmatprep.subr.mxu0 0.0
    %3202 = vmatpush1.msra.mxu0 0.0
    %3203 = vmatprep.subr.mxu0 0.0
    %3204 = vmatpush1.msra.mxu0 0.0
    %3205 = vmatprep.subr.mxu0 0.0
    %3206 = vmatpush1.msra.mxu0 0.0
    %3207 = vmatprep.subr.mxu0 0.0
    %3208 = vmatpush1.msra.mxu0 0.0
    %3209 = vmatprep.subr.mxu0 0.0
    %3210 = vmatpush1.msra.mxu0 0.0
    %3211 = vmatprep.subr.mxu0 0.0
    %3212 = vmatpush1.msra.mxu0 0.0
    %3213 = vmatprep.subr.mxu0 0.0
    %3214 = vmatpush1.msra.mxu0 0.0
    %3215 = vmatprep.subr.mxu0 0.0
    %3216 = vmatpush1.msra.mxu0 0.0
    %3217 = vmatprep.subr.mxu0 0.0
    %3218 = vmatpush1.msra.mxu0 0.0
    %3219 = vmatprep.subr.mxu0 0.0
    %3220 = vmatpush1.msra.mxu0 0.0
    %3221 = vmatprep.subr.mxu0 0.0
    %3222 = vmatpush1.msra.mxu0 0.0
    %3223 = vmatprep.subr.mxu0 0.0
    %3224 = vmatpush1.msra.mxu0 0.0
    %3225 = vmatprep.subr.mxu0 0.0
    %3226 = vmatpush1.msra.mxu0 %v3101
    %3227 = vmatprep.subr.mxu0 0.0
    %3228 = vmatpush2.msra.mxu0 0.0
    %3229 = vmatprep.subr.mxu0 0.0
    %3230 = vmatpush2.msra.mxu0 0.0
    %3231 = vmatprep.subr.mxu0 0.0
    %3232 = vmatpush2.msra.mxu0 0.0
    %3233 = vmatprep.subr.mxu0 0.0
    %3234 = vmatpush2.msra.mxu0 0.0
    %3235 = vmatprep.subr.mxu0 0.0
    %3236 = vmatpush2.msra.mxu0 0.0
    %3237 = vmatprep.subr.mxu0 0.0
    %3238 = vmatpush2.msra.mxu0 0.0
    %3239 = vmatprep.subr.mxu0 0.0
    %3240 = vmatpush2.msra.mxu0 0.0
    %3241 = vmatprep.subr.mxu0 0.0
    %3242 = vmatpush2.msra.mxu0 0.0
    %3243 = vmatprep.subr.mxu0 0.0
    %3244 = vmatpush2.msra.mxu0 0.0
    %3245 = vmatprep.subr.mxu0 0.0
    %3246 = vmatpush2.msra.mxu0 0.0
    %3247 = vmatprep.subr.mxu0 0.0
    %3248 = vmatpush2.msra.mxu0 0.0
    %3249 = vmatprep.subr.mxu0 0.0
    %3250 = vmatpush2.msra.mxu0 0.0
    %3251 = vmatprep.subr.mxu0 0.0
    %3252 = vmatpush2.msra.mxu0 0.0
    %3253 = vmatprep.subr.mxu0 0.0
    %3254 = vmatpush2.msra.mxu0 0.0
    %3255 = vmatprep.subr.mxu0 0.0
    %3256 = vmatpush2.msra.mxu0 0.0
    %3257 = vmatprep.subr.mxu0 0.0
    %3258 = vmatpush2.msra.mxu0 0.0
    %3259 = vmatprep.mubr.f32.mxu0 0.0
    %3260 = vmatmul.mubr.f32.gmra.mxu0 %v3193
    %v3261 = vpop.f32.mrf.mxu0
    %v3262 = vadd.f32 0.0, %v3261
    %v3263 = vpop.f32.mrf.mxu0
    %3264 = vdwg.mxu0
    %v3265 = vpack.c.bf16 %v3262, %v3262
    %s3266 = scalar_lea.vmem [#allocation34], 64
    %v3267 = vld [vmem:[%s3266] sm:$0xf]
    %v3268 = vld [vmem:[%s3266 + $0x4] sm:$0xf]
    %v3269 = vld [vmem:[%s3266 + $0x8] sm:$0xf]
    %v3270 = vld [vmem:[%s3266 + $0xc] sm:$0xf]
    %v3271 = vld [vmem:[%s3266 + $0x10] sm:$0xf]
    %v3272 = vld [vmem:[%s3266 + $0x14] sm:$0xf]
    %v3273 = vld [vmem:[%s3266 + $0x18] sm:$0xf]
    %v3274 = vld [vmem:[%s3266 + $0x1c] sm:$0xf]
    %v3275 = vld [vmem:[%s3266 + $0x20] sm:$0xf]
    %v3276 = vld [vmem:[%s3266 + $0x24] sm:$0xf]
    %v3277 = vld [vmem:[%s3266 + $0x28] sm:$0xf]
    %v3278 = vld [vmem:[%s3266 + $0x2c] sm:$0xf]
    %v3279 = vld [vmem:[%s3266 + $0x30] sm:$0xf]
    %v3280 = vld [vmem:[%s3266 + $0x34] sm:$0xf]
    %v3281 = vld [vmem:[%s3266 + $0x38] sm:$0xf]
    %v3282 = vld [vmem:[%s3266 + $0x3c] sm:$0xf]
    %v3299 = vunpack.c.l.b16 %v3267
    %v3300 = vunpack.c.l.b16 %v3268
    %v3301 = vunpack.c.l.b16 %v3269
    %v3302 = vunpack.c.l.b16 %v3270
    %v3303 = vunpack.c.l.b16 %v3271
    %v3304 = vunpack.c.l.b16 %v3272
    %v3305 = vunpack.c.l.b16 %v3273
    %v3306 = vunpack.c.l.b16 %v3274
    %v3307 = vunpack.c.l.b16 %v3275
    %v3308 = vunpack.c.l.b16 %v3276
    %v3309 = vunpack.c.l.b16 %v3277
    %v3310 = vunpack.c.l.b16 %v3278
    %v3311 = vunpack.c.l.b16 %v3279
    %v3312 = vunpack.c.l.b16 %v3280
    %v3313 = vunpack.c.l.b16 %v3281
    %v3314 = vunpack.c.l.b16 %v3282
    %v3315 = vpack.c.b16 %v3300, %v3299
    %v3316 = vpack.c.b16 %v3302, %v3301
    %v3317 = vpack.c.b16 %v3304, %v3303
    %v3318 = vpack.c.b16 %v3306, %v3305
    %v3319 = vpack.c.b16 %v3308, %v3307
    %v3320 = vpack.c.b16 %v3310, %v3309
    %v3321 = vpack.c.b16 %v3312, %v3311
    %v3322 = vpack.c.b16 %v3314, %v3313
    %3331 = vmatprep.subr.bf16.mxu0 0
    %3332 = vmatpush1.bf16.msra.mxu0 %v3322
    %3333 = vmatprep.subr.bf16.mxu0 0
    %3334 = vmatpush1.bf16.msra.mxu0 %v3321
    %3335 = vmatprep.subr.bf16.mxu0 0
    %3336 = vmatpush1.bf16.msra.mxu0 %v3320
    %3337 = vmatprep.subr.bf16.mxu0 0
    %3338 = vmatpush1.bf16.msra.mxu0 %v3319
    %3339 = vmatprep.subr.bf16.mxu0 0
    %3340 = vmatpush1.bf16.msra.mxu0 %v3318
    %3341 = vmatprep.subr.bf16.mxu0 0
    %3342 = vmatpush1.bf16.msra.mxu0 %v3317
    %3343 = vmatprep.subr.bf16.mxu0 0
    %3344 = vmatpush1.bf16.msra.mxu0 %v3316
    %3345 = vmatprep.subr.bf16.mxu0 0
    %3346 = vmatpush1.bf16.msra.mxu0 %v3315
    %3347 = vmatprep.subr.bf16.mxu0 0
    %3348 = vmatpush2.bf16.msra.mxu0 0
    %3349 = vmatprep.subr.bf16.mxu0 0
    %3350 = vmatpush2.bf16.msra.mxu0 0
    %3351 = vmatprep.subr.bf16.mxu0 0
    %3352 = vmatpush2.bf16.msra.mxu0 0
    %3353 = vmatprep.subr.bf16.mxu0 0
    %3354 = vmatpush2.bf16.msra.mxu0 0
    %3355 = vmatprep.subr.bf16.mxu0 0
    %3356 = vmatpush2.bf16.msra.mxu0 0
    %3357 = vmatprep.subr.bf16.mxu0 0
    %3358 = vmatpush2.bf16.msra.mxu0 0
    %3359 = vmatprep.subr.bf16.mxu0 0
    %3360 = vmatpush2.bf16.msra.mxu0 0
    %3361 = vmatprep.subr.bf16.mxu0 0
    %3362 = vmatpush2.bf16.msra.mxu0 0
    %3363 = vmatprep.mubr.bf16.mxu0 0
    %3364 = vmatmul.mubr.bf16.gmra.mxu0 %v3265
    %v3365 = vpop.f32.mrf.mxu0
    %v3366 = vadd.f32 0.0, %v3365
    %v3367 = vpop.f32.mrf.mxu0
    %v3368 = vpop.f32.mrf.mxu0
    %v3369 = vpop.f32.mrf.mxu0
    %3370 = vdwg.mxu0
    %v3387 = vunpack.c.l.b16 %v3174
    %v3388 = vunpack.c.l.b16 %v3175
    %v3389 = vunpack.c.l.b16 %v3176
    %v3390 = vunpack.c.l.b16 %v3177
    %v3391 = vunpack.c.l.b16 %v3178
    %v3392 = vunpack.c.l.b16 %v3179
    %v3393 = vunpack.c.l.b16 %v3180
    %v3394 = vunpack.c.l.b16 %v3181
    %v3395 = vunpack.c.l.b16 %v3182
    %v3396 = vunpack.c.l.b16 %v3183
    %v3397 = vunpack.c.l.b16 %v3184
    %v3398 = vunpack.c.l.b16 %v3185
    %v3399 = vunpack.c.l.b16 %v3186
    %v3400 = vunpack.c.l.b16 %v3187
    %v3401 = vunpack.c.l.b16 %v3188
    %v3402 = vunpack.c.l.b16 %v3189
    %v3403 = vpack.c.b16 %v3388, %v3387
    %v3404 = vpack.c.b16 %v3390, %v3389
    %v3405 = vpack.c.b16 %v3392, %v3391
    %v3406 = vpack.c.b16 %v3394, %v3393
    %v3407 = vpack.c.b16 %v3396, %v3395
    %v3408 = vpack.c.b16 %v3398, %v3397
    %v3409 = vpack.c.b16 %v3400, %v3399
    %v3410 = vpack.c.b16 %v3402, %v3401
    %3419 = vmatprep.subr.bf16.mxu0 0
    %3420 = vmatpush1.bf16.msra.mxu0 %v3410
    %3421 = vmatprep.subr.bf16.mxu0 0
    %3422 = vmatpush1.bf16.msra.mxu0 %v3409
    %3423 = vmatprep.subr.bf16.mxu0 0
    %3424 = vmatpush1.bf16.msra.mxu0 %v3408
    %3425 = vmatprep.subr.bf16.mxu0 0
    %3426 = vmatpush1.bf16.msra.mxu0 %v3407
    %3427 = vmatprep.subr.bf16.mxu0 0
    %3428 = vmatpush1.bf16.msra.mxu0 %v3406
    %3429 = vmatprep.subr.bf16.mxu0 0
    %3430 = vmatpush1.bf16.msra.mxu0 %v3405
    %3431 = vmatprep.subr.bf16.mxu0 0
    %3432 = vmatpush1.bf16.msra.mxu0 %v3404
    %3433 = vmatprep.subr.bf16.mxu0 0
    %3434 = vmatpush1.bf16.msra.mxu0 %v3403
    %3435 = vmatprep.subr.bf16.mxu0 0
    %3436 = vmatpush2.bf16.msra.mxu0 0
    %3437 = vmatprep.subr.bf16.mxu0 0
    %3438 = vmatpush2.bf16.msra.mxu0 0
    %3439 = vmatprep.subr.bf16.mxu0 0
    %3440 = vmatpush2.bf16.msra.mxu0 0
    %3441 = vmatprep.subr.bf16.mxu0 0
    %3442 = vmatpush2.bf16.msra.mxu0 0
    %3443 = vmatprep.subr.bf16.mxu0 0
    %3444 = vmatpush2.bf16.msra.mxu0 0
    %3445 = vmatprep.subr.bf16.mxu0 0
    %3446 = vmatpush2.bf16.msra.mxu0 0
    %3447 = vmatprep.subr.bf16.mxu0 0
    %3448 = vmatpush2.bf16.msra.mxu0 0
    %3449 = vmatprep.subr.bf16.mxu0 0
    %3450 = vmatpush2.bf16.msra.mxu0 0
    %3451 = vmatprep.mubr.bf16.mxu0 0
    %3452 = vmatmul.mubr.bf16.gmra.mxu0 %v3173
    %v3453 = vpop.f32.mrf.mxu0
    %v3454 = vadd.f32 %v3366, %v3453
    %v3455 = vpop.f32.mrf.mxu0
    %v3456 = vpop.f32.mrf.mxu0
    %v3457 = vpop.f32.mrf.mxu0
    %3458 = vdwg.mxu0
    %s3459 = scalar_lea.vmem [#allocation33], 8
    %v3460 = vld [vmem:[%s3459] sm:$0xf]
    %v3462 = vsel %vm3095, %v3460, 0
    %3464 = vmatprep.subr.mxu0 0.0
    %3465 = vmatpush1.msra.mxu0 0.0
    %3466 = vmatprep.subr.mxu0 0.0
    %3467 = vmatpush1.msra.mxu0 0.0
    %3468 = vmatprep.subr.mxu0 0.0
    %3469 = vmatpush1.msra.mxu0 0.0
    %3470 = vmatprep.subr.mxu0 0.0
    %3471 = vmatpush1.msra.mxu0 0.0
    %3472 = vmatprep.subr.mxu0 0.0
    %3473 = vmatpush1.msra.mxu0 0.0
    %3474 = vmatprep.subr.mxu0 0.0
    %3475 = vmatpush1.msra.mxu0 0.0
    %3476 = vmatprep.subr.mxu0 0.0
    %3477 = vmatpush1.msra.mxu0 0.0
    %3478 = vmatprep.subr.mxu0 0.0
    %3479 = vmatpush1.msra.mxu0 0.0
    %3480 = vmatprep.subr.mxu0 0.0
    %3481 = vmatpush1.msra.mxu0 0.0
    %3482 = vmatprep.subr.mxu0 0.0
    %3483 = vmatpush1.msra.mxu0 0.0
    %3484 = vmatprep.subr.mxu0 0.0
    %3485 = vmatpush1.msra.mxu0 0.0
    %3486 = vmatprep.subr.mxu0 0.0
    %3487 = vmatpush1.msra.mxu0 0.0
    %3488 = vmatprep.subr.mxu0 0.0
    %3489 = vmatpush1.msra.mxu0 0.0
    %3490 = vmatprep.subr.mxu0 0.0
    %3491 = vmatpush1.msra.mxu0 0.0
    %3492 = vmatprep.subr.mxu0 0.0
    %3493 = vmatpush1.msra.mxu0 0.0
    %3494 = vmatprep.subr.mxu0 0.0
    %3495 = vmatpush1.msra.mxu0 %v3101
    %3496 = vmatprep.subr.mxu0 0.0
    %3497 = vmatpush2.msra.mxu0 0.0
    %3498 = vmatprep.subr.mxu0 0.0
    %3499 = vmatpush2.msra.mxu0 0.0
    %3500 = vmatprep.subr.mxu0 0.0
    %3501 = vmatpush2.msra.mxu0 0.0
    %3502 = vmatprep.subr.mxu0 0.0
    %3503 = vmatpush2.msra.mxu0 0.0
    %3504 = vmatprep.subr.mxu0 0.0
    %3505 = vmatpush2.msra.mxu0 0.0
    %3506 = vmatprep.subr.mxu0 0.0
    %3507 = vmatpush2.msra.mxu0 0.0
    %3508 = vmatprep.subr.mxu0 0.0
    %3509 = vmatpush2.msra.mxu0 0.0
    %3510 = vmatprep.subr.mxu0 0.0
    %3511 = vmatpush2.msra.mxu0 0.0
    %3512 = vmatprep.subr.mxu0 0.0
    %3513 = vmatpush2.msra.mxu0 0.0
    %3514 = vmatprep.subr.mxu0 0.0
    %3515 = vmatpush2.msra.mxu0 0.0
    %3516 = vmatprep.subr.mxu0 0.0
    %3517 = vmatpush2.msra.mxu0 0.0
    %3518 = vmatprep.subr.mxu0 0.0
    %3519 = vmatpush2.msra.mxu0 0.0
    %3520 = vmatprep.subr.mxu0 0.0
    %3521 = vmatpush2.msra.mxu0 0.0
    %3522 = vmatprep.subr.mxu0 0.0
    %3523 = vmatpush2.msra.mxu0 0.0
    %3524 = vmatprep.subr.mxu0 0.0
    %3525 = vmatpush2.msra.mxu0 0.0
    %3526 = vmatprep.subr.mxu0 0.0
    %3527 = vmatpush2.msra.mxu0 0.0
    %3528 = vmatprep.mubr.f32.mxu0 0.0
    %3529 = vmatmul.mubr.f32.gmra.mxu0 %v3462
    %v3530 = vpop.f32.mrf.mxu0
    %v3531 = vadd.f32 0.0, %v3530
    %v3532 = vpop.f32.mrf.mxu0
    %3533 = vdwg.mxu0
    %v3534 = vpack.c.bf16 %v3531, %v3531
    %s3535 = scalar_lea.vmem [#allocation34], 128
    %v3536 = vld [vmem:[%s3535] sm:$0xf]
    %v3537 = vld [vmem:[%s3535 + $0x4] sm:$0xf]
    %v3538 = vld [vmem:[%s3535 + $0x8] sm:$0xf]
    %v3539 = vld [vmem:[%s3535 + $0xc] sm:$0xf]
    %v3540 = vld [vmem:[%s3535 + $0x10] sm:$0xf]
    %v3541 = vld [vmem:[%s3535 + $0x14] sm:$0xf]
    %v3542 = vld [vmem:[%s3535 + $0x18] sm:$0xf]
    %v3543 = vld [vmem:[%s3535 + $0x1c] sm:$0xf]
    %v3544 = vld [vmem:[%s3535 + $0x20] sm:$0xf]
    %v3545 = vld [vmem:[%s3535 + $0x24] sm:$0xf]
    %v3546 = vld [vmem:[%s3535 + $0x28] sm:$0xf]
    %v3547 = vld [vmem:[%s3535 + $0x2c] sm:$0xf]
    %v3548 = vld [vmem:[%s3535 + $0x30] sm:$0xf]
    %v3549 = vld [vmem:[%s3535 + $0x34] sm:$0xf]
    %v3550 = vld [vmem:[%s3535 + $0x38] sm:$0xf]
    %v3551 = vld [vmem:[%s3535 + $0x3c] sm:$0xf]
    %v3568 = vunpack.c.l.b16 %v3536
    %v3569 = vunpack.c.l.b16 %v3537
    %v3570 = vunpack.c.l.b16 %v3538
    %v3571 = vunpack.c.l.b16 %v3539
    %v3572 = vunpack.c.l.b16 %v3540
    %v3573 = vunpack.c.l.b16 %v3541
    %v3574 = vunpack.c.l.b16 %v3542
    %v3575 = vunpack.c.l.b16 %v3543
    %v3576 = vunpack.c.l.b16 %v3544
    %v3577 = vunpack.c.l.b16 %v3545
    %v3578 = vunpack.c.l.b16 %v3546
    %v3579 = vunpack.c.l.b16 %v3547
    %v3580 = vunpack.c.l.b16 %v3548
    %v3581 = vunpack.c.l.b16 %v3549
    %v3582 = vunpack.c.l.b16 %v3550
    %v3583 = vunpack.c.l.b16 %v3551
    %v3584 = vpack.c.b16 %v3569, %v3568
    %v3585 = vpack.c.b16 %v3571, %v3570
    %v3586 = vpack.c.b16 %v3573, %v3572
    %v3587 = vpack.c.b16 %v3575, %v3574
    %v3588 = vpack.c.b16 %v3577, %v3576
    %v3589 = vpack.c.b16 %v3579, %v3578
    %v3590 = vpack.c.b16 %v3581, %v3580
    %v3591 = vpack.c.b16 %v3583, %v3582
    %3600 = vmatprep.subr.bf16.mxu0 0
    %3601 = vmatpush1.bf16.msra.mxu0 %v3591
    %3602 = vmatprep.subr.bf16.mxu0 0
    %3603 = vmatpush1.bf16.msra.mxu0 %v3590
    %3604 = vmatprep.subr.bf16.mxu0 0
    %3605 = vmatpush1.bf16.msra.mxu0 %v3589
    %3606 = vmatprep.subr.bf16.mxu0 0
    %3607 = vmatpush1.bf16.msra.mxu0 %v3588
    %3608 = vmatprep.subr.bf16.mxu0 0
    %3609 = vmatpush1.bf16.msra.mxu0 %v3587
    %3610 = vmatprep.subr.bf16.mxu0 0
    %3611 = vmatpush1.bf16.msra.mxu0 %v3586
    %3612 = vmatprep.subr.bf16.mxu0 0
    %3613 = vmatpush1.bf16.msra.mxu0 %v3585
    %3614 = vmatprep.subr.bf16.mxu0 0
    %3615 = vmatpush1.bf16.msra.mxu0 %v3584
    %3616 = vmatprep.subr.bf16.mxu0 0
    %3617 = vmatpush2.bf16.msra.mxu0 0
    %3618 = vmatprep.subr.bf16.mxu0 0
    %3619 = vmatpush2.bf16.msra.mxu0 0
    %3620 = vmatprep.subr.bf16.mxu0 0
    %3621 = vmatpush2.bf16.msra.mxu0 0
    %3622 = vmatprep.subr.bf16.mxu0 0
    %3623 = vmatpush2.bf16.msra.mxu0 0
    %3624 = vmatprep.subr.bf16.mxu0 0
    %3625 = vmatpush2.bf16.msra.mxu0 0
    %3626 = vmatprep.subr.bf16.mxu0 0
    %3627 = vmatpush2.bf16.msra.mxu0 0
    %3628 = vmatprep.subr.bf16.mxu0 0
    %3629 = vmatpush2.bf16.msra.mxu0 0
    %3630 = vmatprep.subr.bf16.mxu0 0
    %3631 = vmatpush2.bf16.msra.mxu0 0
    %3632 = vmatprep.mubr.bf16.mxu0 0
    %3633 = vmatmul.mubr.bf16.gmra.mxu0 %v3534
    %v3634 = vpop.f32.mrf.mxu0
    %v3635 = vadd.f32 0.0, %v3634
    %v3636 = vpop.f32.mrf.mxu0
    %v3637 = vpop.f32.mrf.mxu0
    %v3638 = vpop.f32.mrf.mxu0
    %3639 = vdwg.mxu0
    %v3640 = vadd.f32 %v3454, %v3635
    %v3641 = vld [vmem:[#allocation36] sm:$0x1]
    %v3643 = vlaneseq
    %v3644 = vshrl.u32 %v3643, 7
    %v3645 = vsub.s32 0, %v3644
    %v3646 = vrot.slane %v3641, %v3645
    %v3648 = vadd.f32 %v3640, %v3646
    %v3649 = vadd.f32 %v3648, %v3089
    %v3650 = vmax.f32 %v3649, 0.0
    %v3651 = vpack.c.bf16 %v3650, %v3650
    %v3652 = vld [vmem:[%s57] sm:$0xf]
    %v3653 = vld [vmem:[%s57 + $0x4] sm:$0xf]
    %v3654 = vld [vmem:[%s57 + $0x8] sm:$0xf]
    %v3655 = vld [vmem:[%s57 + $0xc] sm:$0xf]
    %v3656 = vld [vmem:[%s57 + $0x10] sm:$0xf]
    %v3657 = vld [vmem:[%s57 + $0x14] sm:$0xf]
    %v3658 = vld [vmem:[%s57 + $0x18] sm:$0xf]
    %v3659 = vld [vmem:[%s57 + $0x1c] sm:$0xf]
    %v3660 = vld [vmem:[%s57 + $0x20] sm:$0xf]
    %v3661 = vld [vmem:[%s57 + $0x24] sm:$0xf]
    %v3662 = vld [vmem:[%s57 + $0x28] sm:$0xf]
    %v3663 = vld [vmem:[%s57 + $0x2c] sm:$0xf]
    %v3664 = vld [vmem:[%s57 + $0x30] sm:$0xf]
    %v3665 = vld [vmem:[%s57 + $0x34] sm:$0xf]
    %v3666 = vld [vmem:[%s57 + $0x38] sm:$0xf]
    %v3667 = vld [vmem:[%s57 + $0x3c] sm:$0xf]
    %v3684 = vunpack.c.l.b16 %v3652
    %v3685 = vunpack.c.l.b16 %v3653
    %v3686 = vunpack.c.l.b16 %v3654
    %v3687 = vunpack.c.l.b16 %v3655
    %v3688 = vunpack.c.l.b16 %v3656
    %v3689 = vunpack.c.l.b16 %v3657
    %v3690 = vunpack.c.l.b16 %v3658
    %v3691 = vunpack.c.l.b16 %v3659
    %v3692 = vunpack.c.l.b16 %v3660
    %v3693 = vunpack.c.l.b16 %v3661
    %v3694 = vunpack.c.l.b16 %v3662
    %v3695 = vunpack.c.l.b16 %v3663
    %v3696 = vunpack.c.l.b16 %v3664
    %v3697 = vunpack.c.l.b16 %v3665
    %v3698 = vunpack.c.l.b16 %v3666
    %v3699 = vunpack.c.l.b16 %v3667
    %v3700 = vpack.c.b16 %v3685, %v3684
    %v3701 = vpack.c.b16 %v3687, %v3686
    %v3702 = vpack.c.b16 %v3689, %v3688
    %v3703 = vpack.c.b16 %v3691, %v3690
    %v3704 = vpack.c.b16 %v3693, %v3692
    %v3705 = vpack.c.b16 %v3695, %v3694
    %v3706 = vpack.c.b16 %v3697, %v3696
    %v3707 = vpack.c.b16 %v3699, %v3698
    %3716 = vmatprep.subr.bf16.mxu0 0
    %3717 = vmatpush1.bf16.msra.mxu0 %v3707
    %3718 = vmatprep.subr.bf16.mxu0 0
    %3719 = vmatpush1.bf16.msra.mxu0 %v3706
    %3720 = vmatprep.subr.bf16.mxu0 0
    %3721 = vmatpush1.bf16.msra.mxu0 %v3705
    %3722 = vmatprep.subr.bf16.mxu0 0
    %3723 = vmatpush1.bf16.msra.mxu0 %v3704
    %3724 = vmatprep.subr.bf16.mxu0 0
    %3725 = vmatpush1.bf16.msra.mxu0 %v3703
    %3726 = vmatprep.subr.bf16.mxu0 0
    %3727 = vmatpush1.bf16.msra.mxu0 %v3702
    %3728 = vmatprep.subr.bf16.mxu0 0
    %3729 = vmatpush1.bf16.msra.mxu0 %v3701
    %3730 = vmatprep.subr.bf16.mxu0 0
    %3731 = vmatpush1.bf16.msra.mxu0 %v3700
    %3732 = vmatprep.subr.bf16.mxu0 0
    %3733 = vmatpush2.bf16.msra.mxu0 0
    %3734 = vmatprep.subr.bf16.mxu0 0
    %3735 = vmatpush2.bf16.msra.mxu0 0
    %3736 = vmatprep.subr.bf16.mxu0 0
    %3737 = vmatpush2.bf16.msra.mxu0 0
    %3738 = vmatprep.subr.bf16.mxu0 0
    %3739 = vmatpush2.bf16.msra.mxu0 0
    %3740 = vmatprep.subr.bf16.mxu0 0
    %3741 = vmatpush2.bf16.msra.mxu0 0
    %3742 = vmatprep.subr.bf16.mxu0 0
    %3743 = vmatpush2.bf16.msra.mxu0 0
    %3744 = vmatprep.subr.bf16.mxu0 0
    %3745 = vmatpush2.bf16.msra.mxu0 0
    %3746 = vmatprep.subr.bf16.mxu0 0
    %3747 = vmatpush2.bf16.msra.mxu0 0
    %3748 = vmatprep.mubr.bf16.mxu0 0
    %3749 = vmatmul.mubr.bf16.gmra.mxu0 %v3651
    %v3750 = vpop.f32.mrf.mxu0
    %v3751 = vadd.f32 0.0, %v3750
    %v3752 = vpop.f32.mrf.mxu0
    %v3753 = vpop.f32.mrf.mxu0
    %v3754 = vpop.f32.mrf.mxu0
    %3755 = vdwg.mxu0
    %v3756 = vsub.f32 0.0, %v3751
    %v3757 = vmul.f32 %v3756, 1.442695
    %v3758 = vpow.pop %v3757
    %v3759 = vadd.f32 %v3758, 1.0
    %v3760 = vrcp.pop %v3759
    %v3761 = vmul.f32 1.0, %v3760
    %vm3762 = vcmask 60416
    %3763 = vst.msk [vmem:[%s65] sm:$0xf] %vm3762, %v3761
    %v3764 = vsel %vm3099, %v3650, 0.0
    %v3765 = vrot.slane %v3764, 4
    %v3766 = vadd.f32 %v3764, %v3765
    %v3767 = vrot.slane %v3766, 2
    %v3768 = vadd.f32 %v3766, %v3767
    %v3769 = vrot.slane %v3768, 1
    %v3770 = vadd.f32 %v3768, %v3769
    %v3771 = vld [vmem:[%s59] sm:$0xff]
    %v3772 = vld [vmem:[%s59 + $0x8] sm:$0xff]
    %v3773 = vld [vmem:[%s59 + $0x10] sm:$0xff]
    %v3774 = vld [vmem:[%s59 + $0x18] sm:$0xff]
    %v3775 = vld [vmem:[%s59 + $0x20] sm:$0xff]
    %v3776 = vld [vmem:[%s59 + $0x28] sm:$0xff]
    %v3777 = vld [vmem:[%s59 + $0x30] sm:$0xff]
    %v3778 = vld [vmem:[%s59 + $0x38] sm:$0xff]
    %v3779 = vld [vmem:[%s59 + $0x40] sm:$0xff]
    %v3780 = vld [vmem:[%s59 + $0x48] sm:$0xff]
    %v3781 = vld [vmem:[%s59 + $0x50] sm:$0xff]
    %v3782 = vld [vmem:[%s59 + $0x58] sm:$0xff]
    %v3783 = vld [vmem:[%s59 + $0x60] sm:$0xff]
    %v3784 = vld [vmem:[%s59 + $0x68] sm:$0xff]
    %v3785 = vld [vmem:[%s59 + $0x70] sm:$0xff]
    %v3786 = vld [vmem:[%s59 + $0x78] sm:$0xff]
    %v3787 = vld [vmem:[#allocation37] sm:$0x1]
    %3788 = vmatprep.subr.mxu0 0.0
    %3789 = vmatpush1.msra.mxu0 %v3786
    %3790 = vmatprep.subr.mxu0 0.0
    %3791 = vmatpush1.msra.mxu0 %v3785
    %3792 = vmatprep.subr.mxu0 0.0
    %3793 = vmatpush1.msra.mxu0 %v3784
    %3794 = vmatprep.subr.mxu0 0.0
    %3795 = vmatpush1.msra.mxu0 %v3783
    %3796 = vmatprep.subr.mxu0 0.0
    %3797 = vmatpush1.msra.mxu0 %v3782
    %3798 = vmatprep.subr.mxu0 0.0
    %3799 = vmatpush1.msra.mxu0 %v3781
    %3800 = vmatprep.subr.mxu0 0.0
    %3801 = vmatpush1.msra.mxu0 %v3780
    %3802 = vmatprep.subr.mxu0 0.0
    %3803 = vmatpush1.msra.mxu0 %v3779
    %3804 = vmatprep.subr.mxu0 0.0
    %3805 = vmatpush1.msra.mxu0 %v3778
    %3806 = vmatprep.subr.mxu0 0.0
    %3807 = vmatpush1.msra.mxu0 %v3777
    %3808 = vmatprep.subr.mxu0 0.0
    %3809 = vmatpush1.msra.mxu0 %v3776
    %3810 = vmatprep.subr.mxu0 0.0
    %3811 = vmatpush1.msra.mxu0 %v3775
    %3812 = vmatprep.subr.mxu0 0.0
    %3813 = vmatpush1.msra.mxu0 %v3774
    %3814 = vmatprep.subr.mxu0 0.0
    %3815 = vmatpush1.msra.mxu0 %v3773
    %3816 = vmatprep.subr.mxu0 0.0
    %3817 = vmatpush1.msra.mxu0 %v3772
    %3818 = vmatprep.subr.mxu0 0.0
    %3819 = vmatpush1.msra.mxu0 %v3771
    %3820 = vmatprep.subr.mxu0 0.0
    %3821 = vmatpush2.msra.mxu0 0.0
    %3822 = vmatprep.subr.mxu0 0.0
    %3823 = vmatpush2.msra.mxu0 0.0
    %3824 = vmatprep.subr.mxu0 0.0
    %3825 = vmatpush2.msra.mxu0 0.0
    %3826 = vmatprep.subr.mxu0 0.0
    %3827 = vmatpush2.msra.mxu0 0.0
    %3828 = vmatprep.subr.mxu0 0.0
    %3829 = vmatpush2.msra.mxu0 0.0
    %3830 = vmatprep.subr.mxu0 0.0
    %3831 = vmatpush2.msra.mxu0 0.0
    %3832 = vmatprep.subr.mxu0 0.0
    %3833 = vmatpush2.msra.mxu0 0.0
    %3834 = vmatprep.subr.mxu0 0.0
    %3835 = vmatpush2.msra.mxu0 0.0
    %3836 = vmatprep.subr.mxu0 0.0
    %3837 = vmatpush2.msra.mxu0 0.0
    %3838 = vmatprep.subr.mxu0 0.0
    %3839 = vmatpush2.msra.mxu0 0.0
    %3840 = vmatprep.subr.mxu0 0.0
    %3841 = vmatpush2.msra.mxu0 0.0
    %3842 = vmatprep.subr.mxu0 0.0
    %3843 = vmatpush2.msra.mxu0 0.0
    %3844 = vmatprep.subr.mxu0 0.0
    %3845 = vmatpush2.msra.mxu0 0.0
    %3846 = vmatprep.subr.mxu0 0.0
    %3847 = vmatpush2.msra.mxu0 0.0
    %3848 = vmatprep.subr.mxu0 0.0
    %3849 = vmatpush2.msra.mxu0 0.0
    %3850 = vmatprep.subr.mxu0 0.0
    %3851 = vmatpush2.msra.mxu0 0.0
    %3852 = vmatprep.mubr.f32.mxu0 0.0
    %3853 = vmatmul.mubr.f32.gmra.mxu0 %v3770
    %v3854 = vpop.f32.mrf.mxu0
    %v3855 = vadd.f32 %v3787, %v3854
    %v3856 = vpop.f32.mrf.mxu0
    %3857 = vdwg.mxu0
    %vm3858 = vcmask 24576
    %3859 = vst.msk [vmem:[%s63] sm:$0x1] %vm3858, %v3855
    // Predicated region
    $region222: #{fwd.1} parent=1 // pred_check
      _
    $region223: #{fwd.1} parent=1 // pred_check_branch
      %3861 = sbr.rel (0) target = $region225
    $region224: #{fwd.1} parent=1 // pred_region
      _
    $region225: #{fwd.1} parent=1 // pred_fallthru
      _
    // Predicated region
    $region226: #{fwd.1} parent=1 // pred_check
      _
    $region227: #{fwd.1} parent=1 // pred_check_branch
      %3863 = sbr.rel (0) target = $region229
    $region228: #{fwd.1} parent=1 // pred_region
      _
    $region229: #{fwd.1} parent=1 // pred_fallthru
      _
    // Predicated region
    $region230: #{fwd.1} parent=1 // pred_check
      _
    $region231: #{fwd.1} parent=1 // pred_check_branch
      %3865 = sbr.rel (0) target = $region233
    $region232: #{fwd.1} parent=1 // pred_region
      _
    $region233: #{fwd.1} parent=1 // pred_fallthru
      _
    // Predicated region
    $region234: #{fwd.1} parent=1 // pred_check
      _
    $region235: #{fwd.1} parent=1 // pred_check_branch
      %3867 = sbr.rel (0) target = $region237
    $region236: #{fwd.1} parent=1 // pred_region
      _
    $region237: #{fwd.1} parent=1 // pred_fallthru
      _
    %3868 = vsyncpa [#allocation3], 1
    %3869 = vsyncpa [#allocation5], 1
    %3870 = vsyncpa [#allocation8], 1
    %3871 = vsyncpa [#allocation11], 1
    %3872 = vsyncpa [#allocation14], 1
    %3873 = vsyncpa [#allocation17], 1
    %3874 = vsyncpa [#allocation20], 1
    %3875 = vsyncpa [#allocation23], 1
    %3876 = vsyncpa [#allocation26], 1
    %3877 = vsyncpa [#allocation29], 1
    %3878 = vsyncpa [#allocation32], 1
    %3879 = vsyncpa [#allocation35], 1
    %3880 = vsyncpa [#allocation38], 1

</llo_original>
